<compile_context>
chip_gen: v6e
topology: v6e:2x2x1
jax: 0.10.0
libtpu: 0.0.40
codegen_flags: <defaults>
</compile_context>

<pallas_src>
import jax
import jax.numpy as jnp
from jax.experimental import pallas as pl
from jax.experimental.pallas import tpu as pltpu

C1, C2 = 6, 16          # conv1 / conv2 output channels
K = 5                   # conv kernel size
N_CLASSES = 65
HEAD = 128              # lane-padded head width (120 / 84 / 65 -> 128)


def _sigmoid(x):
    # explicit form: exp + divide lower cleanly on the TPU EUP/VPU
    return 1.0 / (1.0 + jnp.exp(-x))


def _lenet5_kernel(x_ref, w1_ref, b1_ref, p1h_ref, q1w_ref,
                   w2_ref, b2_ref, p2h_ref, q2w_ref,
                   w3_ref, b3_ref, w4_ref, b4_ref, w5_ref, b5_ref,
                   out_ref, p1_ref, p2_ref):
    """One sample per grid step; every intermediate stays in VMEM/vregs.

    Layouts (all f32):
      x_ref : (1, 32, 192)  zero-padded 32x32 input, pixel repeated over C1
                            lanes -> lane index = w*6 + c
      h1    : (28, 168)     conv1 output,  lane = w*6 + c
      p1    : (14,  84)     pool1 output,  lane = w*6 + c   (VMEM scratch)
      h2    : (10, 160)     conv2 output,  lane = w*16 + c
      p2    : ( 5,  80)     pool2 output,  lane = w*16 + c  (VMEM scratch)
      out   : (1, 1, 128)   logits, first 65 lanes valid
    """
    f32 = jnp.float32

    # ---- conv1 (5x5, padding already applied): 25-tap FMA in packed layout --
    acc = jnp.zeros((28, 28 * C1), f32)
    for t in range(K * K):
        di, dj = t // K, t % K
        patch = x_ref[0, di:di + 28, dj * C1: dj * C1 + 28 * C1]   # (28, 168)
        acc = acc + patch * w1_ref[t]                              # (1,168) bcast
    h1 = _sigmoid(acc + b1_ref[...])                               # (28, 168)

    # ---- pool1: 2x2 average pool == two small matmuls -----------------------
    p1_ref[...] = 0.25 * jnp.dot(
        jnp.dot(p1h_ref[...], h1, preferred_element_type=f32),
        q1w_ref[...], preferred_element_type=f32)                  # (14, 84)

    # ---- conv2 (5x5 valid): 5 MXU matmuls over block-structured weights -----
    h2 = None
    for di in range(K):
        grp = jnp.concatenate(
            [p1_ref[di:di + 10, dj * C1: dj * C1 + 10 * C1] for dj in range(K)],
            axis=1)                                                # (10, 300)
        term = jnp.dot(grp, w2_ref[di], preferred_element_type=f32)  # (10, 160)
        h2 = term if h2 is None else h2 + term
    h2 = _sigmoid(h2 + b2_ref[...])                                # (10, 160)

    # ---- pool2 ---------------------------------------------------------------
    p2_ref[...] = 0.25 * jnp.dot(
        jnp.dot(p2h_ref[...], h2, preferred_element_type=f32),
        q2w_ref[...], preferred_element_type=f32)                  # (5, 80)

    # ---- head: conv3 (5x5 -> 1x1) as matmul, then dense, then output --------
    # (no activations here, matching the PyTorch forward)
    v = jnp.concatenate([p2_ref[i:i + 1, :] for i in range(K)], axis=1)  # (1,400)
    h3 = jnp.dot(v, w3_ref[...], preferred_element_type=f32) + b3_ref[...]
    h4 = jnp.dot(h3, w4_ref[...], preferred_element_type=f32) + b4_ref[...]
    logits = jnp.dot(h4, w5_ref[...], preferred_element_type=f32) + b5_ref[...]
    out_ref[0] = logits                                            # (1, 128)


def _full_spec(shape):
    zeros = (0,) * len(shape)
    return pl.BlockSpec(shape, lambda b: zeros)


def lenet5_forward(x_nchw, params):
    n = x_nchw.shape[0]
    x = x_nchw.reshape(n, 28, 28).astype(jnp.float32)
    xp = jnp.pad(x, ((0, 0), (2, 2), (2, 2)))                 # (n, 32, 32)
    # layout plumbing only: repeat each pixel over the C1 lanes so the
    # in-kernel per-tap multiply is a plain elementwise FMA.
    xr = jnp.repeat(xp, C1, axis=-1)                          # (n, 32, 192)

    kernel_inputs = (
        xr,
        params["w1"], params["b1"], params["p1h"], params["q1w"],
        params["w2"], params["b2"], params["p2h"], params["q2w"],
        params["w3"], params["b3"], params["w4"], params["b4"],
        params["w5"], params["b5"],
    )
    in_specs = [pl.BlockSpec((1, 32, 32 * C1), lambda b: (b, 0, 0))]
    in_specs += [_full_spec(p.shape) for p in kernel_inputs[1:]]

    out = pl.pallas_call(
        _lenet5_kernel,
        out_shape=jax.ShapeDtypeStruct((n, 1, HEAD), jnp.float32),
        grid=(n,),
        in_specs=in_specs,
        out_specs=pl.BlockSpec((1, 1, HEAD), lambda b: (b, 0, 0)),
        scratch_shapes=[
            pltpu.VMEM((14, 14 * C1), jnp.float32),   # pool1 output
            pltpu.VMEM((5, 5 * C2), jnp.float32),     # pool2 output
        ],
        compiler_params=pltpu.CompilerParams(
            dimension_semantics=("parallel",)),
    )(*kernel_inputs)
    return out[:, 0, :N_CLASSES]


def init_params(key):
    """Random parameters in PyTorch layout, converted to the kernel layout."""
    ks = jax.random.split(key, 10)
    s = 0.1
    f32 = jnp.float32

    # --- PyTorch-layout tensors ----------------------------------------------
    W1 = jax.random.normal(ks[0], (C1, 1, K, K), f32) * s        # Conv2d(1,6,5,p=2)
    b1 = jax.random.normal(ks[1], (C1,), f32) * s
    W2 = jax.random.normal(ks[2], (C2, C1, K, K), f32) * s       # Conv2d(6,16,5)
    b2 = jax.random.normal(ks[3], (C2,), f32) * s
    W3 = jax.random.normal(ks[4], (120, C2, K, K), f32) * s      # Conv2d(16,120,5)
    b3 = jax.random.normal(ks[5], (120,), f32) * s
    W4 = jax.random.normal(ks[6], (84, 120), f32) * s            # Linear(120,84)
    b4 = jax.random.normal(ks[7], (84,), f32) * s
    W5 = jax.random.normal(ks[8], (N_CLASSES, 84), f32) * s      # Linear(84,65)
    b5 = jax.random.normal(ks[9], (N_CLASSES,), f32) * s

    # --- host-side, one-time conversion to the kernel layout -------------------
    def pad_to(a, shape):
        return jnp.pad(a, [(0, t - c) for c, t in zip(a.shape, shape)])

    def pool_pair(out_len):                      # P[j, x] = 1 iff x // 2 == j
        x_idx = jnp.arange(2 * out_len) // 2
        return (x_idx[None, :] == jnp.arange(out_len)[:, None]).astype(f32)

    # conv1: tap-major rows, tiled across the 28 packed output columns
    w1t = jnp.transpose(W1, (2, 3, 1, 0)).reshape(K * K, C1)     # [t, c]
    w1k = jnp.tile(w1t, (1, 28)).reshape(K * K, 1, 28 * C1)      # (25, 1, 168)
    b1k = jnp.tile(b1.reshape(1, C1), (1, 28))                   # (1, 168)

    # conv2: block-diagonal over output columns so each tap-row di is one
    # (10,300)@(300,160) matmul in the packed layout.
    W2t = jnp.transpose(W2, (2, 3, 1, 0))                        # (5,5,6,16) [di,dj,ci,co]
    eye10 = jnp.eye(10, dtype=f32)
    m2 = jnp.einsum('abcd,ux->abucxd', W2t, eye10)               # [di,dj,u,ci,x,co]
    w2k = m2.reshape(K, K * 10 * C1, 10 * C2)                    # (5, 300, 160)
    b2k = jnp.tile(b2.reshape(1, C2), (1, 10))                   # (1, 160)

    # pooling matrices: 2x2 avg pool = 0.25 * (P @ X @ Q) in packed layout
    p1h = pool_pair(14)                                          # (14, 28)
    q1w = jnp.kron(pool_pair(14).T, jnp.eye(C1, dtype=f32))      # (168, 84)
    p2h = pool_pair(5)                                           # (5, 10)
    q2w = jnp.kron(pool_pair(5).T, jnp.eye(C2, dtype=f32))       # (160, 80)

    # head: conv3-as-matmul (row order (di,dj,ci) matches the in-kernel
    # row-concat of pool2), dense, output -- all zero-padded to 128 lanes.
    w3k = pad_to(jnp.transpose(W3, (2, 3, 1, 0)).reshape(K * K * C2, 120),
                 (K * K * C2, HEAD))                             # (400, 128)
    b3k = pad_to(b3.reshape(1, 120), (1, HEAD))
    w4k = pad_to(W4.T, (HEAD, HEAD))
    b4k = pad_to(b4.reshape(1, 84), (1, HEAD))
    w5k = pad_to(W5.T, (HEAD, HEAD))
    b5k = pad_to(b5.reshape(1, N_CLASSES), (1, HEAD))

    return dict(w1=w1k, b1=b1k, p1h=p1h, q1w=q1w,
                w2=w2k, b2=b2k, p2h=p2h, q2w=q2w,
                w3=w3k, b3=b3k, w4=w4k, b4=b4k, w5=w5k, b5=b5k)


if __name__ == "__main__":
    key = jax.random.PRNGKey(0)
    kx, kp = jax.random.split(key)

    # MyLeNet5 input: NCHW, 1 channel, 28x28 (so conv3's 5x5 output is 1x1).
    x = jax.random.normal(kx, (2, 1, 28, 28), jnp.float32)
    params = init_params(kp)

    fwd = jax.jit(lenet5_forward)
    y = jax.block_until_ready(fwd(x, params))
    assert y.shape == (2, N_CLASSES) and y.dtype == jnp.float32
    assert bool(jnp.all(jnp.isfinite(y)))
    print("KERNEL_OK")
</pallas_src>

<mosaic_0001>
module attributes {stable_mosaic.version = 11 : i64} {
  func.func @_lenet5_kernel(%arg0: i32, %arg1: memref<1x32x192xf32, #tpu.memory_space<vmem>>, %arg2: memref<25x1x168xf32, #tpu.memory_space<vmem>>, %arg3: memref<1x168xf32, #tpu.memory_space<vmem>>, %arg4: memref<14x28xf32, #tpu.memory_space<vmem>>, %arg5: memref<168x84xf32, #tpu.memory_space<vmem>>, %arg6: memref<5x300x160xf32, #tpu.memory_space<vmem>>, %arg7: memref<1x160xf32, #tpu.memory_space<vmem>>, %arg8: memref<5x10xf32, #tpu.memory_space<vmem>>, %arg9: memref<160x80xf32, #tpu.memory_space<vmem>>, %arg10: memref<400x128xf32, #tpu.memory_space<vmem>>, %arg11: memref<1x128xf32, #tpu.memory_space<vmem>>, %arg12: memref<128x128xf32, #tpu.memory_space<vmem>>, %arg13: memref<1x128xf32, #tpu.memory_space<vmem>>, %arg14: memref<128x128xf32, #tpu.memory_space<vmem>>, %arg15: memref<1x128xf32, #tpu.memory_space<vmem>>, %arg16: memref<1x1x128xf32, #tpu.memory_space<vmem>>, %arg17: memref<14x84xf32, #tpu.memory_space<vmem>>, %arg18: memref<5x80xf32, #tpu.memory_space<vmem>>) attributes {dimension_semantics = [#tpu.dimension_semantics<parallel>], iteration_bounds = array<i64: 2>, scalar_prefetch = 0 : i64, scratch_operands = 2 : i64, tpu.core_type = #tpu.core_type<tc>, window_params = [{transform_indices = @transform_0, window_bounds = array<i64: 1, 32, 192>}, {pipeline_mode = #tpu.pipeline_mode<synchronous>, transform_indices = @transform_1, window_bounds = array<i64: 25, 1, 168>}, {pipeline_mode = #tpu.pipeline_mode<synchronous>, transform_indices = @transform_2, window_bounds = array<i64: 1, 168>}, {pipeline_mode = #tpu.pipeline_mode<synchronous>, transform_indices = @transform_3, window_bounds = array<i64: 14, 28>}, {pipeline_mode = #tpu.pipeline_mode<synchronous>, transform_indices = @transform_4, window_bounds = array<i64: 168, 84>}, {pipeline_mode = #tpu.pipeline_mode<synchronous>, transform_indices = @transform_5, window_bounds = array<i64: 5, 300, 160>}, {pipeline_mode = #tpu.pipeline_mode<synchronous>, transform_indices = @transform_6, window_bounds = array<i64: 1, 160>}, {pipeline_mode = #tpu.pipeline_mode<synchronous>, transform_indices = @transform_7, window_bounds = array<i64: 5, 10>}, {pipeline_mode = #tpu.pipeline_mode<synchronous>, transform_indices = @transform_8, window_bounds = array<i64: 160, 80>}, {pipeline_mode = #tpu.pipeline_mode<synchronous>, transform_indices = @transform_9, window_bounds = array<i64: 400, 128>}, {pipeline_mode = #tpu.pipeline_mode<synchronous>, transform_indices = @transform_10, window_bounds = array<i64: 1, 128>}, {pipeline_mode = #tpu.pipeline_mode<synchronous>, transform_indices = @transform_11, window_bounds = array<i64: 128, 128>}, {pipeline_mode = #tpu.pipeline_mode<synchronous>, transform_indices = @transform_12, window_bounds = array<i64: 1, 128>}, {pipeline_mode = #tpu.pipeline_mode<synchronous>, transform_indices = @transform_13, window_bounds = array<i64: 128, 128>}, {pipeline_mode = #tpu.pipeline_mode<synchronous>, transform_indices = @transform_14, window_bounds = array<i64: 1, 128>}, {transform_indices = @transform_15, window_bounds = array<i64: 1, 1, 128>}]} {
    %cst = arith.constant 0.000000e+00 : f32
    %0 = vector.broadcast %cst : f32 to vector<28x168xf32>
    %c0 = arith.constant 0 : index
    %c0_0 = arith.constant 0 : index
    %c0_1 = arith.constant 0 : index
    %1 = vector.load %arg1[%c0, %c0_0, %c0_1] : memref<1x32x192xf32, #tpu.memory_space<vmem>>, vector<1x28x168xf32>
    %2 = vector.shape_cast %1 : vector<1x28x168xf32> to vector<28x168xf32>
    %c0_2 = arith.constant 0 : index
    %c0_3 = arith.constant 0 : index
    %c0_4 = arith.constant 0 : index
    %3 = vector.load %arg2[%c0_2, %c0_3, %c0_4] : memref<25x1x168xf32, #tpu.memory_space<vmem>>, vector<1x1x168xf32>
    %4 = vector.shape_cast %3 : vector<1x1x168xf32> to vector<1x168xf32>
    %5 = vector.broadcast %4 : vector<1x168xf32> to vector<28x168xf32>
    %6 = arith.mulf %2, %5 : vector<28x168xf32>
    %7 = arith.addf %0, %6 : vector<28x168xf32>
    %c0_5 = arith.constant 0 : index
    %c0_6 = arith.constant 0 : index
    %c6 = arith.constant 6 : index
    %8 = vector.load %arg1[%c0_5, %c0_6, %c6] : memref<1x32x192xf32, #tpu.memory_space<vmem>>, vector<1x28x168xf32>
    %9 = vector.shape_cast %8 : vector<1x28x168xf32> to vector<28x168xf32>
    %c1 = arith.constant 1 : index
    %c0_7 = arith.constant 0 : index
    %c0_8 = arith.constant 0 : index
    %10 = vector.load %arg2[%c1, %c0_7, %c0_8] : memref<25x1x168xf32, #tpu.memory_space<vmem>>, vector<1x1x168xf32>
    %11 = vector.shape_cast %10 : vector<1x1x168xf32> to vector<1x168xf32>
    %12 = vector.broadcast %11 : vector<1x168xf32> to vector<28x168xf32>
    %13 = arith.mulf %9, %12 : vector<28x168xf32>
    %14 = arith.addf %7, %13 : vector<28x168xf32>
    %c0_9 = arith.constant 0 : index
    %c0_10 = arith.constant 0 : index
    %c12 = arith.constant 12 : index
    %15 = vector.load %arg1[%c0_9, %c0_10, %c12] : memref<1x32x192xf32, #tpu.memory_space<vmem>>, vector<1x28x168xf32>
    %16 = vector.shape_cast %15 : vector<1x28x168xf32> to vector<28x168xf32>
    %c2 = arith.constant 2 : index
    %c0_11 = arith.constant 0 : index
    %c0_12 = arith.constant 0 : index
    %17 = vector.load %arg2[%c2, %c0_11, %c0_12] : memref<25x1x168xf32, #tpu.memory_space<vmem>>, vector<1x1x168xf32>
    %18 = vector.shape_cast %17 : vector<1x1x168xf32> to vector<1x168xf32>
    %19 = vector.broadcast %18 : vector<1x168xf32> to vector<28x168xf32>
    %20 = arith.mulf %16, %19 : vector<28x168xf32>
    %21 = arith.addf %14, %20 : vector<28x168xf32>
    %c0_13 = arith.constant 0 : index
    %c0_14 = arith.constant 0 : index
    %c18 = arith.constant 18 : index
    %22 = vector.load %arg1[%c0_13, %c0_14, %c18] : memref<1x32x192xf32, #tpu.memory_space<vmem>>, vector<1x28x168xf32>
    %23 = vector.shape_cast %22 : vector<1x28x168xf32> to vector<28x168xf32>
    %c3 = arith.constant 3 : index
    %c0_15 = arith.constant 0 : index
    %c0_16 = arith.constant 0 : index
    %24 = vector.load %arg2[%c3, %c0_15, %c0_16] : memref<25x1x168xf32, #tpu.memory_space<vmem>>, vector<1x1x168xf32>
    %25 = vector.shape_cast %24 : vector<1x1x168xf32> to vector<1x168xf32>
    %26 = vector.broadcast %25 : vector<1x168xf32> to vector<28x168xf32>
    %27 = arith.mulf %23, %26 : vector<28x168xf32>
    %28 = arith.addf %21, %27 : vector<28x168xf32>
    %c0_17 = arith.constant 0 : index
    %c0_18 = arith.constant 0 : index
    %c24 = arith.constant 24 : index
    %29 = vector.load %arg1[%c0_17, %c0_18, %c24] : memref<1x32x192xf32, #tpu.memory_space<vmem>>, vector<1x28x168xf32>
    %30 = vector.shape_cast %29 : vector<1x28x168xf32> to vector<28x168xf32>
    %c4 = arith.constant 4 : index
    %c0_19 = arith.constant 0 : index
    %c0_20 = arith.constant 0 : index
    %31 = vector.load %arg2[%c4, %c0_19, %c0_20] : memref<25x1x168xf32, #tpu.memory_space<vmem>>, vector<1x1x168xf32>
    %32 = vector.shape_cast %31 : vector<1x1x168xf32> to vector<1x168xf32>
    %33 = vector.broadcast %32 : vector<1x168xf32> to vector<28x168xf32>
    %34 = arith.mulf %30, %33 : vector<28x168xf32>
    %35 = arith.addf %28, %34 : vector<28x168xf32>
    %c0_21 = arith.constant 0 : index
    %c1_22 = arith.constant 1 : index
    %c0_23 = arith.constant 0 : index
    %36 = vector.load %arg1[%c0_21, %c1_22, %c0_23] : memref<1x32x192xf32, #tpu.memory_space<vmem>>, vector<1x28x168xf32>
    %37 = vector.shape_cast %36 : vector<1x28x168xf32> to vector<28x168xf32>
    %c5 = arith.constant 5 : index
    %c0_24 = arith.constant 0 : index
    %c0_25 = arith.constant 0 : index
    %38 = vector.load %arg2[%c5, %c0_24, %c0_25] : memref<25x1x168xf32, #tpu.memory_space<vmem>>, vector<1x1x168xf32>
    %39 = vector.shape_cast %38 : vector<1x1x168xf32> to vector<1x168xf32>
    %40 = vector.broadcast %39 : vector<1x168xf32> to vector<28x168xf32>
    %41 = arith.mulf %37, %40 : vector<28x168xf32>
    %42 = arith.addf %35, %41 : vector<28x168xf32>
    %c0_26 = arith.constant 0 : index
    %c1_27 = arith.constant 1 : index
    %c6_28 = arith.constant 6 : index
    %43 = vector.load %arg1[%c0_26, %c1_27, %c6_28] : memref<1x32x192xf32, #tpu.memory_space<vmem>>, vector<1x28x168xf32>
    %44 = vector.shape_cast %43 : vector<1x28x168xf32> to vector<28x168xf32>
    %c6_29 = arith.constant 6 : index
    %c0_30 = arith.constant 0 : index
    %c0_31 = arith.constant 0 : index
    %45 = vector.load %arg2[%c6_29, %c0_30, %c0_31] : memref<25x1x168xf32, #tpu.memory_space<vmem>>, vector<1x1x168xf32>
    %46 = vector.shape_cast %45 : vector<1x1x168xf32> to vector<1x168xf32>
    %47 = vector.broadcast %46 : vector<1x168xf32> to vector<28x168xf32>
    %48 = arith.mulf %44, %47 : vector<28x168xf32>
    %49 = arith.addf %42, %48 : vector<28x168xf32>
    %c0_32 = arith.constant 0 : index
    %c1_33 = arith.constant 1 : index
    %c12_34 = arith.constant 12 : index
    %50 = vector.load %arg1[%c0_32, %c1_33, %c12_34] : memref<1x32x192xf32, #tpu.memory_space<vmem>>, vector<1x28x168xf32>
    %51 = vector.shape_cast %50 : vector<1x28x168xf32> to vector<28x168xf32>
    %c7 = arith.constant 7 : index
    %c0_35 = arith.constant 0 : index
    %c0_36 = arith.constant 0 : index
    %52 = vector.load %arg2[%c7, %c0_35, %c0_36] : memref<25x1x168xf32, #tpu.memory_space<vmem>>, vector<1x1x168xf32>
    %53 = vector.shape_cast %52 : vector<1x1x168xf32> to vector<1x168xf32>
    %54 = vector.broadcast %53 : vector<1x168xf32> to vector<28x168xf32>
    %55 = arith.mulf %51, %54 : vector<28x168xf32>
    %56 = arith.addf %49, %55 : vector<28x168xf32>
    %c0_37 = arith.constant 0 : index
    %c1_38 = arith.constant 1 : index
    %c18_39 = arith.constant 18 : index
    %57 = vector.load %arg1[%c0_37, %c1_38, %c18_39] : memref<1x32x192xf32, #tpu.memory_space<vmem>>, vector<1x28x168xf32>
    %58 = vector.shape_cast %57 : vector<1x28x168xf32> to vector<28x168xf32>
    %c8 = arith.constant 8 : index
    %c0_40 = arith.constant 0 : index
    %c0_41 = arith.constant 0 : index
    %59 = vector.load %arg2[%c8, %c0_40, %c0_41] : memref<25x1x168xf32, #tpu.memory_space<vmem>>, vector<1x1x168xf32>
    %60 = vector.shape_cast %59 : vector<1x1x168xf32> to vector<1x168xf32>
    %61 = vector.broadcast %60 : vector<1x168xf32> to vector<28x168xf32>
    %62 = arith.mulf %58, %61 : vector<28x168xf32>
    %63 = arith.addf %56, %62 : vector<28x168xf32>
    %c0_42 = arith.constant 0 : index
    %c1_43 = arith.constant 1 : index
    %c24_44 = arith.constant 24 : index
    %64 = vector.load %arg1[%c0_42, %c1_43, %c24_44] : memref<1x32x192xf32, #tpu.memory_space<vmem>>, vector<1x28x168xf32>
    %65 = vector.shape_cast %64 : vector<1x28x168xf32> to vector<28x168xf32>
    %c9 = arith.constant 9 : index
    %c0_45 = arith.constant 0 : index
    %c0_46 = arith.constant 0 : index
    %66 = vector.load %arg2[%c9, %c0_45, %c0_46] : memref<25x1x168xf32, #tpu.memory_space<vmem>>, vector<1x1x168xf32>
    %67 = vector.shape_cast %66 : vector<1x1x168xf32> to vector<1x168xf32>
    %68 = vector.broadcast %67 : vector<1x168xf32> to vector<28x168xf32>
    %69 = arith.mulf %65, %68 : vector<28x168xf32>
    %70 = arith.addf %63, %69 : vector<28x168xf32>
    %c0_47 = arith.constant 0 : index
    %c2_48 = arith.constant 2 : index
    %c0_49 = arith.constant 0 : index
    %71 = vector.load %arg1[%c0_47, %c2_48, %c0_49] : memref<1x32x192xf32, #tpu.memory_space<vmem>>, vector<1x28x168xf32>
    %72 = vector.shape_cast %71 : vector<1x28x168xf32> to vector<28x168xf32>
    %c10 = arith.constant 10 : index
    %c0_50 = arith.constant 0 : index
    %c0_51 = arith.constant 0 : index
    %73 = vector.load %arg2[%c10, %c0_50, %c0_51] : memref<25x1x168xf32, #tpu.memory_space<vmem>>, vector<1x1x168xf32>
    %74 = vector.shape_cast %73 : vector<1x1x168xf32> to vector<1x168xf32>
    %75 = vector.broadcast %74 : vector<1x168xf32> to vector<28x168xf32>
    %76 = arith.mulf %72, %75 : vector<28x168xf32>
    %77 = arith.addf %70, %76 : vector<28x168xf32>
    %c0_52 = arith.constant 0 : index
    %c2_53 = arith.constant 2 : index
    %c6_54 = arith.constant 6 : index
    %78 = vector.load %arg1[%c0_52, %c2_53, %c6_54] : memref<1x32x192xf32, #tpu.memory_space<vmem>>, vector<1x28x168xf32>
    %79 = vector.shape_cast %78 : vector<1x28x168xf32> to vector<28x168xf32>
    %c11 = arith.constant 11 : index
    %c0_55 = arith.constant 0 : index
    %c0_56 = arith.constant 0 : index
    %80 = vector.load %arg2[%c11, %c0_55, %c0_56] : memref<25x1x168xf32, #tpu.memory_space<vmem>>, vector<1x1x168xf32>
    %81 = vector.shape_cast %80 : vector<1x1x168xf32> to vector<1x168xf32>
    %82 = vector.broadcast %81 : vector<1x168xf32> to vector<28x168xf32>
    %83 = arith.mulf %79, %82 : vector<28x168xf32>
    %84 = arith.addf %77, %83 : vector<28x168xf32>
    %c0_57 = arith.constant 0 : index
    %c2_58 = arith.constant 2 : index
    %c12_59 = arith.constant 12 : index
    %85 = vector.load %arg1[%c0_57, %c2_58, %c12_59] : memref<1x32x192xf32, #tpu.memory_space<vmem>>, vector<1x28x168xf32>
    %86 = vector.shape_cast %85 : vector<1x28x168xf32> to vector<28x168xf32>
    %c12_60 = arith.constant 12 : index
    %c0_61 = arith.constant 0 : index
    %c0_62 = arith.constant 0 : index
    %87 = vector.load %arg2[%c12_60, %c0_61, %c0_62] : memref<25x1x168xf32, #tpu.memory_space<vmem>>, vector<1x1x168xf32>
    %88 = vector.shape_cast %87 : vector<1x1x168xf32> to vector<1x168xf32>
    %89 = vector.broadcast %88 : vector<1x168xf32> to vector<28x168xf32>
    %90 = arith.mulf %86, %89 : vector<28x168xf32>
    %91 = arith.addf %84, %90 : vector<28x168xf32>
    %c0_63 = arith.constant 0 : index
    %c2_64 = arith.constant 2 : index
    %c18_65 = arith.constant 18 : index
    %92 = vector.load %arg1[%c0_63, %c2_64, %c18_65] : memref<1x32x192xf32, #tpu.memory_space<vmem>>, vector<1x28x168xf32>
    %93 = vector.shape_cast %92 : vector<1x28x168xf32> to vector<28x168xf32>
    %c13 = arith.constant 13 : index
    %c0_66 = arith.constant 0 : index
    %c0_67 = arith.constant 0 : index
    %94 = vector.load %arg2[%c13, %c0_66, %c0_67] : memref<25x1x168xf32, #tpu.memory_space<vmem>>, vector<1x1x168xf32>
    %95 = vector.shape_cast %94 : vector<1x1x168xf32> to vector<1x168xf32>
    %96 = vector.broadcast %95 : vector<1x168xf32> to vector<28x168xf32>
    %97 = arith.mulf %93, %96 : vector<28x168xf32>
    %98 = arith.addf %91, %97 : vector<28x168xf32>
    %c0_68 = arith.constant 0 : index
    %c2_69 = arith.constant 2 : index
    %c24_70 = arith.constant 24 : index
    %99 = vector.load %arg1[%c0_68, %c2_69, %c24_70] : memref<1x32x192xf32, #tpu.memory_space<vmem>>, vector<1x28x168xf32>
    %100 = vector.shape_cast %99 : vector<1x28x168xf32> to vector<28x168xf32>
    %c14 = arith.constant 14 : index
    %c0_71 = arith.constant 0 : index
    %c0_72 = arith.constant 0 : index
    %101 = vector.load %arg2[%c14, %c0_71, %c0_72] : memref<25x1x168xf32, #tpu.memory_space<vmem>>, vector<1x1x168xf32>
    %102 = vector.shape_cast %101 : vector<1x1x168xf32> to vector<1x168xf32>
    %103 = vector.broadcast %102 : vector<1x168xf32> to vector<28x168xf32>
    %104 = arith.mulf %100, %103 : vector<28x168xf32>
    %105 = arith.addf %98, %104 : vector<28x168xf32>
    %c0_73 = arith.constant 0 : index
    %c3_74 = arith.constant 3 : index
    %c0_75 = arith.constant 0 : index
    %106 = vector.load %arg1[%c0_73, %c3_74, %c0_75] : memref<1x32x192xf32, #tpu.memory_space<vmem>>, vector<1x28x168xf32>
    %107 = vector.shape_cast %106 : vector<1x28x168xf32> to vector<28x168xf32>
    %c15 = arith.constant 15 : index
    %c0_76 = arith.constant 0 : index
    %c0_77 = arith.constant 0 : index
    %108 = vector.load %arg2[%c15, %c0_76, %c0_77] : memref<25x1x168xf32, #tpu.memory_space<vmem>>, vector<1x1x168xf32>
    %109 = vector.shape_cast %108 : vector<1x1x168xf32> to vector<1x168xf32>
    %110 = vector.broadcast %109 : vector<1x168xf32> to vector<28x168xf32>
    %111 = arith.mulf %107, %110 : vector<28x168xf32>
    %112 = arith.addf %105, %111 : vector<28x168xf32>
    %c0_78 = arith.constant 0 : index
    %c3_79 = arith.constant 3 : index
    %c6_80 = arith.constant 6 : index
    %113 = vector.load %arg1[%c0_78, %c3_79, %c6_80] : memref<1x32x192xf32, #tpu.memory_space<vmem>>, vector<1x28x168xf32>
    %114 = vector.shape_cast %113 : vector<1x28x168xf32> to vector<28x168xf32>
    %c16 = arith.constant 16 : index
    %c0_81 = arith.constant 0 : index
    %c0_82 = arith.constant 0 : index
    %115 = vector.load %arg2[%c16, %c0_81, %c0_82] : memref<25x1x168xf32, #tpu.memory_space<vmem>>, vector<1x1x168xf32>
    %116 = vector.shape_cast %115 : vector<1x1x168xf32> to vector<1x168xf32>
    %117 = vector.broadcast %116 : vector<1x168xf32> to vector<28x168xf32>
    %118 = arith.mulf %114, %117 : vector<28x168xf32>
    %119 = arith.addf %112, %118 : vector<28x168xf32>
    %c0_83 = arith.constant 0 : index
    %c3_84 = arith.constant 3 : index
    %c12_85 = arith.constant 12 : index
    %120 = vector.load %arg1[%c0_83, %c3_84, %c12_85] : memref<1x32x192xf32, #tpu.memory_space<vmem>>, vector<1x28x168xf32>
    %121 = vector.shape_cast %120 : vector<1x28x168xf32> to vector<28x168xf32>
    %c17 = arith.constant 17 : index
    %c0_86 = arith.constant 0 : index
    %c0_87 = arith.constant 0 : index
    %122 = vector.load %arg2[%c17, %c0_86, %c0_87] : memref<25x1x168xf32, #tpu.memory_space<vmem>>, vector<1x1x168xf32>
    %123 = vector.shape_cast %122 : vector<1x1x168xf32> to vector<1x168xf32>
    %124 = vector.broadcast %123 : vector<1x168xf32> to vector<28x168xf32>
    %125 = arith.mulf %121, %124 : vector<28x168xf32>
    %126 = arith.addf %119, %125 : vector<28x168xf32>
    %c0_88 = arith.constant 0 : index
    %c3_89 = arith.constant 3 : index
    %c18_90 = arith.constant 18 : index
    %127 = vector.load %arg1[%c0_88, %c3_89, %c18_90] : memref<1x32x192xf32, #tpu.memory_space<vmem>>, vector<1x28x168xf32>
    %128 = vector.shape_cast %127 : vector<1x28x168xf32> to vector<28x168xf32>
    %c18_91 = arith.constant 18 : index
    %c0_92 = arith.constant 0 : index
    %c0_93 = arith.constant 0 : index
    %129 = vector.load %arg2[%c18_91, %c0_92, %c0_93] : memref<25x1x168xf32, #tpu.memory_space<vmem>>, vector<1x1x168xf32>
    %130 = vector.shape_cast %129 : vector<1x1x168xf32> to vector<1x168xf32>
    %131 = vector.broadcast %130 : vector<1x168xf32> to vector<28x168xf32>
    %132 = arith.mulf %128, %131 : vector<28x168xf32>
    %133 = arith.addf %126, %132 : vector<28x168xf32>
    %c0_94 = arith.constant 0 : index
    %c3_95 = arith.constant 3 : index
    %c24_96 = arith.constant 24 : index
    %134 = vector.load %arg1[%c0_94, %c3_95, %c24_96] : memref<1x32x192xf32, #tpu.memory_space<vmem>>, vector<1x28x168xf32>
    %135 = vector.shape_cast %134 : vector<1x28x168xf32> to vector<28x168xf32>
    %c19 = arith.constant 19 : index
    %c0_97 = arith.constant 0 : index
    %c0_98 = arith.constant 0 : index
    %136 = vector.load %arg2[%c19, %c0_97, %c0_98] : memref<25x1x168xf32, #tpu.memory_space<vmem>>, vector<1x1x168xf32>
    %137 = vector.shape_cast %136 : vector<1x1x168xf32> to vector<1x168xf32>
    %138 = vector.broadcast %137 : vector<1x168xf32> to vector<28x168xf32>
    %139 = arith.mulf %135, %138 : vector<28x168xf32>
    %140 = arith.addf %133, %139 : vector<28x168xf32>
    %c0_99 = arith.constant 0 : index
    %c4_100 = arith.constant 4 : index
    %c0_101 = arith.constant 0 : index
    %141 = vector.load %arg1[%c0_99, %c4_100, %c0_101] : memref<1x32x192xf32, #tpu.memory_space<vmem>>, vector<1x28x168xf32>
    %142 = vector.shape_cast %141 : vector<1x28x168xf32> to vector<28x168xf32>
    %c20 = arith.constant 20 : index
    %c0_102 = arith.constant 0 : index
    %c0_103 = arith.constant 0 : index
    %143 = vector.load %arg2[%c20, %c0_102, %c0_103] : memref<25x1x168xf32, #tpu.memory_space<vmem>>, vector<1x1x168xf32>
    %144 = vector.shape_cast %143 : vector<1x1x168xf32> to vector<1x168xf32>
    %145 = vector.broadcast %144 : vector<1x168xf32> to vector<28x168xf32>
    %146 = arith.mulf %142, %145 : vector<28x168xf32>
    %147 = arith.addf %140, %146 : vector<28x168xf32>
    %c0_104 = arith.constant 0 : index
    %c4_105 = arith.constant 4 : index
    %c6_106 = arith.constant 6 : index
    %148 = vector.load %arg1[%c0_104, %c4_105, %c6_106] : memref<1x32x192xf32, #tpu.memory_space<vmem>>, vector<1x28x168xf32>
    %149 = vector.shape_cast %148 : vector<1x28x168xf32> to vector<28x168xf32>
    %c21 = arith.constant 21 : index
    %c0_107 = arith.constant 0 : index
    %c0_108 = arith.constant 0 : index
    %150 = vector.load %arg2[%c21, %c0_107, %c0_108] : memref<25x1x168xf32, #tpu.memory_space<vmem>>, vector<1x1x168xf32>
    %151 = vector.shape_cast %150 : vector<1x1x168xf32> to vector<1x168xf32>
    %152 = vector.broadcast %151 : vector<1x168xf32> to vector<28x168xf32>
    %153 = arith.mulf %149, %152 : vector<28x168xf32>
    %154 = arith.addf %147, %153 : vector<28x168xf32>
    %c0_109 = arith.constant 0 : index
    %c4_110 = arith.constant 4 : index
    %c12_111 = arith.constant 12 : index
    %155 = vector.load %arg1[%c0_109, %c4_110, %c12_111] : memref<1x32x192xf32, #tpu.memory_space<vmem>>, vector<1x28x168xf32>
    %156 = vector.shape_cast %155 : vector<1x28x168xf32> to vector<28x168xf32>
    %c22 = arith.constant 22 : index
    %c0_112 = arith.constant 0 : index
    %c0_113 = arith.constant 0 : index
    %157 = vector.load %arg2[%c22, %c0_112, %c0_113] : memref<25x1x168xf32, #tpu.memory_space<vmem>>, vector<1x1x168xf32>
    %158 = vector.shape_cast %157 : vector<1x1x168xf32> to vector<1x168xf32>
    %159 = vector.broadcast %158 : vector<1x168xf32> to vector<28x168xf32>
    %160 = arith.mulf %156, %159 : vector<28x168xf32>
    %161 = arith.addf %154, %160 : vector<28x168xf32>
    %c0_114 = arith.constant 0 : index
    %c4_115 = arith.constant 4 : index
    %c18_116 = arith.constant 18 : index
    %162 = vector.load %arg1[%c0_114, %c4_115, %c18_116] : memref<1x32x192xf32, #tpu.memory_space<vmem>>, vector<1x28x168xf32>
    %163 = vector.shape_cast %162 : vector<1x28x168xf32> to vector<28x168xf32>
    %c23 = arith.constant 23 : index
    %c0_117 = arith.constant 0 : index
    %c0_118 = arith.constant 0 : index
    %164 = vector.load %arg2[%c23, %c0_117, %c0_118] : memref<25x1x168xf32, #tpu.memory_space<vmem>>, vector<1x1x168xf32>
    %165 = vector.shape_cast %164 : vector<1x1x168xf32> to vector<1x168xf32>
    %166 = vector.broadcast %165 : vector<1x168xf32> to vector<28x168xf32>
    %167 = arith.mulf %163, %166 : vector<28x168xf32>
    %168 = arith.addf %161, %167 : vector<28x168xf32>
    %c0_119 = arith.constant 0 : index
    %c4_120 = arith.constant 4 : index
    %c24_121 = arith.constant 24 : index
    %169 = vector.load %arg1[%c0_119, %c4_120, %c24_121] : memref<1x32x192xf32, #tpu.memory_space<vmem>>, vector<1x28x168xf32>
    %170 = vector.shape_cast %169 : vector<1x28x168xf32> to vector<28x168xf32>
    %c24_122 = arith.constant 24 : index
    %c0_123 = arith.constant 0 : index
    %c0_124 = arith.constant 0 : index
    %171 = vector.load %arg2[%c24_122, %c0_123, %c0_124] : memref<25x1x168xf32, #tpu.memory_space<vmem>>, vector<1x1x168xf32>
    %172 = vector.shape_cast %171 : vector<1x1x168xf32> to vector<1x168xf32>
    %173 = vector.broadcast %172 : vector<1x168xf32> to vector<28x168xf32>
    %174 = arith.mulf %170, %173 : vector<28x168xf32>
    %175 = arith.addf %168, %174 : vector<28x168xf32>
    %c0_125 = arith.constant 0 : index
    %c0_126 = arith.constant 0 : index
    %176 = vector.load %arg3[%c0_125, %c0_126] : memref<1x168xf32, #tpu.memory_space<vmem>>, vector<1x168xf32>
    %177 = vector.broadcast %176 : vector<1x168xf32> to vector<28x168xf32>
    %178 = arith.addf %175, %177 : vector<28x168xf32>
    %cst_127 = arith.constant 0.000000e+00 : f32
    %179 = vector.broadcast %cst_127 : f32 to vector<28x168xf32>
    %180 = arith.subf %179, %178 : vector<28x168xf32>
    %181 = math.exp %180 : vector<28x168xf32>
    %cst_128 = arith.constant 1.000000e+00 : f32
    %182 = vector.broadcast %cst_128 : f32 to vector<28x168xf32>
    %183 = arith.addf %182, %181 : vector<28x168xf32>
    %cst_129 = arith.constant 1.000000e+00 : f32
    %184 = vector.broadcast %cst_129 : f32 to vector<28x168xf32>
    %185 = arith.divf %184, %183 : vector<28x168xf32>
    %c0_130 = arith.constant 0 : index
    %c0_131 = arith.constant 0 : index
    %186 = vector.load %arg4[%c0_130, %c0_131] : memref<14x28xf32, #tpu.memory_space<vmem>>, vector<14x28xf32>
    %cst_132 = arith.constant dense<0.000000e+00> : vector<14x168xf32>
    %187 = tpu.matmul %186, %185, %cst_132 {dimension_numbers = #tpu.dot_dimension_numbers<[1], [0], [0], [1], [0, 0, 1, 1], [], []>} : vector<14x28xf32>, vector<28x168xf32>, vector<14x168xf32> -> vector<14x168xf32>
    %c0_133 = arith.constant 0 : index
    %c0_134 = arith.constant 0 : index
    %188 = vector.load %arg5[%c0_133, %c0_134] : memref<168x84xf32, #tpu.memory_space<vmem>>, vector<168x84xf32>
    %cst_135 = arith.constant dense<0.000000e+00> : vector<14x84xf32>
    %189 = tpu.matmul %187, %188, %cst_135 {dimension_numbers = #tpu.dot_dimension_numbers<[1], [0], [0], [1], [0, 0, 1, 1], [], []>} : vector<14x168xf32>, vector<168x84xf32>, vector<14x84xf32> -> vector<14x84xf32>
    %cst_136 = arith.constant 2.500000e-01 : f32
    %190 = vector.broadcast %cst_136 : f32 to vector<14x84xf32>
    %191 = arith.mulf %190, %189 : vector<14x84xf32>
    %c0_137 = arith.constant 0 : index
    %c0_138 = arith.constant 0 : index
    %192 = vector.load %arg17[%c0_137, %c0_138] : memref<14x84xf32, #tpu.memory_space<vmem>>, vector<14x84xf32>
    tpu.vector_store %arg17[%c0_137, %c0_138], %191 {strides = array<i32>} : memref<14x84xf32, #tpu.memory_space<vmem>>, vector<14x84xf32>,
    %c0_139 = arith.constant 0 : index
    %c0_140 = arith.constant 0 : index
    %193 = vector.load %arg17[%c0_139, %c0_140] : memref<14x84xf32, #tpu.memory_space<vmem>>, vector<10x60xf32>
    %c0_141 = arith.constant 0 : index
    %c6_142 = arith.constant 6 : index
    %194 = vector.load %arg17[%c0_141, %c6_142] : memref<14x84xf32, #tpu.memory_space<vmem>>, vector<10x60xf32>
    %c0_143 = arith.constant 0 : index
    %c12_144 = arith.constant 12 : index
    %195 = vector.load %arg17[%c0_143, %c12_144] : memref<14x84xf32, #tpu.memory_space<vmem>>, vector<10x60xf32>
    %c0_145 = arith.constant 0 : index
    %c18_146 = arith.constant 18 : index
    %196 = vector.load %arg17[%c0_145, %c18_146] : memref<14x84xf32, #tpu.memory_space<vmem>>, vector<10x60xf32>
    %c0_147 = arith.constant 0 : index
    %c24_148 = arith.constant 24 : index
    %197 = vector.load %arg17[%c0_147, %c24_148] : memref<14x84xf32, #tpu.memory_space<vmem>>, vector<10x60xf32>
    %198 = tpu.concatenate %193, %194, %195, %196, %197 in 1 : vector<10x60xf32>, vector<10x60xf32>, vector<10x60xf32>, vector<10x60xf32>, vector<10x60xf32> -> vector<10x300xf32>
    %c0_149 = arith.constant 0 : index
    %c0_150 = arith.constant 0 : index
    %c0_151 = arith.constant 0 : index
    %199 = vector.load %arg6[%c0_149, %c0_150, %c0_151] : memref<5x300x160xf32, #tpu.memory_space<vmem>>, vector<1x300x160xf32>
    %200 = vector.shape_cast %199 : vector<1x300x160xf32> to vector<300x160xf32>
    %cst_152 = arith.constant dense<0.000000e+00> : vector<10x160xf32>
    %201 = tpu.matmul %198, %200, %cst_152 {dimension_numbers = #tpu.dot_dimension_numbers<[1], [0], [0], [1], [0, 0, 1, 1], [], []>} : vector<10x300xf32>, vector<300x160xf32>, vector<10x160xf32> -> vector<10x160xf32>
    %c1_153 = arith.constant 1 : index
    %c0_154 = arith.constant 0 : index
    %202 = vector.load %arg17[%c1_153, %c0_154] : memref<14x84xf32, #tpu.memory_space<vmem>>, vector<10x60xf32>
    %c1_155 = arith.constant 1 : index
    %c6_156 = arith.constant 6 : index
    %203 = vector.load %arg17[%c1_155, %c6_156] : memref<14x84xf32, #tpu.memory_space<vmem>>, vector<10x60xf32>
    %c1_157 = arith.constant 1 : index
    %c12_158 = arith.constant 12 : index
    %204 = vector.load %arg17[%c1_157, %c12_158] : memref<14x84xf32, #tpu.memory_space<vmem>>, vector<10x60xf32>
    %c1_159 = arith.constant 1 : index
    %c18_160 = arith.constant 18 : index
    %205 = vector.load %arg17[%c1_159, %c18_160] : memref<14x84xf32, #tpu.memory_space<vmem>>, vector<10x60xf32>
    %c1_161 = arith.constant 1 : index
    %c24_162 = arith.constant 24 : index
    %206 = vector.load %arg17[%c1_161, %c24_162] : memref<14x84xf32, #tpu.memory_space<vmem>>, vector<10x60xf32>
    %207 = tpu.concatenate %202, %203, %204, %205, %206 in 1 : vector<10x60xf32>, vector<10x60xf32>, vector<10x60xf32>, vector<10x60xf32>, vector<10x60xf32> -> vector<10x300xf32>
    %c1_163 = arith.constant 1 : index
    %c0_164 = arith.constant 0 : index
    %c0_165 = arith.constant 0 : index
    %208 = vector.load %arg6[%c1_163, %c0_164, %c0_165] : memref<5x300x160xf32, #tpu.memory_space<vmem>>, vector<1x300x160xf32>
    %209 = vector.shape_cast %208 : vector<1x300x160xf32> to vector<300x160xf32>
    %cst_166 = arith.constant dense<0.000000e+00> : vector<10x160xf32>
    %210 = tpu.matmul %207, %209, %cst_166 {dimension_numbers = #tpu.dot_dimension_numbers<[1], [0], [0], [1], [0, 0, 1, 1], [], []>} : vector<10x300xf32>, vector<300x160xf32>, vector<10x160xf32> -> vector<10x160xf32>
    %211 = arith.addf %201, %210 : vector<10x160xf32>
    %c2_167 = arith.constant 2 : index
    %c0_168 = arith.constant 0 : index
    %212 = vector.load %arg17[%c2_167, %c0_168] : memref<14x84xf32, #tpu.memory_space<vmem>>, vector<10x60xf32>
    %c2_169 = arith.constant 2 : index
    %c6_170 = arith.constant 6 : index
    %213 = vector.load %arg17[%c2_169, %c6_170] : memref<14x84xf32, #tpu.memory_space<vmem>>, vector<10x60xf32>
    %c2_171 = arith.constant 2 : index
    %c12_172 = arith.constant 12 : index
    %214 = vector.load %arg17[%c2_171, %c12_172] : memref<14x84xf32, #tpu.memory_space<vmem>>, vector<10x60xf32>
    %c2_173 = arith.constant 2 : index
    %c18_174 = arith.constant 18 : index
    %215 = vector.load %arg17[%c2_173, %c18_174] : memref<14x84xf32, #tpu.memory_space<vmem>>, vector<10x60xf32>
    %c2_175 = arith.constant 2 : index
    %c24_176 = arith.constant 24 : index
    %216 = vector.load %arg17[%c2_175, %c24_176] : memref<14x84xf32, #tpu.memory_space<vmem>>, vector<10x60xf32>
    %217 = tpu.concatenate %212, %213, %214, %215, %216 in 1 : vector<10x60xf32>, vector<10x60xf32>, vector<10x60xf32>, vector<10x60xf32>, vector<10x60xf32> -> vector<10x300xf32>
    %c2_177 = arith.constant 2 : index
    %c0_178 = arith.constant 0 : index
    %c0_179 = arith.constant 0 : index
    %218 = vector.load %arg6[%c2_177, %c0_178, %c0_179] : memref<5x300x160xf32, #tpu.memory_space<vmem>>, vector<1x300x160xf32>
    %219 = vector.shape_cast %218 : vector<1x300x160xf32> to vector<300x160xf32>
    %cst_180 = arith.constant dense<0.000000e+00> : vector<10x160xf32>
    %220 = tpu.matmul %217, %219, %cst_180 {dimension_numbers = #tpu.dot_dimension_numbers<[1], [0], [0], [1], [0, 0, 1, 1], [], []>} : vector<10x300xf32>, vector<300x160xf32>, vector<10x160xf32> -> vector<10x160xf32>
    %221 = arith.addf %211, %220 : vector<10x160xf32>
    %c3_181 = arith.constant 3 : index
    %c0_182 = arith.constant 0 : index
    %222 = vector.load %arg17[%c3_181, %c0_182] : memref<14x84xf32, #tpu.memory_space<vmem>>, vector<10x60xf32>
    %c3_183 = arith.constant 3 : index
    %c6_184 = arith.constant 6 : index
    %223 = vector.load %arg17[%c3_183, %c6_184] : memref<14x84xf32, #tpu.memory_space<vmem>>, vector<10x60xf32>
    %c3_185 = arith.constant 3 : index
    %c12_186 = arith.constant 12 : index
    %224 = vector.load %arg17[%c3_185, %c12_186] : memref<14x84xf32, #tpu.memory_space<vmem>>, vector<10x60xf32>
    %c3_187 = arith.constant 3 : index
    %c18_188 = arith.constant 18 : index
    %225 = vector.load %arg17[%c3_187, %c18_188] : memref<14x84xf32, #tpu.memory_space<vmem>>, vector<10x60xf32>
    %c3_189 = arith.constant 3 : index
    %c24_190 = arith.constant 24 : index
    %226 = vector.load %arg17[%c3_189, %c24_190] : memref<14x84xf32, #tpu.memory_space<vmem>>, vector<10x60xf32>
    %227 = tpu.concatenate %222, %223, %224, %225, %226 in 1 : vector<10x60xf32>, vector<10x60xf32>, vector<10x60xf32>, vector<10x60xf32>, vector<10x60xf32> -> vector<10x300xf32>
    %c3_191 = arith.constant 3 : index
    %c0_192 = arith.constant 0 : index
    %c0_193 = arith.constant 0 : index
    %228 = vector.load %arg6[%c3_191, %c0_192, %c0_193] : memref<5x300x160xf32, #tpu.memory_space<vmem>>, vector<1x300x160xf32>
    %229 = vector.shape_cast %228 : vector<1x300x160xf32> to vector<300x160xf32>
    %cst_194 = arith.constant dense<0.000000e+00> : vector<10x160xf32>
    %230 = tpu.matmul %227, %229, %cst_194 {dimension_numbers = #tpu.dot_dimension_numbers<[1], [0], [0], [1], [0, 0, 1, 1], [], []>} : vector<10x300xf32>, vector<300x160xf32>, vector<10x160xf32> -> vector<10x160xf32>
    %231 = arith.addf %221, %230 : vector<10x160xf32>
    %c4_195 = arith.constant 4 : index
    %c0_196 = arith.constant 0 : index
    %232 = vector.load %arg17[%c4_195, %c0_196] : memref<14x84xf32, #tpu.memory_space<vmem>>, vector<10x60xf32>
    %c4_197 = arith.constant 4 : index
    %c6_198 = arith.constant 6 : index
    %233 = vector.load %arg17[%c4_197, %c6_198] : memref<14x84xf32, #tpu.memory_space<vmem>>, vector<10x60xf32>
    %c4_199 = arith.constant 4 : index
    %c12_200 = arith.constant 12 : index
    %234 = vector.load %arg17[%c4_199, %c12_200] : memref<14x84xf32, #tpu.memory_space<vmem>>, vector<10x60xf32>
    %c4_201 = arith.constant 4 : index
    %c18_202 = arith.constant 18 : index
    %235 = vector.load %arg17[%c4_201, %c18_202] : memref<14x84xf32, #tpu.memory_space<vmem>>, vector<10x60xf32>
    %c4_203 = arith.constant 4 : index
    %c24_204 = arith.constant 24 : index
    %236 = vector.load %arg17[%c4_203, %c24_204] : memref<14x84xf32, #tpu.memory_space<vmem>>, vector<10x60xf32>
    %237 = tpu.concatenate %232, %233, %234, %235, %236 in 1 : vector<10x60xf32>, vector<10x60xf32>, vector<10x60xf32>, vector<10x60xf32>, vector<10x60xf32> -> vector<10x300xf32>
    %c4_205 = arith.constant 4 : index
    %c0_206 = arith.constant 0 : index
    %c0_207 = arith.constant 0 : index
    %238 = vector.load %arg6[%c4_205, %c0_206, %c0_207] : memref<5x300x160xf32, #tpu.memory_space<vmem>>, vector<1x300x160xf32>
    %239 = vector.shape_cast %238 : vector<1x300x160xf32> to vector<300x160xf32>
    %cst_208 = arith.constant dense<0.000000e+00> : vector<10x160xf32>
    %240 = tpu.matmul %237, %239, %cst_208 {dimension_numbers = #tpu.dot_dimension_numbers<[1], [0], [0], [1], [0, 0, 1, 1], [], []>} : vector<10x300xf32>, vector<300x160xf32>, vector<10x160xf32> -> vector<10x160xf32>
    %241 = arith.addf %231, %240 : vector<10x160xf32>
    %c0_209 = arith.constant 0 : index
    %c0_210 = arith.constant 0 : index
    %242 = vector.load %arg7[%c0_209, %c0_210] : memref<1x160xf32, #tpu.memory_space<vmem>>, vector<1x160xf32>
    %243 = vector.broadcast %242 : vector<1x160xf32> to vector<10x160xf32>
    %244 = arith.addf %241, %243 : vector<10x160xf32>
    %cst_211 = arith.constant 0.000000e+00 : f32
    %245 = vector.broadcast %cst_211 : f32 to vector<10x160xf32>
    %246 = arith.subf %245, %244 : vector<10x160xf32>
    %247 = math.exp %246 : vector<10x160xf32>
    %cst_212 = arith.constant 1.000000e+00 : f32
    %248 = vector.broadcast %cst_212 : f32 to vector<10x160xf32>
    %249 = arith.addf %248, %247 : vector<10x160xf32>
    %cst_213 = arith.constant 1.000000e+00 : f32
    %250 = vector.broadcast %cst_213 : f32 to vector<10x160xf32>
    %251 = arith.divf %250, %249 : vector<10x160xf32>
    %c0_214 = arith.constant 0 : index
    %c0_215 = arith.constant 0 : index
    %252 = vector.load %arg8[%c0_214, %c0_215] : memref<5x10xf32, #tpu.memory_space<vmem>>, vector<5x10xf32>
    %cst_216 = arith.constant dense<0.000000e+00> : vector<5x160xf32>
    %253 = tpu.matmul %252, %251, %cst_216 {dimension_numbers = #tpu.dot_dimension_numbers<[1], [0], [0], [1], [0, 0, 1, 1], [], []>} : vector<5x10xf32>, vector<10x160xf32>, vector<5x160xf32> -> vector<5x160xf32>
    %c0_217 = arith.constant 0 : index
    %c0_218 = arith.constant 0 : index
    %254 = vector.load %arg9[%c0_217, %c0_218] : memref<160x80xf32, #tpu.memory_space<vmem>>, vector<160x80xf32>
    %cst_219 = arith.constant dense<0.000000e+00> : vector<5x80xf32>
    %255 = tpu.matmul %253, %254, %cst_219 {dimension_numbers = #tpu.dot_dimension_numbers<[1], [0], [0], [1], [0, 0, 1, 1], [], []>} : vector<5x160xf32>, vector<160x80xf32>, vector<5x80xf32> -> vector<5x80xf32>
    %cst_220 = arith.constant 2.500000e-01 : f32
    %256 = vector.broadcast %cst_220 : f32 to vector<5x80xf32>
    %257 = arith.mulf %256, %255 : vector<5x80xf32>
    %c0_221 = arith.constant 0 : index
    %c0_222 = arith.constant 0 : index
    %258 = vector.load %arg18[%c0_221, %c0_222] : memref<5x80xf32, #tpu.memory_space<vmem>>, vector<5x80xf32>
    tpu.vector_store %arg18[%c0_221, %c0_222], %257 {strides = array<i32>} : memref<5x80xf32, #tpu.memory_space<vmem>>, vector<5x80xf32>,
    %c0_223 = arith.constant 0 : index
    %c0_224 = arith.constant 0 : index
    %259 = vector.load %arg18[%c0_223, %c0_224] : memref<5x80xf32, #tpu.memory_space<vmem>>, vector<1x80xf32>
    %c1_225 = arith.constant 1 : index
    %c0_226 = arith.constant 0 : index
    %260 = vector.load %arg18[%c1_225, %c0_226] : memref<5x80xf32, #tpu.memory_space<vmem>>, vector<1x80xf32>
    %c2_227 = arith.constant 2 : index
    %c0_228 = arith.constant 0 : index
    %261 = vector.load %arg18[%c2_227, %c0_228] : memref<5x80xf32, #tpu.memory_space<vmem>>, vector<1x80xf32>
    %c3_229 = arith.constant 3 : index
    %c0_230 = arith.constant 0 : index
    %262 = vector.load %arg18[%c3_229, %c0_230] : memref<5x80xf32, #tpu.memory_space<vmem>>, vector<1x80xf32>
    %c4_231 = arith.constant 4 : index
    %c0_232 = arith.constant 0 : index
    %263 = vector.load %arg18[%c4_231, %c0_232] : memref<5x80xf32, #tpu.memory_space<vmem>>, vector<1x80xf32>
    %264 = tpu.concatenate %259, %260, %261, %262, %263 in 1 : vector<1x80xf32>, vector<1x80xf32>, vector<1x80xf32>, vector<1x80xf32>, vector<1x80xf32> -> vector<1x400xf32>
    %c0_233 = arith.constant 0 : index
    %c0_234 = arith.constant 0 : index
    %265 = vector.load %arg10[%c0_233, %c0_234] : memref<400x128xf32, #tpu.memory_space<vmem>>, vector<400x128xf32>
    %cst_235 = arith.constant dense<0.000000e+00> : vector<1x128xf32>
    %266 = tpu.matmul %264, %265, %cst_235 {dimension_numbers = #tpu.dot_dimension_numbers<[1], [0], [0], [1], [0, 0, 1, 1], [], []>} : vector<1x400xf32>, vector<400x128xf32>, vector<1x128xf32> -> vector<1x128xf32>
    %c0_236 = arith.constant 0 : index
    %c0_237 = arith.constant 0 : index
    %267 = vector.load %arg11[%c0_236, %c0_237] : memref<1x128xf32, #tpu.memory_space<vmem>>, vector<1x128xf32>
    %268 = arith.addf %266, %267 : vector<1x128xf32>
    %c0_238 = arith.constant 0 : index
    %c0_239 = arith.constant 0 : index
    %269 = vector.load %arg12[%c0_238, %c0_239] : memref<128x128xf32, #tpu.memory_space<vmem>>, vector<128x128xf32>
    %cst_240 = arith.constant dense<0.000000e+00> : vector<1x128xf32>
    %270 = tpu.matmul %268, %269, %cst_240 {dimension_numbers = #tpu.dot_dimension_numbers<[1], [0], [0], [1], [0, 0, 1, 1], [], []>} : vector<1x128xf32>, vector<128x128xf32>, vector<1x128xf32> -> vector<1x128xf32>
    %c0_241 = arith.constant 0 : index
    %c0_242 = arith.constant 0 : index
    %271 = vector.load %arg13[%c0_241, %c0_242] : memref<1x128xf32, #tpu.memory_space<vmem>>, vector<1x128xf32>
    %272 = arith.addf %270, %271 : vector<1x128xf32>
    %c0_243 = arith.constant 0 : index
    %c0_244 = arith.constant 0 : index
    %273 = vector.load %arg14[%c0_243, %c0_244] : memref<128x128xf32, #tpu.memory_space<vmem>>, vector<128x128xf32>
    %cst_245 = arith.constant dense<0.000000e+00> : vector<1x128xf32>
    %274 = tpu.matmul %272, %273, %cst_245 {dimension_numbers = #tpu.dot_dimension_numbers<[1], [0], [0], [1], [0, 0, 1, 1], [], []>} : vector<1x128xf32>, vector<128x128xf32>, vector<1x128xf32> -> vector<1x128xf32>
    %c0_246 = arith.constant 0 : index
    %c0_247 = arith.constant 0 : index
    %275 = vector.load %arg15[%c0_246, %c0_247] : memref<1x128xf32, #tpu.memory_space<vmem>>, vector<1x128xf32>
    %276 = arith.addf %274, %275 : vector<1x128xf32>
    %c0_248 = arith.constant 0 : index
    %c0_249 = arith.constant 0 : index
    %c0_250 = arith.constant 0 : index
    %277 = vector.load %arg16[%c0_248, %c0_249, %c0_250] : memref<1x1x128xf32, #tpu.memory_space<vmem>>, vector<1x1x128xf32>
    %278 = vector.shape_cast %277 : vector<1x1x128xf32> to vector<1x128xf32>
    %279 = vector.shape_cast %276 : vector<1x128xf32> to vector<1x1x128xf32>
    tpu.vector_store %arg16[%c0_248, %c0_249, %c0_250], %279 {strides = array<i32>} : memref<1x1x128xf32, #tpu.memory_space<vmem>>, vector<1x1x128xf32>,
    return
  }
  func.func @transform_0(%arg0: i32) -> (i32, i32, i32) {
    %c0_i32 = arith.constant 0 : i32
    %c0_i32_0 = arith.constant 0 : i32
    %c0_i32_1 = arith.constant 0 : i32
    return %arg0, %c0_i32, %c0_i32_0 : i32, i32, i32
  }
  func.func @transform_1(%arg0: i32) -> (i32, i32, i32) {
    %c0_i32 = arith.constant 0 : i32
    %c0_i32_0 = arith.constant 0 : i32
    %c0_i32_1 = arith.constant 0 : i32
    %c0_i32_2 = arith.constant 0 : i32
    return %c0_i32, %c0_i32_0, %c0_i32_1 : i32, i32, i32
  }
  func.func @transform_2(%arg0: i32) -> (i32, i32) {
    %c0_i32 = arith.constant 0 : i32
    %c0_i32_0 = arith.constant 0 : i32
    %c0_i32_1 = arith.constant 0 : i32
    return %c0_i32, %c0_i32_0 : i32, i32
  }
  func.func @transform_3(%arg0: i32) -> (i32, i32) {
    %c0_i32 = arith.constant 0 : i32
    %c0_i32_0 = arith.constant 0 : i32
    %c0_i32_1 = arith.constant 0 : i32
    return %c0_i32, %c0_i32_0 : i32, i32
  }
  func.func @transform_4(%arg0: i32) -> (i32, i32) {
    %c0_i32 = arith.constant 0 : i32
    %c0_i32_0 = arith.constant 0 : i32
    %c0_i32_1 = arith.constant 0 : i32
    return %c0_i32, %c0_i32_0 : i32, i32
  }
  func.func @transform_5(%arg0: i32) -> (i32, i32, i32) {
    %c0_i32 = arith.constant 0 : i32
    %c0_i32_0 = arith.constant 0 : i32
    %c0_i32_1 = arith.constant 0 : i32
    %c0_i32_2 = arith.constant 0 : i32
    return %c0_i32, %c0_i32_0, %c0_i32_1 : i32, i32, i32
  }
  func.func @transform_6(%arg0: i32) -> (i32, i32) {
    %c0_i32 = arith.constant 0 : i32
    %c0_i32_0 = arith.constant 0 : i32
    %c0_i32_1 = arith.constant 0 : i32
    return %c0_i32, %c0_i32_0 : i32, i32
  }
  func.func @transform_7(%arg0: i32) -> (i32, i32) {
    %c0_i32 = arith.constant 0 : i32
    %c0_i32_0 = arith.constant 0 : i32
    %c0_i32_1 = arith.constant 0 : i32
    return %c0_i32, %c0_i32_0 : i32, i32
  }
  func.func @transform_8(%arg0: i32) -> (i32, i32) {
    %c0_i32 = arith.constant 0 : i32
    %c0_i32_0 = arith.constant 0 : i32
    %c0_i32_1 = arith.constant 0 : i32
    return %c0_i32, %c0_i32_0 : i32, i32
  }
  func.func @transform_9(%arg0: i32) -> (i32, i32) {
    %c0_i32 = arith.constant 0 : i32
    %c0_i32_0 = arith.constant 0 : i32
    %c0_i32_1 = arith.constant 0 : i32
    return %c0_i32, %c0_i32_0 : i32, i32
  }
  func.func @transform_10(%arg0: i32) -> (i32, i32) {
    %c0_i32 = arith.constant 0 : i32
    %c0_i32_0 = arith.constant 0 : i32
    %c0_i32_1 = arith.constant 0 : i32
    return %c0_i32, %c0_i32_0 : i32, i32
  }
  func.func @transform_11(%arg0: i32) -> (i32, i32) {
    %c0_i32 = arith.constant 0 : i32
    %c0_i32_0 = arith.constant 0 : i32
    %c0_i32_1 = arith.constant 0 : i32
    return %c0_i32, %c0_i32_0 : i32, i32
  }
  func.func @transform_12(%arg0: i32) -> (i32, i32) {
    %c0_i32 = arith.constant 0 : i32
    %c0_i32_0 = arith.constant 0 : i32
    %c0_i32_1 = arith.constant 0 : i32
    return %c0_i32, %c0_i32_0 : i32, i32
  }
  func.func @transform_13(%arg0: i32) -> (i32, i32) {
    %c0_i32 = arith.constant 0 : i32
    %c0_i32_0 = arith.constant 0 : i32
    %c0_i32_1 = arith.constant 0 : i32
    return %c0_i32, %c0_i32_0 : i32, i32
  }
  func.func @transform_14(%arg0: i32) -> (i32, i32) {
    %c0_i32 = arith.constant 0 : i32
    %c0_i32_0 = arith.constant 0 : i32
    %c0_i32_1 = arith.constant 0 : i32
    return %c0_i32, %c0_i32_0 : i32, i32
  }
  func.func @transform_15(%arg0: i32) -> (i32, i32, i32) {
    %c0_i32 = arith.constant 0 : i32
    %c0_i32_0 = arith.constant 0 : i32
    %c0_i32_1 = arith.constant 0 : i32
    return %arg0, %c0_i32, %c0_i32_0 : i32, i32, i32
  }
}

</mosaic_0001>

<llo_original>
// kernel: lenet5_forward.1
$region0: #{lenet5_forward.1}
  #allocation0 [shape = 'u32[]', space=smem, size = 0x4, offset = 0x4, fixed_abs, tag = 'smem constant byte address 0x4 - core index']
  #allocation1 [shape = 'u32[144,128]{1,0:T(1,128)}', space=vmem, size = 0x12000, scoped, tag = 'internal scratch']
  #allocation2 [shape = 'f32[14,84]{1,0:T(8,128)}', space=vmem, size = 0x2000, scoped, tag = 'scratch operand']
  #allocation3 [shape = 'f32[5,80]{1,0:T(8,128)}', space=vmem, size = 0x1000, scoped, tag = 'scratch operand']
  %s0 = inlined_call_operand.vmem [shape: f32[2,32,192], index: 0, kind: input, shape index: {}]
  %s1 = inlined_call_operand.vmem [shape: f32[25,1,168], index: 1, kind: input, shape index: {}]
  %s2 = inlined_call_operand.vmem [shape: f32[1,168], index: 2, kind: input, shape index: {}]
  %s3 = inlined_call_operand.vmem [shape: f32[14,28], index: 3, kind: input, shape index: {}]
  %s4 = inlined_call_operand.vmem [shape: f32[168,84], index: 4, kind: input, shape index: {}]
  %s5 = inlined_call_operand.vmem [shape: f32[5,300,160], index: 5, kind: input, shape index: {}]
  %s6 = inlined_call_operand.vmem [shape: f32[1,160], index: 6, kind: input, shape index: {}]
  %s7 = inlined_call_operand.vmem [shape: f32[5,10], index: 7, kind: input, shape index: {}]
  %s8 = inlined_call_operand.vmem [shape: f32[160,80], index: 8, kind: input, shape index: {}]
  %s9 = inlined_call_operand.vmem [shape: f32[400,128], index: 9, kind: input, shape index: {}]
  %s10 = inlined_call_operand.vmem [shape: f32[1,128], index: 10, kind: input, shape index: {}]
  %s11 = inlined_call_operand.vmem [shape: f32[128,128], index: 11, kind: input, shape index: {}]
  %s12 = inlined_call_operand.vmem [shape: f32[1,128], index: 12, kind: input, shape index: {}]
  %s13 = inlined_call_operand.vmem [shape: f32[128,128], index: 13, kind: input, shape index: {}]
  %s14 = inlined_call_operand.vmem [shape: f32[1,128], index: 14, kind: input, shape index: {}]
  %s15 = inlined_call_operand.hbm [shape: f32[2,1,128], index: 15, kind: output, shape index: {}]
  %s16 = sld [smem:[#allocation0]]
  $region93: #{lenet5_forward.1} parent=0
    _
  %s18 = ssub.s32 1, %s16
  %s19 = scalar_select 0, %s18, %s16
  $region1: #{lenet5_forward.1} parent=0
    #allocation4 [shape = 'u8[1024]{0}', space=vmem, size = 0x400, scoped, tag = 'output window, operand 0']
    #allocation5 [shape = 's32[2]{0}', space=sflag, size = 0x8, scoped, tag = 'scoped memory for lenet5_forward.1']
    %20 = vsyncpa [#allocation5], 0
    %s21 = scalar_lea.sflag [#allocation5], 1
    %22 = vsyncpa %s21, 0
    loop: start=0, step=1, limit=4
    $region2: #{lenet5_forward.1} parent=1 // loop_pre_header
      _
    $region3: #{lenet5_forward.1} parent=1 // loop_header
      %s24 = sphi 0, %s28
      %p25 = scmp.ge.s32.totalorder %s24, 4
      %s34 = sphi 0, %s36
      %s37 = sphi 0, %s34
      %s38 = sphi 0, %s37
      %s54 = sphi 0, %s38
      %s58 = sphi 0, %s58
      %s60 = sphi 0, %s58
      %s61 = sphi 0, %s60
      %s75 = sphi 0, %s61
      %s79 = sphi 0, %s79
      %s81 = sphi 0, %s79
      %s82 = sphi 0, %s81
      %s96 = sphi 0, %s82
      %s100 = sphi 0, %s100
      %s102 = sphi 0, %s100
      %s103 = sphi 0, %s102
      %s117 = sphi 0, %s103
      %s121 = sphi 0, %s121
      %s123 = sphi 0, %s121
      %s124 = sphi 0, %s123
      %s138 = sphi 0, %s124
      %s142 = sphi 0, %s142
      %s144 = sphi 0, %s142
      %s145 = sphi 0, %s144
      %s159 = sphi 0, %s145
      %s163 = sphi 0, %s163
      %s165 = sphi 0, %s163
      %s166 = sphi 0, %s165
      %s180 = sphi 0, %s166
      %s184 = sphi 0, %s184
      %s186 = sphi 0, %s184
      %s187 = sphi 0, %s186
      %s201 = sphi 0, %s187
      %s205 = sphi 0, %s205
      %s207 = sphi 0, %s205
      %s208 = sphi 0, %s207
      %s222 = sphi 0, %s208
      %s226 = sphi 0, %s226
      %s228 = sphi 0, %s226
      %s229 = sphi 0, %s228
      %s243 = sphi 0, %s229
      %s247 = sphi 0, %s247
      %s249 = sphi 0, %s247
      %s250 = sphi 0, %s249
      %s264 = sphi 0, %s250
      %s268 = sphi 0, %s268
      %s270 = sphi 0, %s268
      %s271 = sphi 0, %s270
      %s285 = sphi 0, %s271
      %s289 = sphi 0, %s289
      %s291 = sphi 0, %s289
      %s292 = sphi 0, %s291
      %s306 = sphi 0, %s292
      %s310 = sphi 0, %s310
      %s312 = sphi 0, %s310
      %s313 = sphi 0, %s312
      %s327 = sphi 0, %s313
      %s331 = sphi 0, %s331
      %s333 = sphi 0, %s331
      %s334 = sphi 0, %s333
      %s348 = sphi 0, %s334
      %s354 = sphi 0, %s356
      %s357 = sphi 0, %s354
      %s358 = sphi 0, %s357
      %s374 = sphi 0, %s358
    $region4: #{lenet5_forward.1} parent=1 // loop_header_branch
      %27 = sbr.rel (%p25) target = $region8
    $region5: #{lenet5_forward.1} parent=1 // loop_body
      %s29 = ssub.s32 %s24, 1
      %s30 = ssub.s32 %s24, 2
      %s31 = sadd.s32 %s24, 1
      %s32 = ssub.s32 %s24, %s31
      %p33 = scmp.eq.s32.totalorder %s32, 0
      %s35 = sadd.s32 %s34, 1
      %s36 = scalar_select %p33, %s34, %s35
      %p39 = pneg %p33
      %p40 = scmp.eq.s32.totalorder %s24, 1
      %p41 = por %p39, %p40
      %p42 = scmp.ne.s32.totalorder %s34, %s37
      %p43 = scmp.eq.s32.totalorder %s24, 0
      %p44 = por %p42, %p43
      %p45 = scmp.ne.s32.totalorder %s34, %s37
      %p46 = scmp.eq.s32.totalorder %s29, 1
      %p47 = por %p45, %p46
      %p48 = scmp.ne.s32.totalorder %s37, %s38
      %p49 = scmp.eq.s32.totalorder %s29, 0
      %p50 = por %p48, %p49
      %p51 = scmp.ne.s32.totalorder %s37, %s38
      %p52 = scmp.eq.s32.totalorder %s30, 1
      %p53 = por %p51, %p52
      %p55 = scmp.ne.s32.totalorder %s38, %s54
      %p56 = scmp.eq.s32.totalorder %s30, 0
      %p57 = por %p55, %p56
      %s59 = sadd.s32 %s58, 1
      %p62 = scmp.eq.s32.totalorder %s24, 1
      %p63 = scmp.ne.s32.totalorder %s58, %s60
      %p64 = scmp.eq.s32.totalorder %s24, 0
      %p65 = por %p63, %p64
      %p66 = scmp.ne.s32.totalorder %s58, %s60
      %p67 = scmp.eq.s32.totalorder %s29, 1
      %p68 = por %p66, %p67
      %p69 = scmp.ne.s32.totalorder %s60, %s61
      %p70 = scmp.eq.s32.totalorder %s29, 0
      %p71 = por %p69, %p70
      %p72 = scmp.ne.s32.totalorder %s60, %s61
      %p73 = scmp.eq.s32.totalorder %s30, 1
      %p74 = por %p72, %p73
      %p76 = scmp.ne.s32.totalorder %s61, %s75
      %p77 = scmp.eq.s32.totalorder %s30, 0
      %p78 = por %p76, %p77
      %s80 = sadd.s32 %s79, 1
      %p83 = scmp.eq.s32.totalorder %s24, 1
      %p84 = scmp.ne.s32.totalorder %s79, %s81
      %p85 = scmp.eq.s32.totalorder %s24, 0
      %p86 = por %p84, %p85
      %p87 = scmp.ne.s32.totalorder %s79, %s81
      %p88 = scmp.eq.s32.totalorder %s29, 1
      %p89 = por %p87, %p88
      %p90 = scmp.ne.s32.totalorder %s81, %s82
      %p91 = scmp.eq.s32.totalorder %s29, 0
      %p92 = por %p90, %p91
      %p93 = scmp.ne.s32.totalorder %s81, %s82
      %p94 = scmp.eq.s32.totalorder %s30, 1
      %p95 = por %p93, %p94
      %p97 = scmp.ne.s32.totalorder %s82, %s96
      %p98 = scmp.eq.s32.totalorder %s30, 0
      %p99 = por %p97, %p98
      %s101 = sadd.s32 %s100, 1
      %p104 = scmp.eq.s32.totalorder %s24, 1
      %p105 = scmp.ne.s32.totalorder %s100, %s102
      %p106 = scmp.eq.s32.totalorder %s24, 0
      %p107 = por %p105, %p106
      %p108 = scmp.ne.s32.totalorder %s100, %s102
      %p109 = scmp.eq.s32.totalorder %s29, 1
      %p110 = por %p108, %p109
      %p111 = scmp.ne.s32.totalorder %s102, %s103
      %p112 = scmp.eq.s32.totalorder %s29, 0
      %p113 = por %p111, %p112
      %p114 = scmp.ne.s32.totalorder %s102, %s103
      %p115 = scmp.eq.s32.totalorder %s30, 1
      %p116 = por %p114, %p115
      %p118 = scmp.ne.s32.totalorder %s103, %s117
      %p119 = scmp.eq.s32.totalorder %s30, 0
      %p120 = por %p118, %p119
      %s122 = sadd.s32 %s121, 1
      %p125 = scmp.eq.s32.totalorder %s24, 1
      %p126 = scmp.ne.s32.totalorder %s121, %s123
      %p127 = scmp.eq.s32.totalorder %s24, 0
      %p128 = por %p126, %p127
      %p129 = scmp.ne.s32.totalorder %s121, %s123
      %p130 = scmp.eq.s32.totalorder %s29, 1
      %p131 = por %p129, %p130
      %p132 = scmp.ne.s32.totalorder %s123, %s124
      %p133 = scmp.eq.s32.totalorder %s29, 0
      %p134 = por %p132, %p133
      %p135 = scmp.ne.s32.totalorder %s123, %s124
      %p136 = scmp.eq.s32.totalorder %s30, 1
      %p137 = por %p135, %p136
      %p139 = scmp.ne.s32.totalorder %s124, %s138
      %p140 = scmp.eq.s32.totalorder %s30, 0
      %p141 = por %p139, %p140
      %s143 = sadd.s32 %s142, 1
      %p146 = scmp.eq.s32.totalorder %s24, 1
      %p147 = scmp.ne.s32.totalorder %s142, %s144
      %p148 = scmp.eq.s32.totalorder %s24, 0
      %p149 = por %p147, %p148
      %p150 = scmp.ne.s32.totalorder %s142, %s144
      %p151 = scmp.eq.s32.totalorder %s29, 1
      %p152 = por %p150, %p151
      %p153 = scmp.ne.s32.totalorder %s144, %s145
      %p154 = scmp.eq.s32.totalorder %s29, 0
      %p155 = por %p153, %p154
      %p156 = scmp.ne.s32.totalorder %s144, %s145
      %p157 = scmp.eq.s32.totalorder %s30, 1
      %p158 = por %p156, %p157
      %p160 = scmp.ne.s32.totalorder %s145, %s159
      %p161 = scmp.eq.s32.totalorder %s30, 0
      %p162 = por %p160, %p161
      %s164 = sadd.s32 %s163, 1
      %p167 = scmp.eq.s32.totalorder %s24, 1
      %p168 = scmp.ne.s32.totalorder %s163, %s165
      %p169 = scmp.eq.s32.totalorder %s24, 0
      %p170 = por %p168, %p169
      %p171 = scmp.ne.s32.totalorder %s163, %s165
      %p172 = scmp.eq.s32.totalorder %s29, 1
      %p173 = por %p171, %p172
      %p174 = scmp.ne.s32.totalorder %s165, %s166
      %p175 = scmp.eq.s32.totalorder %s29, 0
      %p176 = por %p174, %p175
      %p177 = scmp.ne.s32.totalorder %s165, %s166
      %p178 = scmp.eq.s32.totalorder %s30, 1
      %p179 = por %p177, %p178
      %p181 = scmp.ne.s32.totalorder %s166, %s180
      %p182 = scmp.eq.s32.totalorder %s30, 0
      %p183 = por %p181, %p182
      %s185 = sadd.s32 %s184, 1
      %p188 = scmp.eq.s32.totalorder %s24, 1
      %p189 = scmp.ne.s32.totalorder %s184, %s186
      %p190 = scmp.eq.s32.totalorder %s24, 0
      %p191 = por %p189, %p190
      %p192 = scmp.ne.s32.totalorder %s184, %s186
      %p193 = scmp.eq.s32.totalorder %s29, 1
      %p194 = por %p192, %p193
      %p195 = scmp.ne.s32.totalorder %s186, %s187
      %p196 = scmp.eq.s32.totalorder %s29, 0
      %p197 = por %p195, %p196
      %p198 = scmp.ne.s32.totalorder %s186, %s187
      %p199 = scmp.eq.s32.totalorder %s30, 1
      %p200 = por %p198, %p199
      %p202 = scmp.ne.s32.totalorder %s187, %s201
      %p203 = scmp.eq.s32.totalorder %s30, 0
      %p204 = por %p202, %p203
      %s206 = sadd.s32 %s205, 1
      %p209 = scmp.eq.s32.totalorder %s24, 1
      %p210 = scmp.ne.s32.totalorder %s205, %s207
      %p211 = scmp.eq.s32.totalorder %s24, 0
      %p212 = por %p210, %p211
      %p213 = scmp.ne.s32.totalorder %s205, %s207
      %p214 = scmp.eq.s32.totalorder %s29, 1
      %p215 = por %p213, %p214
      %p216 = scmp.ne.s32.totalorder %s207, %s208
      %p217 = scmp.eq.s32.totalorder %s29, 0
      %p218 = por %p216, %p217
      %p219 = scmp.ne.s32.totalorder %s207, %s208
      %p220 = scmp.eq.s32.totalorder %s30, 1
      %p221 = por %p219, %p220
      %p223 = scmp.ne.s32.totalorder %s208, %s222
      %p224 = scmp.eq.s32.totalorder %s30, 0
      %p225 = por %p223, %p224
      %s227 = sadd.s32 %s226, 1
      %p230 = scmp.eq.s32.totalorder %s24, 1
      %p231 = scmp.ne.s32.totalorder %s226, %s228
      %p232 = scmp.eq.s32.totalorder %s24, 0
      %p233 = por %p231, %p232
      %p234 = scmp.ne.s32.totalorder %s226, %s228
      %p235 = scmp.eq.s32.totalorder %s29, 1
      %p236 = por %p234, %p235
      %p237 = scmp.ne.s32.totalorder %s228, %s229
      %p238 = scmp.eq.s32.totalorder %s29, 0
      %p239 = por %p237, %p238
      %p240 = scmp.ne.s32.totalorder %s228, %s229
      %p241 = scmp.eq.s32.totalorder %s30, 1
      %p242 = por %p240, %p241
      %p244 = scmp.ne.s32.totalorder %s229, %s243
      %p245 = scmp.eq.s32.totalorder %s30, 0
      %p246 = por %p244, %p245
      %s248 = sadd.s32 %s247, 1
      %p251 = scmp.eq.s32.totalorder %s24, 1
      %p252 = scmp.ne.s32.totalorder %s247, %s249
      %p253 = scmp.eq.s32.totalorder %s24, 0
      %p254 = por %p252, %p253
      %p255 = scmp.ne.s32.totalorder %s247, %s249
      %p256 = scmp.eq.s32.totalorder %s29, 1
      %p257 = por %p255, %p256
      %p258 = scmp.ne.s32.totalorder %s249, %s250
      %p259 = scmp.eq.s32.totalorder %s29, 0
      %p260 = por %p258, %p259
      %p261 = scmp.ne.s32.totalorder %s249, %s250
      %p262 = scmp.eq.s32.totalorder %s30, 1
      %p263 = por %p261, %p262
      %p265 = scmp.ne.s32.totalorder %s250, %s264
      %p266 = scmp.eq.s32.totalorder %s30, 0
      %p267 = por %p265, %p266
      %s269 = sadd.s32 %s268, 1
      %p272 = scmp.eq.s32.totalorder %s24, 1
      %p273 = scmp.ne.s32.totalorder %s268, %s270
      %p274 = scmp.eq.s32.totalorder %s24, 0
      %p275 = por %p273, %p274
      %p276 = scmp.ne.s32.totalorder %s268, %s270
      %p277 = scmp.eq.s32.totalorder %s29, 1
      %p278 = por %p276, %p277
      %p279 = scmp.ne.s32.totalorder %s270, %s271
      %p280 = scmp.eq.s32.totalorder %s29, 0
      %p281 = por %p279, %p280
      %p282 = scmp.ne.s32.totalorder %s270, %s271
      %p283 = scmp.eq.s32.totalorder %s30, 1
      %p284 = por %p282, %p283
      %p286 = scmp.ne.s32.totalorder %s271, %s285
      %p287 = scmp.eq.s32.totalorder %s30, 0
      %p288 = por %p286, %p287
      %s290 = sadd.s32 %s289, 1
      %p293 = scmp.eq.s32.totalorder %s24, 1
      %p294 = scmp.ne.s32.totalorder %s289, %s291
      %p295 = scmp.eq.s32.totalorder %s24, 0
      %p296 = por %p294, %p295
      %p297 = scmp.ne.s32.totalorder %s289, %s291
      %p298 = scmp.eq.s32.totalorder %s29, 1
      %p299 = por %p297, %p298
      %p300 = scmp.ne.s32.totalorder %s291, %s292
      %p301 = scmp.eq.s32.totalorder %s29, 0
      %p302 = por %p300, %p301
      %p303 = scmp.ne.s32.totalorder %s291, %s292
      %p304 = scmp.eq.s32.totalorder %s30, 1
      %p305 = por %p303, %p304
      %p307 = scmp.ne.s32.totalorder %s292, %s306
      %p308 = scmp.eq.s32.totalorder %s30, 0
      %p309 = por %p307, %p308
      %s311 = sadd.s32 %s310, 1
      %p314 = scmp.eq.s32.totalorder %s24, 1
      %p315 = scmp.ne.s32.totalorder %s310, %s312
      %p316 = scmp.eq.s32.totalorder %s24, 0
      %p317 = por %p315, %p316
      %p318 = scmp.ne.s32.totalorder %s310, %s312
      %p319 = scmp.eq.s32.totalorder %s29, 1
      %p320 = por %p318, %p319
      %p321 = scmp.ne.s32.totalorder %s312, %s313
      %p322 = scmp.eq.s32.totalorder %s29, 0
      %p323 = por %p321, %p322
      %p324 = scmp.ne.s32.totalorder %s312, %s313
      %p325 = scmp.eq.s32.totalorder %s30, 1
      %p326 = por %p324, %p325
      %p328 = scmp.ne.s32.totalorder %s313, %s327
      %p329 = scmp.eq.s32.totalorder %s30, 0
      %p330 = por %p328, %p329
      %s332 = sadd.s32 %s331, 1
      %p335 = scmp.eq.s32.totalorder %s24, 1
      %p336 = scmp.ne.s32.totalorder %s331, %s333
      %p337 = scmp.eq.s32.totalorder %s24, 0
      %p338 = por %p336, %p337
      %p339 = scmp.ne.s32.totalorder %s331, %s333
      %p340 = scmp.eq.s32.totalorder %s29, 1
      %p341 = por %p339, %p340
      %p342 = scmp.ne.s32.totalorder %s333, %s334
      %p343 = scmp.eq.s32.totalorder %s29, 0
      %p344 = por %p342, %p343
      %p345 = scmp.ne.s32.totalorder %s333, %s334
      %p346 = scmp.eq.s32.totalorder %s30, 1
      %p347 = por %p345, %p346
      %p349 = scmp.ne.s32.totalorder %s334, %s348
      %p350 = scmp.eq.s32.totalorder %s30, 0
      %p351 = por %p349, %p350
      %s352 = ssub.s32 %s24, %s31
      %p353 = scmp.eq.s32.totalorder %s352, 0
      %s355 = sadd.s32 %s354, 1
      %s356 = scalar_select %p353, %s354, %s355
      %p359 = pneg %p353
      %p360 = scmp.eq.s32.totalorder %s24, 1
      %p361 = por %p359, %p360
      %p362 = scmp.ne.s32.totalorder %s354, %s357
      %p363 = scmp.eq.s32.totalorder %s24, 0
      %p364 = por %p362, %p363
      %p365 = scmp.ne.s32.totalorder %s354, %s357
      %p366 = scmp.eq.s32.totalorder %s29, 1
      %p367 = por %p365, %p366
      %p368 = scmp.ne.s32.totalorder %s357, %s358
      %p369 = scmp.eq.s32.totalorder %s29, 0
      %p370 = por %p368, %p369
      %p371 = scmp.ne.s32.totalorder %s357, %s358
      %p372 = scmp.eq.s32.totalorder %s30, 1
      %p373 = por %p371, %p372
      %p375 = scmp.ne.s32.totalorder %s358, %s374
      %p376 = scmp.eq.s32.totalorder %s30, 0
      %p377 = por %p375, %p376
      %p378 = scmp.le.s32.totalorder 1, %s24
      %p379 = scmp.lt.s32.totalorder %s24, 3
      %p380 = pnand %p378, %p379
      %p381 = pneg %p380
      // Predicated region
      $region9: #{lenet5_forward.1} parent=5 // pred_check
        _
      $region10: #{lenet5_forward.1} parent=5 // pred_check_branch
        %383 = sbr.rel (%p380) target = $region12
      $region11: #{lenet5_forward.1} parent=5 // pred_region
        %s384 = ssub.s32 %s24, 1
        // Predicated region
        $region13: #{lenet5_forward.1} parent=11 // pred_check
          %p385 = pneg %p71
        $region14: #{lenet5_forward.1} parent=11 // pred_check_branch
          %387 = sbr.rel (%p385) target = $region16
        $region15: #{lenet5_forward.1} parent=11 // pred_region
          _
        $region16: #{lenet5_forward.1} parent=11 // pred_fallthru
          _
        // Predicated region
        $region17: #{lenet5_forward.1} parent=11 // pred_check
          %p388 = pneg %p92
        $region18: #{lenet5_forward.1} parent=11 // pred_check_branch
          %390 = sbr.rel (%p388) target = $region20
        $region19: #{lenet5_forward.1} parent=11 // pred_region
          _
        $region20: #{lenet5_forward.1} parent=11 // pred_fallthru
          _
        // Predicated region
        $region21: #{lenet5_forward.1} parent=11 // pred_check
          %p391 = pneg %p113
        $region22: #{lenet5_forward.1} parent=11 // pred_check_branch
          %393 = sbr.rel (%p391) target = $region24
        $region23: #{lenet5_forward.1} parent=11 // pred_region
          _
        $region24: #{lenet5_forward.1} parent=11 // pred_fallthru
          _
        // Predicated region
        $region25: #{lenet5_forward.1} parent=11 // pred_check
          %p394 = pneg %p134
        $region26: #{lenet5_forward.1} parent=11 // pred_check_branch
          %396 = sbr.rel (%p394) target = $region28
        $region27: #{lenet5_forward.1} parent=11 // pred_region
          _
        $region28: #{lenet5_forward.1} parent=11 // pred_fallthru
          _
        // Predicated region
        $region29: #{lenet5_forward.1} parent=11 // pred_check
          %p397 = pneg %p155
        $region30: #{lenet5_forward.1} parent=11 // pred_check_branch
          %399 = sbr.rel (%p397) target = $region32
        $region31: #{lenet5_forward.1} parent=11 // pred_region
          _
        $region32: #{lenet5_forward.1} parent=11 // pred_fallthru
          _
        // Predicated region
        $region33: #{lenet5_forward.1} parent=11 // pred_check
          %p400 = pneg %p176
        $region34: #{lenet5_forward.1} parent=11 // pred_check_branch
          %402 = sbr.rel (%p400) target = $region36
        $region35: #{lenet5_forward.1} parent=11 // pred_region
          _
        $region36: #{lenet5_forward.1} parent=11 // pred_fallthru
          _
        // Predicated region
        $region37: #{lenet5_forward.1} parent=11 // pred_check
          %p403 = pneg %p197
        $region38: #{lenet5_forward.1} parent=11 // pred_check_branch
          %405 = sbr.rel (%p403) target = $region40
        $region39: #{lenet5_forward.1} parent=11 // pred_region
          _
        $region40: #{lenet5_forward.1} parent=11 // pred_fallthru
          _
        // Predicated region
        $region41: #{lenet5_forward.1} parent=11 // pred_check
          %p406 = pneg %p218
        $region42: #{lenet5_forward.1} parent=11 // pred_check_branch
          %408 = sbr.rel (%p406) target = $region44
        $region43: #{lenet5_forward.1} parent=11 // pred_region
          _
        $region44: #{lenet5_forward.1} parent=11 // pred_fallthru
          _
        // Predicated region
        $region45: #{lenet5_forward.1} parent=11 // pred_check
          %p409 = pneg %p239
        $region46: #{lenet5_forward.1} parent=11 // pred_check_branch
          %411 = sbr.rel (%p409) target = $region48
        $region47: #{lenet5_forward.1} parent=11 // pred_region
          _
        $region48: #{lenet5_forward.1} parent=11 // pred_fallthru
          _
        // Predicated region
        $region49: #{lenet5_forward.1} parent=11 // pred_check
          %p412 = pneg %p260
        $region50: #{lenet5_forward.1} parent=11 // pred_check_branch
          %414 = sbr.rel (%p412) target = $region52
        $region51: #{lenet5_forward.1} parent=11 // pred_region
          _
        $region52: #{lenet5_forward.1} parent=11 // pred_fallthru
          _
        // Predicated region
        $region53: #{lenet5_forward.1} parent=11 // pred_check
          %p415 = pneg %p281
        $region54: #{lenet5_forward.1} parent=11 // pred_check_branch
          %417 = sbr.rel (%p415) target = $region56
        $region55: #{lenet5_forward.1} parent=11 // pred_region
          _
        $region56: #{lenet5_forward.1} parent=11 // pred_fallthru
          _
        // Predicated region
        $region57: #{lenet5_forward.1} parent=11 // pred_check
          %p418 = pneg %p302
        $region58: #{lenet5_forward.1} parent=11 // pred_check_branch
          %420 = sbr.rel (%p418) target = $region60
        $region59: #{lenet5_forward.1} parent=11 // pred_region
          _
        $region60: #{lenet5_forward.1} parent=11 // pred_fallthru
          _
        // Predicated region
        $region61: #{lenet5_forward.1} parent=11 // pred_check
          %p421 = pneg %p323
        $region62: #{lenet5_forward.1} parent=11 // pred_check_branch
          %423 = sbr.rel (%p421) target = $region64
        $region63: #{lenet5_forward.1} parent=11 // pred_region
          _
        $region64: #{lenet5_forward.1} parent=11 // pred_fallthru
          _
        // Predicated region
        $region65: #{lenet5_forward.1} parent=11 // pred_check
          %p424 = pneg %p344
        $region66: #{lenet5_forward.1} parent=11 // pred_check_branch
          %426 = sbr.rel (%p424) target = $region68
        $region67: #{lenet5_forward.1} parent=11 // pred_region
          _
        $region68: #{lenet5_forward.1} parent=11 // pred_fallthru
          _
      $region12: #{lenet5_forward.1} parent=5 // pred_fallthru
        _
      %p427 = scmp.lt.s32.totalorder %s24, 2
      // Predicated region
      $region69: #{lenet5_forward.1} parent=5 // pred_check
        %p428 = pneg %p427
      $region70: #{lenet5_forward.1} parent=5 // pred_check_branch
        %430 = sbr.rel (%p428) target = $region72
      $region71: #{lenet5_forward.1} parent=5 // pred_region
        // Predicated region
        $region73: #{lenet5_forward.1} parent=71 // pred_check
          %p431 = pneg %p44
        $region74: #{lenet5_forward.1} parent=71 // pred_check_branch
          %433 = sbr.rel (%p431) target = $region76
        $region75: #{lenet5_forward.1} parent=71 // pred_region
          %p434 = scmp.lt.s32.totalorder %s24, 1
          %s435 = scalar_select %p434, %s24, 1
          %s436 = smul.addr %s435, 8
          %s437 = smul.addr %s436, 8
          %s438 = scalar_lea.vmem %s0, %s437
        $region76: #{lenet5_forward.1} parent=71 // pred_fallthru
          _
      $region72: #{lenet5_forward.1} parent=5 // pred_fallthru
        _
      %p439 = scmp.le.s32.totalorder 1, %s24
      %p440 = scmp.lt.s32.totalorder %s24, 3
      %p441 = pnand %p439, %p440
      %p442 = pneg %p441
      // Predicated region
      $region77: #{lenet5_forward.1} parent=5 // pred_check
        _
      $region78: #{lenet5_forward.1} parent=5 // pred_check_branch
        %444 = sbr.rel (%p441) target = $region80
      $region79: #{lenet5_forward.1} parent=5 // pred_region
        %s445 = ssub.s32 %s24, 1
        %p446 = scmp.lt.s32.totalorder %s29, 1
        %s447 = scalar_select %p446, %s29, 1
        %s448 = smul.addr %s447, 8
        %s449 = smul.addr %s448, 8
        %s450 = scalar_lea.vmem %s0, %s449
        %p451 = pneg %p50
        %p452 = pneg %p47
        %p453 = pneg %p71
        %p454 = pneg %p68
        %p455 = pneg %p92
        %p456 = pneg %p89
        %p457 = pneg %p113
        %p458 = pneg %p110
        %p459 = pneg %p134
        %p460 = pneg %p131
        %p461 = pneg %p155
        %p462 = pneg %p152
        %p463 = pneg %p176
        %p464 = pneg %p173
        %p465 = pneg %p197
        %p466 = pneg %p194
        %p467 = pneg %p218
        %p468 = pneg %p215
        %p469 = pneg %p239
        %p470 = pneg %p236
        %p471 = pneg %p260
        %p472 = pneg %p257
        %p473 = pneg %p281
        %p474 = pneg %p278
        %p475 = pneg %p302
        %p476 = pneg %p299
        %p477 = pneg %p323
        %p478 = pneg %p320
        %p479 = pneg %p344
        %p480 = pneg %p341
        %p481 = pneg %p370
        %p482 = pneg %p367
        %s483 = sand.u32 %s357, 1
        %s484 = scalar_lea.sflag [#allocation5], %s483
        %s485 = sand.u32 %s357, 1
        %s486 = scalar_lea.vmem [#allocation4], %s485
        %p487 = scmp.lt.s32.totalorder %s29, 1
        %s488 = scalar_select %p487, %s29, 1
        %s489 = smul.addr %s488, 8
        %s490 = smul.addr %s489, 8
        %s491 = scalar_lea.vmem %s0, %s490
        %v492 = vld [vmem:[%s491] sm:$0xff]
        %v493 = vld [vmem:[%s491 + $0x8] sm:$0xff]
        %v494 = vld [vmem:[%s491 + $0x10] sm:$0xff]
        %v495 = vld [vmem:[%s491 + $0x18] sm:$0xff]
        %v496 = vld [vmem:[%s491 + $0x20] sm:$0xff]
        %v497 = vld [vmem:[%s491 + $0x28] sm:$0xff]
        %v498 = vld [vmem:[%s491 + $0x30] sm:$0xf]
        %v499 = vld [vmem:[%s491 + $0x38] sm:$0xf]
        %v500 = vld [vmem:[%s1] sm:$0x3]
        %v502 = vlaneseq
        %v503 = vshrl.u32 %v502, 7
        %v504 = vsub.s32 0, %v503
        %v505 = vrot.slane %v500, %v504
        %v506 = vlaneseq
        %v507 = vshrl.u32 %v506, 7
        %v508 = vsub.s32 1, %v507
        %v509 = vrot.slane %v500, %v508
        %v512 = vmul.f32 %v492, %v505
        %v513 = vmul.f32 %v493, %v509
        %v514 = vmul.f32 %v494, %v505
        %v515 = vmul.f32 %v495, %v509
        %v516 = vmul.f32 %v496, %v505
        %v517 = vmul.f32 %v497, %v509
        %v518 = vmul.f32 %v498, %v505
        %v519 = vmul.f32 %v499, %v509
        %v520 = vadd.f32 %v512, 0.0
        %v521 = vadd.f32 %v513, 0.0
        %v522 = vadd.f32 %v514, 0.0
        %v523 = vadd.f32 %v515, 0.0
        %v524 = vadd.f32 %v516, 0.0
        %v525 = vadd.f32 %v517, 0.0
        %v526 = vadd.f32 %v518, 0.0
        %v527 = vadd.f32 %v519, 0.0
        %s528 = scalar_lea.vmem %s1, 2
        %v529 = vld [vmem:[%s528] sm:$0x3]
        %v531 = vlaneseq
        %v532 = vshrl.u32 %v531, 7
        %v533 = vsub.s32 0, %v532
        %v534 = vrot.slane %v529, %v533
        %v535 = vlaneseq
        %v536 = vshrl.u32 %v535, 7
        %v537 = vsub.s32 1, %v536
        %v538 = vrot.slane %v529, %v537
        %539 = vrot.lane.b32.xlu0 %v534, 6
        %v540 = vpop.permute.xlu0 %539
        %541 = vrot.lane.b32.xlu0 %v538, 6
        %v542 = vpop.permute.xlu0 %541
        %vm543 = vcmask 48128
        %v544 = vsel %vm543, %v540, %v542
        %v547 = vmul.f32 %v492, %v540
        %v548 = vmul.f32 %v493, %v544
        %v549 = vmul.f32 %v494, %v540
        %v550 = vmul.f32 %v495, %v544
        %v551 = vmul.f32 %v496, %v540
        %v552 = vmul.f32 %v497, %v544
        %v553 = vmul.f32 %v498, %v540
        %v554 = vmul.f32 %v499, %v544
        %563 = vrot.lane.b32.xlu0 %v547, 122
        %v564 = vpop.permute.xlu0 %563
        %565 = vrot.lane.b32.xlu0 %v548, 122
        %v566 = vpop.permute.xlu0 %565
        %567 = vrot.lane.b32.xlu0 %v549, 122
        %v568 = vpop.permute.xlu0 %567
        %569 = vrot.lane.b32.xlu0 %v550, 122
        %v570 = vpop.permute.xlu0 %569
        %571 = vrot.lane.b32.xlu0 %v551, 122
        %v572 = vpop.permute.xlu0 %571
        %573 = vrot.lane.b32.xlu0 %v552, 122
        %v574 = vpop.permute.xlu0 %573
        %575 = vrot.lane.b32.xlu0 %v553, 122
        %v576 = vpop.permute.xlu0 %575
        %577 = vrot.lane.b32.xlu0 %v554, 122
        %v578 = vpop.permute.xlu0 %577
        %vm579 = vcmask 998400
        %v580 = vsel %vm579, %v564, %v566
        %v581 = vsel %vm579, %v568, %v570
        %v582 = vsel %vm579, %v572, %v574
        %v583 = vsel %vm579, %v576, %v578
        %v592 = vadd.f32 %v520, %v580
        %v593 = vadd.f32 %v521, %v566
        %v594 = vadd.f32 %v522, %v581
        %v595 = vadd.f32 %v523, %v570
        %v596 = vadd.f32 %v524, %v582
        %v597 = vadd.f32 %v525, %v574
        %v598 = vadd.f32 %v526, %v583
        %v599 = vadd.f32 %v527, %v578
        %s600 = scalar_lea.vmem %s1, 4
        %v601 = vld [vmem:[%s600] sm:$0x3]
        %v603 = vlaneseq
        %v604 = vshrl.u32 %v603, 7
        %v605 = vsub.s32 0, %v604
        %v606 = vrot.slane %v601, %v605
        %v607 = vlaneseq
        %v608 = vshrl.u32 %v607, 7
        %v609 = vsub.s32 1, %v608
        %v610 = vrot.slane %v601, %v609
        %611 = vrot.lane.b32.xlu0 %v606, 12
        %v612 = vpop.permute.xlu0 %611
        %613 = vrot.lane.b32.xlu0 %v610, 12
        %v614 = vpop.permute.xlu0 %613
        %vm615 = vcmask 97280
        %v616 = vsel %vm615, %v612, %v614
        %v619 = vmul.f32 %v492, %v612
        %v620 = vmul.f32 %v493, %v616
        %v621 = vmul.f32 %v494, %v612
        %v622 = vmul.f32 %v495, %v616
        %v623 = vmul.f32 %v496, %v612
        %v624 = vmul.f32 %v497, %v616
        %v625 = vmul.f32 %v498, %v612
        %v626 = vmul.f32 %v499, %v616
        %635 = vrot.lane.b32.xlu0 %v619, 116
        %v636 = vpop.permute.xlu0 %635
        %637 = vrot.lane.b32.xlu0 %v620, 116
        %v638 = vpop.permute.xlu0 %637
        %639 = vrot.lane.b32.xlu0 %v621, 116
        %v640 = vpop.permute.xlu0 %639
        %641 = vrot.lane.b32.xlu0 %v622, 116
        %v642 = vpop.permute.xlu0 %641
        %643 = vrot.lane.b32.xlu0 %v623, 116
        %v644 = vpop.permute.xlu0 %643
        %645 = vrot.lane.b32.xlu0 %v624, 116
        %v646 = vpop.permute.xlu0 %645
        %647 = vrot.lane.b32.xlu0 %v625, 116
        %v648 = vpop.permute.xlu0 %647
        %649 = vrot.lane.b32.xlu0 %v626, 116
        %v650 = vpop.permute.xlu0 %649
        %vm651 = vcmask 949248
        %v652 = vsel %vm651, %v636, %v638
        %v653 = vsel %vm651, %v640, %v642
        %v654 = vsel %vm651, %v644, %v646
        %v655 = vsel %vm651, %v648, %v650
        %v664 = vadd.f32 %v592, %v652
        %v665 = vadd.f32 %v593, %v638
        %v666 = vadd.f32 %v594, %v653
        %v667 = vadd.f32 %v595, %v642
        %v668 = vadd.f32 %v596, %v654
        %v669 = vadd.f32 %v597, %v646
        %v670 = vadd.f32 %v598, %v655
        %v671 = vadd.f32 %v599, %v650
        %s672 = scalar_lea.vmem %s1, 6
        %v673 = vld [vmem:[%s672] sm:$0x3]
        %v675 = vlaneseq
        %v676 = vshrl.u32 %v675, 7
        %v677 = vsub.s32 0, %v676
        %v678 = vrot.slane %v673, %v677
        %v679 = vlaneseq
        %v680 = vshrl.u32 %v679, 7
        %v681 = vsub.s32 1, %v680
        %v682 = vrot.slane %v673, %v681
        %683 = vrot.lane.b32.xlu0 %v678, 18
        %v684 = vpop.permute.xlu0 %683
        %685 = vrot.lane.b32.xlu0 %v682, 18
        %v686 = vpop.permute.xlu0 %685
        %vm687 = vcmask 146432
        %v688 = vsel %vm687, %v684, %v686
        %v691 = vmul.f32 %v492, %v684
        %v692 = vmul.f32 %v493, %v688
        %v693 = vmul.f32 %v494, %v684
        %v694 = vmul.f32 %v495, %v688
        %v695 = vmul.f32 %v496, %v684
        %v696 = vmul.f32 %v497, %v688
        %v697 = vmul.f32 %v498, %v684
        %v698 = vmul.f32 %v499, %v688
        %707 = vrot.lane.b32.xlu0 %v691, 110
        %v708 = vpop.permute.xlu0 %707
        %709 = vrot.lane.b32.xlu0 %v692, 110
        %v710 = vpop.permute.xlu0 %709
        %711 = vrot.lane.b32.xlu0 %v693, 110
        %v712 = vpop.permute.xlu0 %711
        %713 = vrot.lane.b32.xlu0 %v694, 110
        %v714 = vpop.permute.xlu0 %713
        %715 = vrot.lane.b32.xlu0 %v695, 110
        %v716 = vpop.permute.xlu0 %715
        %717 = vrot.lane.b32.xlu0 %v696, 110
        %v718 = vpop.permute.xlu0 %717
        %719 = vrot.lane.b32.xlu0 %v697, 110
        %v720 = vpop.permute.xlu0 %719
        %721 = vrot.lane.b32.xlu0 %v698, 110
        %v722 = vpop.permute.xlu0 %721
        %vm723 = vcmask 900096
        %v724 = vsel %vm723, %v708, %v710
        %v725 = vsel %vm723, %v712, %v714
        %v726 = vsel %vm723, %v716, %v718
        %v727 = vsel %vm723, %v720, %v722
        %v736 = vadd.f32 %v664, %v724
        %v737 = vadd.f32 %v665, %v710
        %v738 = vadd.f32 %v666, %v725
        %v739 = vadd.f32 %v667, %v714
        %v740 = vadd.f32 %v668, %v726
        %v741 = vadd.f32 %v669, %v718
        %v742 = vadd.f32 %v670, %v727
        %v743 = vadd.f32 %v671, %v722
        %s744 = scalar_lea.vmem %s1, 8
        %v745 = vld [vmem:[%s744] sm:$0x3]
        %v747 = vlaneseq
        %v748 = vshrl.u32 %v747, 7
        %v749 = vsub.s32 0, %v748
        %v750 = vrot.slane %v745, %v749
        %v751 = vlaneseq
        %v752 = vshrl.u32 %v751, 7
        %v753 = vsub.s32 1, %v752
        %v754 = vrot.slane %v745, %v753
        %755 = vrot.lane.b32.xlu0 %v750, 24
        %v756 = vpop.permute.xlu0 %755
        %757 = vrot.lane.b32.xlu0 %v754, 24
        %v758 = vpop.permute.xlu0 %757
        %vm759 = vcmask 195584
        %v760 = vsel %vm759, %v756, %v758
        %v763 = vmul.f32 %v492, %v756
        %v764 = vmul.f32 %v493, %v760
        %v765 = vmul.f32 %v494, %v756
        %v766 = vmul.f32 %v495, %v760
        %v767 = vmul.f32 %v496, %v756
        %v768 = vmul.f32 %v497, %v760
        %v769 = vmul.f32 %v498, %v756
        %v770 = vmul.f32 %v499, %v760
        %779 = vrot.lane.b32.xlu0 %v763, 104
        %v780 = vpop.permute.xlu0 %779
        %781 = vrot.lane.b32.xlu0 %v764, 104
        %v782 = vpop.permute.xlu0 %781
        %783 = vrot.lane.b32.xlu0 %v765, 104
        %v784 = vpop.permute.xlu0 %783
        %785 = vrot.lane.b32.xlu0 %v766, 104
        %v786 = vpop.permute.xlu0 %785
        %787 = vrot.lane.b32.xlu0 %v767, 104
        %v788 = vpop.permute.xlu0 %787
        %789 = vrot.lane.b32.xlu0 %v768, 104
        %v790 = vpop.permute.xlu0 %789
        %791 = vrot.lane.b32.xlu0 %v769, 104
        %v792 = vpop.permute.xlu0 %791
        %793 = vrot.lane.b32.xlu0 %v770, 104
        %v794 = vpop.permute.xlu0 %793
        %vm795 = vcmask 850944
        %v796 = vsel %vm795, %v780, %v782
        %v797 = vsel %vm795, %v784, %v786
        %v798 = vsel %vm795, %v788, %v790
        %v799 = vsel %vm795, %v792, %v794
        %v808 = vadd.f32 %v736, %v796
        %v809 = vadd.f32 %v737, %v782
        %v810 = vadd.f32 %v738, %v797
        %v811 = vadd.f32 %v739, %v786
        %v812 = vadd.f32 %v740, %v798
        %v813 = vadd.f32 %v741, %v790
        %v814 = vadd.f32 %v742, %v799
        %v815 = vadd.f32 %v743, %v794
        %v816 = vld [vmem:[%s491] sm:$0xfe]
        %v817 = vld [vmem:[%s491 + $0x8] sm:$0xfe]
        %v818 = vld [vmem:[%s491 + $0x30] sm:$0x1f]
        %v819 = vld [vmem:[%s491 + $0x38] sm:$0x1f]
        %s820 = scalar_lea.vmem %s1, 10
        %v821 = vld [vmem:[%s820] sm:$0x3]
        %v823 = vlaneseq
        %v824 = vshrl.u32 %v823, 7
        %v825 = vsub.s32 0, %v824
        %v826 = vrot.slane %v821, %v825
        %v827 = vlaneseq
        %v828 = vshrl.u32 %v827, 7
        %v829 = vsub.s32 1, %v828
        %v830 = vrot.slane %v821, %v829
        %v833 = vmul.f32 %v816, %v826
        %v834 = vmul.f32 %v817, %v830
        %v835 = vmul.f32 %v494, %v826
        %v836 = vmul.f32 %v495, %v830
        %v837 = vmul.f32 %v496, %v826
        %v838 = vmul.f32 %v497, %v830
        %v839 = vmul.f32 %v818, %v826
        %v840 = vmul.f32 %v819, %v830
        %vm849 = vcmask 1046528
        %v850 = vrot.slane %v833, 1
        %v851 = vrot.slane %v835, 1
        %v852 = vsel %vm849, %v850, %v851
        %v853 = vrot.slane %v834, 1
        %v854 = vrot.slane %v836, 1
        %v855 = vsel %vm849, %v853, %v854
        %v856 = vrot.slane %v837, 1
        %v857 = vsel %vm849, %v851, %v856
        %v858 = vrot.slane %v838, 1
        %v859 = vsel %vm849, %v854, %v858
        %v860 = vrot.slane %v839, 1
        %v861 = vsel %vm849, %v856, %v860
        %v862 = vrot.slane %v840, 1
        %v863 = vsel %vm849, %v858, %v862
        %v872 = vadd.f32 %v808, %v852
        %v873 = vadd.f32 %v809, %v855
        %v874 = vadd.f32 %v810, %v857
        %v875 = vadd.f32 %v811, %v859
        %v876 = vadd.f32 %v812, %v861
        %v877 = vadd.f32 %v813, %v863
        %v878 = vadd.f32 %v814, %v860
        %v879 = vadd.f32 %v815, %v862
        %s880 = scalar_lea.vmem %s1, 12
        %v881 = vld [vmem:[%s880] sm:$0x3]
        %v883 = vlaneseq
        %v884 = vshrl.u32 %v883, 7
        %v885 = vsub.s32 0, %v884
        %v886 = vrot.slane %v881, %v885
        %v887 = vlaneseq
        %v888 = vshrl.u32 %v887, 7
        %v889 = vsub.s32 1, %v888
        %v890 = vrot.slane %v881, %v889
        %891 = vrot.lane.b32.xlu0 %v886, 6
        %v892 = vpop.permute.xlu0 %891
        %893 = vrot.lane.b32.xlu0 %v890, 6
        %v894 = vpop.permute.xlu0 %893
        %v895 = vsel %vm543, %v892, %v894
        %v898 = vmul.f32 %v816, %v892
        %v899 = vmul.f32 %v817, %v895
        %v900 = vmul.f32 %v494, %v892
        %v901 = vmul.f32 %v495, %v895
        %v902 = vmul.f32 %v496, %v892
        %v903 = vmul.f32 %v497, %v895
        %v904 = vmul.f32 %v818, %v892
        %v905 = vmul.f32 %v819, %v895
        %v914 = vrot.slane %v898, 1
        %v915 = vrot.slane %v900, 1
        %v916 = vsel %vm849, %v914, %v915
        %v917 = vrot.slane %v899, 1
        %v918 = vrot.slane %v901, 1
        %v919 = vsel %vm849, %v917, %v918
        %v920 = vrot.slane %v902, 1
        %v921 = vsel %vm849, %v915, %v920
        %v922 = vrot.slane %v903, 1
        %v923 = vsel %vm849, %v918, %v922
        %v924 = vrot.slane %v904, 1
        %v925 = vsel %vm849, %v920, %v924
        %v926 = vrot.slane %v905, 1
        %v927 = vsel %vm849, %v922, %v926
        %928 = vrot.lane.b32.xlu0 %v916, 122
        %v929 = vpop.permute.xlu0 %928
        %930 = vrot.lane.b32.xlu0 %v919, 122
        %v931 = vpop.permute.xlu0 %930
        %932 = vrot.lane.b32.xlu0 %v921, 122
        %v933 = vpop.permute.xlu0 %932
        %934 = vrot.lane.b32.xlu0 %v923, 122
        %v935 = vpop.permute.xlu0 %934
        %936 = vrot.lane.b32.xlu0 %v925, 122
        %v937 = vpop.permute.xlu0 %936
        %938 = vrot.lane.b32.xlu0 %v927, 122
        %v939 = vpop.permute.xlu0 %938
        %940 = vrot.lane.b32.xlu0 %v924, 122
        %v941 = vpop.permute.xlu0 %940
        %942 = vrot.lane.b32.xlu0 %v926, 122
        %v943 = vpop.permute.xlu0 %942
        %v944 = vsel %vm579, %v929, %v931
        %v945 = vsel %vm579, %v933, %v935
        %v946 = vsel %vm579, %v937, %v939
        %v947 = vsel %vm579, %v941, %v943
        %v956 = vadd.f32 %v872, %v944
        %v957 = vadd.f32 %v873, %v931
        %v958 = vadd.f32 %v874, %v945
        %v959 = vadd.f32 %v875, %v935
        %v960 = vadd.f32 %v876, %v946
        %v961 = vadd.f32 %v877, %v939
        %v962 = vadd.f32 %v878, %v947
        %v963 = vadd.f32 %v879, %v943
        %s964 = scalar_lea.vmem %s1, 14
        %v965 = vld [vmem:[%s964] sm:$0x3]
        %v967 = vlaneseq
        %v968 = vshrl.u32 %v967, 7
        %v969 = vsub.s32 0, %v968
        %v970 = vrot.slane %v965, %v969
        %v971 = vlaneseq
        %v972 = vshrl.u32 %v971, 7
        %v973 = vsub.s32 1, %v972
        %v974 = vrot.slane %v965, %v973
        %975 = vrot.lane.b32.xlu0 %v970, 12
        %v976 = vpop.permute.xlu0 %975
        %977 = vrot.lane.b32.xlu0 %v974, 12
        %v978 = vpop.permute.xlu0 %977
        %v979 = vsel %vm615, %v976, %v978
        %v982 = vmul.f32 %v816, %v976
        %v983 = vmul.f32 %v817, %v979
        %v984 = vmul.f32 %v494, %v976
        %v985 = vmul.f32 %v495, %v979
        %v986 = vmul.f32 %v496, %v976
        %v987 = vmul.f32 %v497, %v979
        %v988 = vmul.f32 %v818, %v976
        %v989 = vmul.f32 %v819, %v979
        %v998 = vrot.slane %v982, 1
        %v999 = vrot.slane %v984, 1
        %v1000 = vsel %vm849, %v998, %v999
        %v1001 = vrot.slane %v983, 1
        %v1002 = vrot.slane %v985, 1
        %v1003 = vsel %vm849, %v1001, %v1002
        %v1004 = vrot.slane %v986, 1
        %v1005 = vsel %vm849, %v999, %v1004
        %v1006 = vrot.slane %v987, 1
        %v1007 = vsel %vm849, %v1002, %v1006
        %v1008 = vrot.slane %v988, 1
        %v1009 = vsel %vm849, %v1004, %v1008
        %v1010 = vrot.slane %v989, 1
        %v1011 = vsel %vm849, %v1006, %v1010
        %1012 = vrot.lane.b32.xlu0 %v1000, 116
        %v1013 = vpop.permute.xlu0 %1012
        %1014 = vrot.lane.b32.xlu0 %v1003, 116
        %v1015 = vpop.permute.xlu0 %1014
        %1016 = vrot.lane.b32.xlu0 %v1005, 116
        %v1017 = vpop.permute.xlu0 %1016
        %1018 = vrot.lane.b32.xlu0 %v1007, 116
        %v1019 = vpop.permute.xlu0 %1018
        %1020 = vrot.lane.b32.xlu0 %v1009, 116
        %v1021 = vpop.permute.xlu0 %1020
        %1022 = vrot.lane.b32.xlu0 %v1011, 116
        %v1023 = vpop.permute.xlu0 %1022
        %1024 = vrot.lane.b32.xlu0 %v1008, 116
        %v1025 = vpop.permute.xlu0 %1024
        %1026 = vrot.lane.b32.xlu0 %v1010, 116
        %v1027 = vpop.permute.xlu0 %1026
        %v1028 = vsel %vm651, %v1013, %v1015
        %v1029 = vsel %vm651, %v1017, %v1019
        %v1030 = vsel %vm651, %v1021, %v1023
        %v1031 = vsel %vm651, %v1025, %v1027
        %v1040 = vadd.f32 %v956, %v1028
        %v1041 = vadd.f32 %v957, %v1015
        %v1042 = vadd.f32 %v958, %v1029
        %v1043 = vadd.f32 %v959, %v1019
        %v1044 = vadd.f32 %v960, %v1030
        %v1045 = vadd.f32 %v961, %v1023
        %v1046 = vadd.f32 %v962, %v1031
        %v1047 = vadd.f32 %v963, %v1027
        %s1048 = scalar_lea.vmem %s1, 16
        %v1049 = vld [vmem:[%s1048] sm:$0x3]
        %v1051 = vlaneseq
        %v1052 = vshrl.u32 %v1051, 7
        %v1053 = vsub.s32 0, %v1052
        %v1054 = vrot.slane %v1049, %v1053
        %v1055 = vlaneseq
        %v1056 = vshrl.u32 %v1055, 7
        %v1057 = vsub.s32 1, %v1056
        %v1058 = vrot.slane %v1049, %v1057
        %1059 = vrot.lane.b32.xlu0 %v1054, 18
        %v1060 = vpop.permute.xlu0 %1059
        %1061 = vrot.lane.b32.xlu0 %v1058, 18
        %v1062 = vpop.permute.xlu0 %1061
        %v1063 = vsel %vm687, %v1060, %v1062
        %v1066 = vmul.f32 %v816, %v1060
        %v1067 = vmul.f32 %v817, %v1063
        %v1068 = vmul.f32 %v494, %v1060
        %v1069 = vmul.f32 %v495, %v1063
        %v1070 = vmul.f32 %v496, %v1060
        %v1071 = vmul.f32 %v497, %v1063
        %v1072 = vmul.f32 %v818, %v1060
        %v1073 = vmul.f32 %v819, %v1063
        %v1082 = vrot.slane %v1066, 1
        %v1083 = vrot.slane %v1068, 1
        %v1084 = vsel %vm849, %v1082, %v1083
        %v1085 = vrot.slane %v1067, 1
        %v1086 = vrot.slane %v1069, 1
        %v1087 = vsel %vm849, %v1085, %v1086
        %v1088 = vrot.slane %v1070, 1
        %v1089 = vsel %vm849, %v1083, %v1088
        %v1090 = vrot.slane %v1071, 1
        %v1091 = vsel %vm849, %v1086, %v1090
        %v1092 = vrot.slane %v1072, 1
        %v1093 = vsel %vm849, %v1088, %v1092
        %v1094 = vrot.slane %v1073, 1
        %v1095 = vsel %vm849, %v1090, %v1094
        %1096 = vrot.lane.b32.xlu0 %v1084, 110
        %v1097 = vpop.permute.xlu0 %1096
        %1098 = vrot.lane.b32.xlu0 %v1087, 110
        %v1099 = vpop.permute.xlu0 %1098
        %1100 = vrot.lane.b32.xlu0 %v1089, 110
        %v1101 = vpop.permute.xlu0 %1100
        %1102 = vrot.lane.b32.xlu0 %v1091, 110
        %v1103 = vpop.permute.xlu0 %1102
        %1104 = vrot.lane.b32.xlu0 %v1093, 110
        %v1105 = vpop.permute.xlu0 %1104
        %1106 = vrot.lane.b32.xlu0 %v1095, 110
        %v1107 = vpop.permute.xlu0 %1106
        %1108 = vrot.lane.b32.xlu0 %v1092, 110
        %v1109 = vpop.permute.xlu0 %1108
        %1110 = vrot.lane.b32.xlu0 %v1094, 110
        %v1111 = vpop.permute.xlu0 %1110
        %v1112 = vsel %vm723, %v1097, %v1099
        %v1113 = vsel %vm723, %v1101, %v1103
        %v1114 = vsel %vm723, %v1105, %v1107
        %v1115 = vsel %vm723, %v1109, %v1111
        %v1124 = vadd.f32 %v1040, %v1112
        %v1125 = vadd.f32 %v1041, %v1099
        %v1126 = vadd.f32 %v1042, %v1113
        %v1127 = vadd.f32 %v1043, %v1103
        %v1128 = vadd.f32 %v1044, %v1114
        %v1129 = vadd.f32 %v1045, %v1107
        %v1130 = vadd.f32 %v1046, %v1115
        %v1131 = vadd.f32 %v1047, %v1111
        %s1132 = scalar_lea.vmem %s1, 18
        %v1133 = vld [vmem:[%s1132] sm:$0x3]
        %v1135 = vlaneseq
        %v1136 = vshrl.u32 %v1135, 7
        %v1137 = vsub.s32 0, %v1136
        %v1138 = vrot.slane %v1133, %v1137
        %v1139 = vlaneseq
        %v1140 = vshrl.u32 %v1139, 7
        %v1141 = vsub.s32 1, %v1140
        %v1142 = vrot.slane %v1133, %v1141
        %1143 = vrot.lane.b32.xlu0 %v1138, 24
        %v1144 = vpop.permute.xlu0 %1143
        %1145 = vrot.lane.b32.xlu0 %v1142, 24
        %v1146 = vpop.permute.xlu0 %1145
        %v1147 = vsel %vm759, %v1144, %v1146
        %v1150 = vmul.f32 %v816, %v1144
        %v1151 = vmul.f32 %v817, %v1147
        %v1152 = vmul.f32 %v494, %v1144
        %v1153 = vmul.f32 %v495, %v1147
        %v1154 = vmul.f32 %v496, %v1144
        %v1155 = vmul.f32 %v497, %v1147
        %v1156 = vmul.f32 %v818, %v1144
        %v1157 = vmul.f32 %v819, %v1147
        %v1166 = vrot.slane %v1150, 1
        %v1167 = vrot.slane %v1152, 1
        %v1168 = vsel %vm849, %v1166, %v1167
        %v1169 = vrot.slane %v1151, 1
        %v1170 = vrot.slane %v1153, 1
        %v1171 = vsel %vm849, %v1169, %v1170
        %v1172 = vrot.slane %v1154, 1
        %v1173 = vsel %vm849, %v1167, %v1172
        %v1174 = vrot.slane %v1155, 1
        %v1175 = vsel %vm849, %v1170, %v1174
        %v1176 = vrot.slane %v1156, 1
        %v1177 = vsel %vm849, %v1172, %v1176
        %v1178 = vrot.slane %v1157, 1
        %v1179 = vsel %vm849, %v1174, %v1178
        %1180 = vrot.lane.b32.xlu0 %v1168, 104
        %v1181 = vpop.permute.xlu0 %1180
        %1182 = vrot.lane.b32.xlu0 %v1171, 104
        %v1183 = vpop.permute.xlu0 %1182
        %1184 = vrot.lane.b32.xlu0 %v1173, 104
        %v1185 = vpop.permute.xlu0 %1184
        %1186 = vrot.lane.b32.xlu0 %v1175, 104
        %v1187 = vpop.permute.xlu0 %1186
        %1188 = vrot.lane.b32.xlu0 %v1177, 104
        %v1189 = vpop.permute.xlu0 %1188
        %1190 = vrot.lane.b32.xlu0 %v1179, 104
        %v1191 = vpop.permute.xlu0 %1190
        %1192 = vrot.lane.b32.xlu0 %v1176, 104
        %v1193 = vpop.permute.xlu0 %1192
        %1194 = vrot.lane.b32.xlu0 %v1178, 104
        %v1195 = vpop.permute.xlu0 %1194
        %v1196 = vsel %vm795, %v1181, %v1183
        %v1197 = vsel %vm795, %v1185, %v1187
        %v1198 = vsel %vm795, %v1189, %v1191
        %v1199 = vsel %vm795, %v1193, %v1195
        %v1208 = vadd.f32 %v1124, %v1196
        %v1209 = vadd.f32 %v1125, %v1183
        %v1210 = vadd.f32 %v1126, %v1197
        %v1211 = vadd.f32 %v1127, %v1187
        %v1212 = vadd.f32 %v1128, %v1198
        %v1213 = vadd.f32 %v1129, %v1191
        %v1214 = vadd.f32 %v1130, %v1199
        %v1215 = vadd.f32 %v1131, %v1195
        %v1216 = vld [vmem:[%s491] sm:$0xfc]
        %v1217 = vld [vmem:[%s491 + $0x8] sm:$0xfc]
        %v1218 = vld [vmem:[%s491 + $0x30] sm:$0x3f]
        %v1219 = vld [vmem:[%s491 + $0x38] sm:$0x3f]
        %s1220 = scalar_lea.vmem %s1, 20
        %v1221 = vld [vmem:[%s1220] sm:$0x3]
        %v1223 = vlaneseq
        %v1224 = vshrl.u32 %v1223, 7
        %v1225 = vsub.s32 0, %v1224
        %v1226 = vrot.slane %v1221, %v1225
        %v1227 = vlaneseq
        %v1228 = vshrl.u32 %v1227, 7
        %v1229 = vsub.s32 1, %v1228
        %v1230 = vrot.slane %v1221, %v1229
        %v1233 = vmul.f32 %v1216, %v1226
        %v1234 = vmul.f32 %v1217, %v1230
        %v1235 = vmul.f32 %v494, %v1226
        %v1236 = vmul.f32 %v495, %v1230
        %v1237 = vmul.f32 %v496, %v1226
        %v1238 = vmul.f32 %v497, %v1230
        %v1239 = vmul.f32 %v1218, %v1226
        %v1240 = vmul.f32 %v1219, %v1230
        %vm1249 = vcmask 1045504
        %v1250 = vrot.slane %v1233, 2
        %v1251 = vrot.slane %v1235, 2
        %v1252 = vsel %vm1249, %v1250, %v1251
        %v1253 = vrot.slane %v1234, 2
        %v1254 = vrot.slane %v1236, 2
        %v1255 = vsel %vm1249, %v1253, %v1254
        %v1256 = vrot.slane %v1237, 2
        %v1257 = vsel %vm1249, %v1251, %v1256
        %v1258 = vrot.slane %v1238, 2
        %v1259 = vsel %vm1249, %v1254, %v1258
        %v1260 = vrot.slane %v1239, 2
        %v1261 = vsel %vm1249, %v1256, %v1260
        %v1262 = vrot.slane %v1240, 2
        %v1263 = vsel %vm1249, %v1258, %v1262
        %v1272 = vadd.f32 %v1208, %v1252
        %v1273 = vadd.f32 %v1209, %v1255
        %v1274 = vadd.f32 %v1210, %v1257
        %v1275 = vadd.f32 %v1211, %v1259
        %v1276 = vadd.f32 %v1212, %v1261
        %v1277 = vadd.f32 %v1213, %v1263
        %v1278 = vadd.f32 %v1214, %v1260
        %v1279 = vadd.f32 %v1215, %v1262
        %s1280 = scalar_lea.vmem %s1, 22
        %v1281 = vld [vmem:[%s1280] sm:$0x3]
        %v1283 = vlaneseq
        %v1284 = vshrl.u32 %v1283, 7
        %v1285 = vsub.s32 0, %v1284
        %v1286 = vrot.slane %v1281, %v1285
        %v1287 = vlaneseq
        %v1288 = vshrl.u32 %v1287, 7
        %v1289 = vsub.s32 1, %v1288
        %v1290 = vrot.slane %v1281, %v1289
        %1291 = vrot.lane.b32.xlu0 %v1286, 6
        %v1292 = vpop.permute.xlu0 %1291
        %1293 = vrot.lane.b32.xlu0 %v1290, 6
        %v1294 = vpop.permute.xlu0 %1293
        %v1295 = vsel %vm543, %v1292, %v1294
        %v1298 = vmul.f32 %v1216, %v1292
        %v1299 = vmul.f32 %v1217, %v1295
        %v1300 = vmul.f32 %v494, %v1292
        %v1301 = vmul.f32 %v495, %v1295
        %v1302 = vmul.f32 %v496, %v1292
        %v1303 = vmul.f32 %v497, %v1295
        %v1304 = vmul.f32 %v1218, %v1292
        %v1305 = vmul.f32 %v1219, %v1295
        %v1314 = vrot.slane %v1298, 2
        %v1315 = vrot.slane %v1300, 2
        %v1316 = vsel %vm1249, %v1314, %v1315
        %v1317 = vrot.slane %v1299, 2
        %v1318 = vrot.slane %v1301, 2
        %v1319 = vsel %vm1249, %v1317, %v1318
        %v1320 = vrot.slane %v1302, 2
        %v1321 = vsel %vm1249, %v1315, %v1320
        %v1322 = vrot.slane %v1303, 2
        %v1323 = vsel %vm1249, %v1318, %v1322
        %v1324 = vrot.slane %v1304, 2
        %v1325 = vsel %vm1249, %v1320, %v1324
        %v1326 = vrot.slane %v1305, 2
        %v1327 = vsel %vm1249, %v1322, %v1326
        %1328 = vrot.lane.b32.xlu0 %v1316, 122
        %v1329 = vpop.permute.xlu0 %1328
        %1330 = vrot.lane.b32.xlu0 %v1319, 122
        %v1331 = vpop.permute.xlu0 %1330
        %1332 = vrot.lane.b32.xlu0 %v1321, 122
        %v1333 = vpop.permute.xlu0 %1332
        %1334 = vrot.lane.b32.xlu0 %v1323, 122
        %v1335 = vpop.permute.xlu0 %1334
        %1336 = vrot.lane.b32.xlu0 %v1325, 122
        %v1337 = vpop.permute.xlu0 %1336
        %1338 = vrot.lane.b32.xlu0 %v1327, 122
        %v1339 = vpop.permute.xlu0 %1338
        %1340 = vrot.lane.b32.xlu0 %v1324, 122
        %v1341 = vpop.permute.xlu0 %1340
        %1342 = vrot.lane.b32.xlu0 %v1326, 122
        %v1343 = vpop.permute.xlu0 %1342
        %v1344 = vsel %vm579, %v1329, %v1331
        %v1345 = vsel %vm579, %v1333, %v1335
        %v1346 = vsel %vm579, %v1337, %v1339
        %v1347 = vsel %vm579, %v1341, %v1343
        %v1356 = vadd.f32 %v1272, %v1344
        %v1357 = vadd.f32 %v1273, %v1331
        %v1358 = vadd.f32 %v1274, %v1345
        %v1359 = vadd.f32 %v1275, %v1335
        %v1360 = vadd.f32 %v1276, %v1346
        %v1361 = vadd.f32 %v1277, %v1339
        %v1362 = vadd.f32 %v1278, %v1347
        %v1363 = vadd.f32 %v1279, %v1343
        %s1364 = scalar_lea.vmem %s1, 24
        %v1365 = vld [vmem:[%s1364] sm:$0x3]
        %v1367 = vlaneseq
        %v1368 = vshrl.u32 %v1367, 7
        %v1369 = vsub.s32 0, %v1368
        %v1370 = vrot.slane %v1365, %v1369
        %v1371 = vlaneseq
        %v1372 = vshrl.u32 %v1371, 7
        %v1373 = vsub.s32 1, %v1372
        %v1374 = vrot.slane %v1365, %v1373
        %1375 = vrot.lane.b32.xlu0 %v1370, 12
        %v1376 = vpop.permute.xlu0 %1375
        %1377 = vrot.lane.b32.xlu0 %v1374, 12
        %v1378 = vpop.permute.xlu0 %1377
        %v1379 = vsel %vm615, %v1376, %v1378
        %v1382 = vmul.f32 %v1216, %v1376
        %v1383 = vmul.f32 %v1217, %v1379
        %v1384 = vmul.f32 %v494, %v1376
        %v1385 = vmul.f32 %v495, %v1379
        %v1386 = vmul.f32 %v496, %v1376
        %v1387 = vmul.f32 %v497, %v1379
        %v1388 = vmul.f32 %v1218, %v1376
        %v1389 = vmul.f32 %v1219, %v1379
        %v1398 = vrot.slane %v1382, 2
        %v1399 = vrot.slane %v1384, 2
        %v1400 = vsel %vm1249, %v1398, %v1399
        %v1401 = vrot.slane %v1383, 2
        %v1402 = vrot.slane %v1385, 2
        %v1403 = vsel %vm1249, %v1401, %v1402
        %v1404 = vrot.slane %v1386, 2
        %v1405 = vsel %vm1249, %v1399, %v1404
        %v1406 = vrot.slane %v1387, 2
        %v1407 = vsel %vm1249, %v1402, %v1406
        %v1408 = vrot.slane %v1388, 2
        %v1409 = vsel %vm1249, %v1404, %v1408
        %v1410 = vrot.slane %v1389, 2
        %v1411 = vsel %vm1249, %v1406, %v1410
        %1412 = vrot.lane.b32.xlu0 %v1400, 116
        %v1413 = vpop.permute.xlu0 %1412
        %1414 = vrot.lane.b32.xlu0 %v1403, 116
        %v1415 = vpop.permute.xlu0 %1414
        %1416 = vrot.lane.b32.xlu0 %v1405, 116
        %v1417 = vpop.permute.xlu0 %1416
        %1418 = vrot.lane.b32.xlu0 %v1407, 116
        %v1419 = vpop.permute.xlu0 %1418
        %1420 = vrot.lane.b32.xlu0 %v1409, 116
        %v1421 = vpop.permute.xlu0 %1420
        %1422 = vrot.lane.b32.xlu0 %v1411, 116
        %v1423 = vpop.permute.xlu0 %1422
        %1424 = vrot.lane.b32.xlu0 %v1408, 116
        %v1425 = vpop.permute.xlu0 %1424
        %1426 = vrot.lane.b32.xlu0 %v1410, 116
        %v1427 = vpop.permute.xlu0 %1426
        %v1428 = vsel %vm651, %v1413, %v1415
        %v1429 = vsel %vm651, %v1417, %v1419
        %v1430 = vsel %vm651, %v1421, %v1423
        %v1431 = vsel %vm651, %v1425, %v1427
        %v1440 = vadd.f32 %v1356, %v1428
        %v1441 = vadd.f32 %v1357, %v1415
        %v1442 = vadd.f32 %v1358, %v1429
        %v1443 = vadd.f32 %v1359, %v1419
        %v1444 = vadd.f32 %v1360, %v1430
        %v1445 = vadd.f32 %v1361, %v1423
        %v1446 = vadd.f32 %v1362, %v1431
        %v1447 = vadd.f32 %v1363, %v1427
        %s1448 = scalar_lea.vmem %s1, 26
        %v1449 = vld [vmem:[%s1448] sm:$0x3]
        %v1451 = vlaneseq
        %v1452 = vshrl.u32 %v1451, 7
        %v1453 = vsub.s32 0, %v1452
        %v1454 = vrot.slane %v1449, %v1453
        %v1455 = vlaneseq
        %v1456 = vshrl.u32 %v1455, 7
        %v1457 = vsub.s32 1, %v1456
        %v1458 = vrot.slane %v1449, %v1457
        %1459 = vrot.lane.b32.xlu0 %v1454, 18
        %v1460 = vpop.permute.xlu0 %1459
        %1461 = vrot.lane.b32.xlu0 %v1458, 18
        %v1462 = vpop.permute.xlu0 %1461
        %v1463 = vsel %vm687, %v1460, %v1462
        %v1466 = vmul.f32 %v1216, %v1460
        %v1467 = vmul.f32 %v1217, %v1463
        %v1468 = vmul.f32 %v494, %v1460
        %v1469 = vmul.f32 %v495, %v1463
        %v1470 = vmul.f32 %v496, %v1460
        %v1471 = vmul.f32 %v497, %v1463
        %v1472 = vmul.f32 %v1218, %v1460
        %v1473 = vmul.f32 %v1219, %v1463
        %v1482 = vrot.slane %v1466, 2
        %v1483 = vrot.slane %v1468, 2
        %v1484 = vsel %vm1249, %v1482, %v1483
        %v1485 = vrot.slane %v1467, 2
        %v1486 = vrot.slane %v1469, 2
        %v1487 = vsel %vm1249, %v1485, %v1486
        %v1488 = vrot.slane %v1470, 2
        %v1489 = vsel %vm1249, %v1483, %v1488
        %v1490 = vrot.slane %v1471, 2
        %v1491 = vsel %vm1249, %v1486, %v1490
        %v1492 = vrot.slane %v1472, 2
        %v1493 = vsel %vm1249, %v1488, %v1492
        %v1494 = vrot.slane %v1473, 2
        %v1495 = vsel %vm1249, %v1490, %v1494
        %1496 = vrot.lane.b32.xlu0 %v1484, 110
        %v1497 = vpop.permute.xlu0 %1496
        %1498 = vrot.lane.b32.xlu0 %v1487, 110
        %v1499 = vpop.permute.xlu0 %1498
        %1500 = vrot.lane.b32.xlu0 %v1489, 110
        %v1501 = vpop.permute.xlu0 %1500
        %1502 = vrot.lane.b32.xlu0 %v1491, 110
        %v1503 = vpop.permute.xlu0 %1502
        %1504 = vrot.lane.b32.xlu0 %v1493, 110
        %v1505 = vpop.permute.xlu0 %1504
        %1506 = vrot.lane.b32.xlu0 %v1495, 110
        %v1507 = vpop.permute.xlu0 %1506
        %1508 = vrot.lane.b32.xlu0 %v1492, 110
        %v1509 = vpop.permute.xlu0 %1508
        %1510 = vrot.lane.b32.xlu0 %v1494, 110
        %v1511 = vpop.permute.xlu0 %1510
        %v1512 = vsel %vm723, %v1497, %v1499
        %v1513 = vsel %vm723, %v1501, %v1503
        %v1514 = vsel %vm723, %v1505, %v1507
        %v1515 = vsel %vm723, %v1509, %v1511
        %v1524 = vadd.f32 %v1440, %v1512
        %v1525 = vadd.f32 %v1441, %v1499
        %v1526 = vadd.f32 %v1442, %v1513
        %v1527 = vadd.f32 %v1443, %v1503
        %v1528 = vadd.f32 %v1444, %v1514
        %v1529 = vadd.f32 %v1445, %v1507
        %v1530 = vadd.f32 %v1446, %v1515
        %v1531 = vadd.f32 %v1447, %v1511
        %s1532 = scalar_lea.vmem %s1, 28
        %v1533 = vld [vmem:[%s1532] sm:$0x3]
        %v1535 = vlaneseq
        %v1536 = vshrl.u32 %v1535, 7
        %v1537 = vsub.s32 0, %v1536
        %v1538 = vrot.slane %v1533, %v1537
        %v1539 = vlaneseq
        %v1540 = vshrl.u32 %v1539, 7
        %v1541 = vsub.s32 1, %v1540
        %v1542 = vrot.slane %v1533, %v1541
        %1543 = vrot.lane.b32.xlu0 %v1538, 24
        %v1544 = vpop.permute.xlu0 %1543
        %1545 = vrot.lane.b32.xlu0 %v1542, 24
        %v1546 = vpop.permute.xlu0 %1545
        %v1547 = vsel %vm759, %v1544, %v1546
        %v1550 = vmul.f32 %v1216, %v1544
        %v1551 = vmul.f32 %v1217, %v1547
        %v1552 = vmul.f32 %v494, %v1544
        %v1553 = vmul.f32 %v495, %v1547
        %v1554 = vmul.f32 %v496, %v1544
        %v1555 = vmul.f32 %v497, %v1547
        %v1556 = vmul.f32 %v1218, %v1544
        %v1557 = vmul.f32 %v1219, %v1547
        %v1566 = vrot.slane %v1550, 2
        %v1567 = vrot.slane %v1552, 2
        %v1568 = vsel %vm1249, %v1566, %v1567
        %v1569 = vrot.slane %v1551, 2
        %v1570 = vrot.slane %v1553, 2
        %v1571 = vsel %vm1249, %v1569, %v1570
        %v1572 = vrot.slane %v1554, 2
        %v1573 = vsel %vm1249, %v1567, %v1572
        %v1574 = vrot.slane %v1555, 2
        %v1575 = vsel %vm1249, %v1570, %v1574
        %v1576 = vrot.slane %v1556, 2
        %v1577 = vsel %vm1249, %v1572, %v1576
        %v1578 = vrot.slane %v1557, 2
        %v1579 = vsel %vm1249, %v1574, %v1578
        %1580 = vrot.lane.b32.xlu0 %v1568, 104
        %v1581 = vpop.permute.xlu0 %1580
        %1582 = vrot.lane.b32.xlu0 %v1571, 104
        %v1583 = vpop.permute.xlu0 %1582
        %1584 = vrot.lane.b32.xlu0 %v1573, 104
        %v1585 = vpop.permute.xlu0 %1584
        %1586 = vrot.lane.b32.xlu0 %v1575, 104
        %v1587 = vpop.permute.xlu0 %1586
        %1588 = vrot.lane.b32.xlu0 %v1577, 104
        %v1589 = vpop.permute.xlu0 %1588
        %1590 = vrot.lane.b32.xlu0 %v1579, 104
        %v1591 = vpop.permute.xlu0 %1590
        %1592 = vrot.lane.b32.xlu0 %v1576, 104
        %v1593 = vpop.permute.xlu0 %1592
        %1594 = vrot.lane.b32.xlu0 %v1578, 104
        %v1595 = vpop.permute.xlu0 %1594
        %v1596 = vsel %vm795, %v1581, %v1583
        %v1597 = vsel %vm795, %v1585, %v1587
        %v1598 = vsel %vm795, %v1589, %v1591
        %v1599 = vsel %vm795, %v1593, %v1595
        %v1608 = vadd.f32 %v1524, %v1596
        %v1609 = vadd.f32 %v1525, %v1583
        %v1610 = vadd.f32 %v1526, %v1597
        %v1611 = vadd.f32 %v1527, %v1587
        %v1612 = vadd.f32 %v1528, %v1598
        %v1613 = vadd.f32 %v1529, %v1591
        %v1614 = vadd.f32 %v1530, %v1599
        %v1615 = vadd.f32 %v1531, %v1595
        %v1616 = vld [vmem:[%s491] sm:$0xf8]
        %v1617 = vld [vmem:[%s491 + $0x8] sm:$0xf8]
        %v1618 = vld [vmem:[%s491 + $0x30] sm:$0x7f]
        %v1619 = vld [vmem:[%s491 + $0x38] sm:$0x7f]
        %s1620 = scalar_lea.vmem %s1, 30
        %v1621 = vld [vmem:[%s1620] sm:$0x3]
        %v1623 = vlaneseq
        %v1624 = vshrl.u32 %v1623, 7
        %v1625 = vsub.s32 0, %v1624
        %v1626 = vrot.slane %v1621, %v1625
        %v1627 = vlaneseq
        %v1628 = vshrl.u32 %v1627, 7
        %v1629 = vsub.s32 1, %v1628
        %v1630 = vrot.slane %v1621, %v1629
        %v1633 = vmul.f32 %v1616, %v1626
        %v1634 = vmul.f32 %v1617, %v1630
        %v1635 = vmul.f32 %v494, %v1626
        %v1636 = vmul.f32 %v495, %v1630
        %v1637 = vmul.f32 %v496, %v1626
        %v1638 = vmul.f32 %v497, %v1630
        %v1639 = vmul.f32 %v1618, %v1626
        %v1640 = vmul.f32 %v1619, %v1630
        %vm1649 = vcmask 1044480
        %v1650 = vrot.slane %v1633, 3
        %v1651 = vrot.slane %v1635, 3
        %v1652 = vsel %vm1649, %v1650, %v1651
        %v1653 = vrot.slane %v1634, 3
        %v1654 = vrot.slane %v1636, 3
        %v1655 = vsel %vm1649, %v1653, %v1654
        %v1656 = vrot.slane %v1637, 3
        %v1657 = vsel %vm1649, %v1651, %v1656
        %v1658 = vrot.slane %v1638, 3
        %v1659 = vsel %vm1649, %v1654, %v1658
        %v1660 = vrot.slane %v1639, 3
        %v1661 = vsel %vm1649, %v1656, %v1660
        %v1662 = vrot.slane %v1640, 3
        %v1663 = vsel %vm1649, %v1658, %v1662
        %v1672 = vadd.f32 %v1608, %v1652
        %v1673 = vadd.f32 %v1609, %v1655
        %v1674 = vadd.f32 %v1610, %v1657
        %v1675 = vadd.f32 %v1611, %v1659
        %v1676 = vadd.f32 %v1612, %v1661
        %v1677 = vadd.f32 %v1613, %v1663
        %v1678 = vadd.f32 %v1614, %v1660
        %v1679 = vadd.f32 %v1615, %v1662
        %s1680 = scalar_lea.vmem %s1, 32
        %v1681 = vld [vmem:[%s1680] sm:$0x3]
        %v1683 = vlaneseq
        %v1684 = vshrl.u32 %v1683, 7
        %v1685 = vsub.s32 0, %v1684
        %v1686 = vrot.slane %v1681, %v1685
        %v1687 = vlaneseq
        %v1688 = vshrl.u32 %v1687, 7
        %v1689 = vsub.s32 1, %v1688
        %v1690 = vrot.slane %v1681, %v1689
        %1691 = vrot.lane.b32.xlu0 %v1686, 6
        %v1692 = vpop.permute.xlu0 %1691
        %1693 = vrot.lane.b32.xlu0 %v1690, 6
        %v1694 = vpop.permute.xlu0 %1693
        %v1695 = vsel %vm543, %v1692, %v1694
        %v1698 = vmul.f32 %v1616, %v1692
        %v1699 = vmul.f32 %v1617, %v1695
        %v1700 = vmul.f32 %v494, %v1692
        %v1701 = vmul.f32 %v495, %v1695
        %v1702 = vmul.f32 %v496, %v1692
        %v1703 = vmul.f32 %v497, %v1695
        %v1704 = vmul.f32 %v1618, %v1692
        %v1705 = vmul.f32 %v1619, %v1695
        %v1714 = vrot.slane %v1698, 3
        %v1715 = vrot.slane %v1700, 3
        %v1716 = vsel %vm1649, %v1714, %v1715
        %v1717 = vrot.slane %v1699, 3
        %v1718 = vrot.slane %v1701, 3
        %v1719 = vsel %vm1649, %v1717, %v1718
        %v1720 = vrot.slane %v1702, 3
        %v1721 = vsel %vm1649, %v1715, %v1720
        %v1722 = vrot.slane %v1703, 3
        %v1723 = vsel %vm1649, %v1718, %v1722
        %v1724 = vrot.slane %v1704, 3
        %v1725 = vsel %vm1649, %v1720, %v1724
        %v1726 = vrot.slane %v1705, 3
        %v1727 = vsel %vm1649, %v1722, %v1726
        %1728 = vrot.lane.b32.xlu0 %v1716, 122
        %v1729 = vpop.permute.xlu0 %1728
        %1730 = vrot.lane.b32.xlu0 %v1719, 122
        %v1731 = vpop.permute.xlu0 %1730
        %1732 = vrot.lane.b32.xlu0 %v1721, 122
        %v1733 = vpop.permute.xlu0 %1732
        %1734 = vrot.lane.b32.xlu0 %v1723, 122
        %v1735 = vpop.permute.xlu0 %1734
        %1736 = vrot.lane.b32.xlu0 %v1725, 122
        %v1737 = vpop.permute.xlu0 %1736
        %1738 = vrot.lane.b32.xlu0 %v1727, 122
        %v1739 = vpop.permute.xlu0 %1738
        %1740 = vrot.lane.b32.xlu0 %v1724, 122
        %v1741 = vpop.permute.xlu0 %1740
        %1742 = vrot.lane.b32.xlu0 %v1726, 122
        %v1743 = vpop.permute.xlu0 %1742
        %v1744 = vsel %vm579, %v1729, %v1731
        %v1745 = vsel %vm579, %v1733, %v1735
        %v1746 = vsel %vm579, %v1737, %v1739
        %v1747 = vsel %vm579, %v1741, %v1743
        %v1756 = vadd.f32 %v1672, %v1744
        %v1757 = vadd.f32 %v1673, %v1731
        %v1758 = vadd.f32 %v1674, %v1745
        %v1759 = vadd.f32 %v1675, %v1735
        %v1760 = vadd.f32 %v1676, %v1746
        %v1761 = vadd.f32 %v1677, %v1739
        %v1762 = vadd.f32 %v1678, %v1747
        %v1763 = vadd.f32 %v1679, %v1743
        %s1764 = scalar_lea.vmem %s1, 34
        %v1765 = vld [vmem:[%s1764] sm:$0x3]
        %v1767 = vlaneseq
        %v1768 = vshrl.u32 %v1767, 7
        %v1769 = vsub.s32 0, %v1768
        %v1770 = vrot.slane %v1765, %v1769
        %v1771 = vlaneseq
        %v1772 = vshrl.u32 %v1771, 7
        %v1773 = vsub.s32 1, %v1772
        %v1774 = vrot.slane %v1765, %v1773
        %1775 = vrot.lane.b32.xlu0 %v1770, 12
        %v1776 = vpop.permute.xlu0 %1775
        %1777 = vrot.lane.b32.xlu0 %v1774, 12
        %v1778 = vpop.permute.xlu0 %1777
        %v1779 = vsel %vm615, %v1776, %v1778
        %v1782 = vmul.f32 %v1616, %v1776
        %v1783 = vmul.f32 %v1617, %v1779
        %v1784 = vmul.f32 %v494, %v1776
        %v1785 = vmul.f32 %v495, %v1779
        %v1786 = vmul.f32 %v496, %v1776
        %v1787 = vmul.f32 %v497, %v1779
        %v1788 = vmul.f32 %v1618, %v1776
        %v1789 = vmul.f32 %v1619, %v1779
        %v1798 = vrot.slane %v1782, 3
        %v1799 = vrot.slane %v1784, 3
        %v1800 = vsel %vm1649, %v1798, %v1799
        %v1801 = vrot.slane %v1783, 3
        %v1802 = vrot.slane %v1785, 3
        %v1803 = vsel %vm1649, %v1801, %v1802
        %v1804 = vrot.slane %v1786, 3
        %v1805 = vsel %vm1649, %v1799, %v1804
        %v1806 = vrot.slane %v1787, 3
        %v1807 = vsel %vm1649, %v1802, %v1806
        %v1808 = vrot.slane %v1788, 3
        %v1809 = vsel %vm1649, %v1804, %v1808
        %v1810 = vrot.slane %v1789, 3
        %v1811 = vsel %vm1649, %v1806, %v1810
        %1812 = vrot.lane.b32.xlu0 %v1800, 116
        %v1813 = vpop.permute.xlu0 %1812
        %1814 = vrot.lane.b32.xlu0 %v1803, 116
        %v1815 = vpop.permute.xlu0 %1814
        %1816 = vrot.lane.b32.xlu0 %v1805, 116
        %v1817 = vpop.permute.xlu0 %1816
        %1818 = vrot.lane.b32.xlu0 %v1807, 116
        %v1819 = vpop.permute.xlu0 %1818
        %1820 = vrot.lane.b32.xlu0 %v1809, 116
        %v1821 = vpop.permute.xlu0 %1820
        %1822 = vrot.lane.b32.xlu0 %v1811, 116
        %v1823 = vpop.permute.xlu0 %1822
        %1824 = vrot.lane.b32.xlu0 %v1808, 116
        %v1825 = vpop.permute.xlu0 %1824
        %1826 = vrot.lane.b32.xlu0 %v1810, 116
        %v1827 = vpop.permute.xlu0 %1826
        %v1828 = vsel %vm651, %v1813, %v1815
        %v1829 = vsel %vm651, %v1817, %v1819
        %v1830 = vsel %vm651, %v1821, %v1823
        %v1831 = vsel %vm651, %v1825, %v1827
        %v1840 = vadd.f32 %v1756, %v1828
        %v1841 = vadd.f32 %v1757, %v1815
        %v1842 = vadd.f32 %v1758, %v1829
        %v1843 = vadd.f32 %v1759, %v1819
        %v1844 = vadd.f32 %v1760, %v1830
        %v1845 = vadd.f32 %v1761, %v1823
        %v1846 = vadd.f32 %v1762, %v1831
        %v1847 = vadd.f32 %v1763, %v1827
        %s1848 = scalar_lea.vmem %s1, 36
        %v1849 = vld [vmem:[%s1848] sm:$0x3]
        %v1851 = vlaneseq
        %v1852 = vshrl.u32 %v1851, 7
        %v1853 = vsub.s32 0, %v1852
        %v1854 = vrot.slane %v1849, %v1853
        %v1855 = vlaneseq
        %v1856 = vshrl.u32 %v1855, 7
        %v1857 = vsub.s32 1, %v1856
        %v1858 = vrot.slane %v1849, %v1857
        %1859 = vrot.lane.b32.xlu0 %v1854, 18
        %v1860 = vpop.permute.xlu0 %1859
        %1861 = vrot.lane.b32.xlu0 %v1858, 18
        %v1862 = vpop.permute.xlu0 %1861
        %v1863 = vsel %vm687, %v1860, %v1862
        %v1866 = vmul.f32 %v1616, %v1860
        %v1867 = vmul.f32 %v1617, %v1863
        %v1868 = vmul.f32 %v494, %v1860
        %v1869 = vmul.f32 %v495, %v1863
        %v1870 = vmul.f32 %v496, %v1860
        %v1871 = vmul.f32 %v497, %v1863
        %v1872 = vmul.f32 %v1618, %v1860
        %v1873 = vmul.f32 %v1619, %v1863
        %v1882 = vrot.slane %v1866, 3
        %v1883 = vrot.slane %v1868, 3
        %v1884 = vsel %vm1649, %v1882, %v1883
        %v1885 = vrot.slane %v1867, 3
        %v1886 = vrot.slane %v1869, 3
        %v1887 = vsel %vm1649, %v1885, %v1886
        %v1888 = vrot.slane %v1870, 3
        %v1889 = vsel %vm1649, %v1883, %v1888
        %v1890 = vrot.slane %v1871, 3
        %v1891 = vsel %vm1649, %v1886, %v1890
        %v1892 = vrot.slane %v1872, 3
        %v1893 = vsel %vm1649, %v1888, %v1892
        %v1894 = vrot.slane %v1873, 3
        %v1895 = vsel %vm1649, %v1890, %v1894
        %1896 = vrot.lane.b32.xlu0 %v1884, 110
        %v1897 = vpop.permute.xlu0 %1896
        %1898 = vrot.lane.b32.xlu0 %v1887, 110
        %v1899 = vpop.permute.xlu0 %1898
        %1900 = vrot.lane.b32.xlu0 %v1889, 110
        %v1901 = vpop.permute.xlu0 %1900
        %1902 = vrot.lane.b32.xlu0 %v1891, 110
        %v1903 = vpop.permute.xlu0 %1902
        %1904 = vrot.lane.b32.xlu0 %v1893, 110
        %v1905 = vpop.permute.xlu0 %1904
        %1906 = vrot.lane.b32.xlu0 %v1895, 110
        %v1907 = vpop.permute.xlu0 %1906
        %1908 = vrot.lane.b32.xlu0 %v1892, 110
        %v1909 = vpop.permute.xlu0 %1908
        %1910 = vrot.lane.b32.xlu0 %v1894, 110
        %v1911 = vpop.permute.xlu0 %1910
        %v1912 = vsel %vm723, %v1897, %v1899
        %v1913 = vsel %vm723, %v1901, %v1903
        %v1914 = vsel %vm723, %v1905, %v1907
        %v1915 = vsel %vm723, %v1909, %v1911
        %v1924 = vadd.f32 %v1840, %v1912
        %v1925 = vadd.f32 %v1841, %v1899
        %v1926 = vadd.f32 %v1842, %v1913
        %v1927 = vadd.f32 %v1843, %v1903
        %v1928 = vadd.f32 %v1844, %v1914
        %v1929 = vadd.f32 %v1845, %v1907
        %v1930 = vadd.f32 %v1846, %v1915
        %v1931 = vadd.f32 %v1847, %v1911
        %s1932 = scalar_lea.vmem %s1, 38
        %v1933 = vld [vmem:[%s1932] sm:$0x3]
        %v1935 = vlaneseq
        %v1936 = vshrl.u32 %v1935, 7
        %v1937 = vsub.s32 0, %v1936
        %v1938 = vrot.slane %v1933, %v1937
        %v1939 = vlaneseq
        %v1940 = vshrl.u32 %v1939, 7
        %v1941 = vsub.s32 1, %v1940
        %v1942 = vrot.slane %v1933, %v1941
        %1943 = vrot.lane.b32.xlu0 %v1938, 24
        %v1944 = vpop.permute.xlu0 %1943
        %1945 = vrot.lane.b32.xlu0 %v1942, 24
        %v1946 = vpop.permute.xlu0 %1945
        %v1947 = vsel %vm759, %v1944, %v1946
        %v1950 = vmul.f32 %v1616, %v1944
        %v1951 = vmul.f32 %v1617, %v1947
        %v1952 = vmul.f32 %v494, %v1944
        %v1953 = vmul.f32 %v495, %v1947
        %v1954 = vmul.f32 %v496, %v1944
        %v1955 = vmul.f32 %v497, %v1947
        %v1956 = vmul.f32 %v1618, %v1944
        %v1957 = vmul.f32 %v1619, %v1947
        %v1966 = vrot.slane %v1950, 3
        %v1967 = vrot.slane %v1952, 3
        %v1968 = vsel %vm1649, %v1966, %v1967
        %v1969 = vrot.slane %v1951, 3
        %v1970 = vrot.slane %v1953, 3
        %v1971 = vsel %vm1649, %v1969, %v1970
        %v1972 = vrot.slane %v1954, 3
        %v1973 = vsel %vm1649, %v1967, %v1972
        %v1974 = vrot.slane %v1955, 3
        %v1975 = vsel %vm1649, %v1970, %v1974
        %v1976 = vrot.slane %v1956, 3
        %v1977 = vsel %vm1649, %v1972, %v1976
        %v1978 = vrot.slane %v1957, 3
        %v1979 = vsel %vm1649, %v1974, %v1978
        %1980 = vrot.lane.b32.xlu0 %v1968, 104
        %v1981 = vpop.permute.xlu0 %1980
        %1982 = vrot.lane.b32.xlu0 %v1971, 104
        %v1983 = vpop.permute.xlu0 %1982
        %1984 = vrot.lane.b32.xlu0 %v1973, 104
        %v1985 = vpop.permute.xlu0 %1984
        %1986 = vrot.lane.b32.xlu0 %v1975, 104
        %v1987 = vpop.permute.xlu0 %1986
        %1988 = vrot.lane.b32.xlu0 %v1977, 104
        %v1989 = vpop.permute.xlu0 %1988
        %1990 = vrot.lane.b32.xlu0 %v1979, 104
        %v1991 = vpop.permute.xlu0 %1990
        %1992 = vrot.lane.b32.xlu0 %v1976, 104
        %v1993 = vpop.permute.xlu0 %1992
        %1994 = vrot.lane.b32.xlu0 %v1978, 104
        %v1995 = vpop.permute.xlu0 %1994
        %v1996 = vsel %vm795, %v1981, %v1983
        %v1997 = vsel %vm795, %v1985, %v1987
        %v1998 = vsel %vm795, %v1989, %v1991
        %v1999 = vsel %vm795, %v1993, %v1995
        %v2008 = vadd.f32 %v1924, %v1996
        %v2009 = vadd.f32 %v1925, %v1983
        %v2010 = vadd.f32 %v1926, %v1997
        %v2011 = vadd.f32 %v1927, %v1987
        %v2012 = vadd.f32 %v1928, %v1998
        %v2013 = vadd.f32 %v1929, %v1991
        %v2014 = vadd.f32 %v1930, %v1999
        %v2015 = vadd.f32 %v1931, %v1995
        %v2016 = vld [vmem:[%s491] sm:$0xf0]
        %v2017 = vld [vmem:[%s491 + $0x8] sm:$0xf0]
        %v2018 = vld [vmem:[%s491 + $0x30] sm:$0xff]
        %v2019 = vld [vmem:[%s491 + $0x38] sm:$0xff]
        %s2020 = scalar_lea.vmem %s1, 40
        %v2021 = vld [vmem:[%s2020] sm:$0x3]
        %v2023 = vlaneseq
        %v2024 = vshrl.u32 %v2023, 7
        %v2025 = vsub.s32 0, %v2024
        %v2026 = vrot.slane %v2021, %v2025
        %v2027 = vlaneseq
        %v2028 = vshrl.u32 %v2027, 7
        %v2029 = vsub.s32 1, %v2028
        %v2030 = vrot.slane %v2021, %v2029
        %v2033 = vmul.f32 %v2016, %v2026
        %v2034 = vmul.f32 %v2017, %v2030
        %v2035 = vmul.f32 %v494, %v2026
        %v2036 = vmul.f32 %v495, %v2030
        %v2037 = vmul.f32 %v496, %v2026
        %v2038 = vmul.f32 %v497, %v2030
        %v2039 = vmul.f32 %v2018, %v2026
        %v2040 = vmul.f32 %v2019, %v2030
        %vm2049 = vcmask 1043456
        %v2050 = vrot.slane %v2033, 4
        %v2051 = vrot.slane %v2035, 4
        %v2052 = vsel %vm2049, %v2050, %v2051
        %v2053 = vrot.slane %v2034, 4
        %v2054 = vrot.slane %v2036, 4
        %v2055 = vsel %vm2049, %v2053, %v2054
        %v2056 = vrot.slane %v2037, 4
        %v2057 = vsel %vm2049, %v2051, %v2056
        %v2058 = vrot.slane %v2038, 4
        %v2059 = vsel %vm2049, %v2054, %v2058
        %v2060 = vrot.slane %v2039, 4
        %v2061 = vsel %vm2049, %v2056, %v2060
        %v2062 = vrot.slane %v2040, 4
        %v2063 = vsel %vm2049, %v2058, %v2062
        %v2072 = vadd.f32 %v2008, %v2052
        %v2073 = vadd.f32 %v2009, %v2055
        %v2074 = vadd.f32 %v2010, %v2057
        %v2075 = vadd.f32 %v2011, %v2059
        %v2076 = vadd.f32 %v2012, %v2061
        %v2077 = vadd.f32 %v2013, %v2063
        %v2078 = vadd.f32 %v2014, %v2060
        %v2079 = vadd.f32 %v2015, %v2062
        %s2080 = scalar_lea.vmem %s1, 42
        %v2081 = vld [vmem:[%s2080] sm:$0x3]
        %v2083 = vlaneseq
        %v2084 = vshrl.u32 %v2083, 7
        %v2085 = vsub.s32 0, %v2084
        %v2086 = vrot.slane %v2081, %v2085
        %v2087 = vlaneseq
        %v2088 = vshrl.u32 %v2087, 7
        %v2089 = vsub.s32 1, %v2088
        %v2090 = vrot.slane %v2081, %v2089
        %2091 = vrot.lane.b32.xlu0 %v2086, 6
        %v2092 = vpop.permute.xlu0 %2091
        %2093 = vrot.lane.b32.xlu0 %v2090, 6
        %v2094 = vpop.permute.xlu0 %2093
        %v2095 = vsel %vm543, %v2092, %v2094
        %v2098 = vmul.f32 %v2016, %v2092
        %v2099 = vmul.f32 %v2017, %v2095
        %v2100 = vmul.f32 %v494, %v2092
        %v2101 = vmul.f32 %v495, %v2095
        %v2102 = vmul.f32 %v496, %v2092
        %v2103 = vmul.f32 %v497, %v2095
        %v2104 = vmul.f32 %v2018, %v2092
        %v2105 = vmul.f32 %v2019, %v2095
        %v2114 = vrot.slane %v2098, 4
        %v2115 = vrot.slane %v2100, 4
        %v2116 = vsel %vm2049, %v2114, %v2115
        %v2117 = vrot.slane %v2099, 4
        %v2118 = vrot.slane %v2101, 4
        %v2119 = vsel %vm2049, %v2117, %v2118
        %v2120 = vrot.slane %v2102, 4
        %v2121 = vsel %vm2049, %v2115, %v2120
        %v2122 = vrot.slane %v2103, 4
        %v2123 = vsel %vm2049, %v2118, %v2122
        %v2124 = vrot.slane %v2104, 4
        %v2125 = vsel %vm2049, %v2120, %v2124
        %v2126 = vrot.slane %v2105, 4
        %v2127 = vsel %vm2049, %v2122, %v2126
        %2128 = vrot.lane.b32.xlu0 %v2116, 122
        %v2129 = vpop.permute.xlu0 %2128
        %2130 = vrot.lane.b32.xlu0 %v2119, 122
        %v2131 = vpop.permute.xlu0 %2130
        %2132 = vrot.lane.b32.xlu0 %v2121, 122
        %v2133 = vpop.permute.xlu0 %2132
        %2134 = vrot.lane.b32.xlu0 %v2123, 122
        %v2135 = vpop.permute.xlu0 %2134
        %2136 = vrot.lane.b32.xlu0 %v2125, 122
        %v2137 = vpop.permute.xlu0 %2136
        %2138 = vrot.lane.b32.xlu0 %v2127, 122
        %v2139 = vpop.permute.xlu0 %2138
        %2140 = vrot.lane.b32.xlu0 %v2124, 122
        %v2141 = vpop.permute.xlu0 %2140
        %2142 = vrot.lane.b32.xlu0 %v2126, 122
        %v2143 = vpop.permute.xlu0 %2142
        %v2144 = vsel %vm579, %v2129, %v2131
        %v2145 = vsel %vm579, %v2133, %v2135
        %v2146 = vsel %vm579, %v2137, %v2139
        %v2147 = vsel %vm579, %v2141, %v2143
        %v2156 = vadd.f32 %v2072, %v2144
        %v2157 = vadd.f32 %v2073, %v2131
        %v2158 = vadd.f32 %v2074, %v2145
        %v2159 = vadd.f32 %v2075, %v2135
        %v2160 = vadd.f32 %v2076, %v2146
        %v2161 = vadd.f32 %v2077, %v2139
        %v2162 = vadd.f32 %v2078, %v2147
        %v2163 = vadd.f32 %v2079, %v2143
        %s2164 = scalar_lea.vmem %s1, 44
        %v2165 = vld [vmem:[%s2164] sm:$0x3]
        %v2167 = vlaneseq
        %v2168 = vshrl.u32 %v2167, 7
        %v2169 = vsub.s32 0, %v2168
        %v2170 = vrot.slane %v2165, %v2169
        %v2171 = vlaneseq
        %v2172 = vshrl.u32 %v2171, 7
        %v2173 = vsub.s32 1, %v2172
        %v2174 = vrot.slane %v2165, %v2173
        %2175 = vrot.lane.b32.xlu0 %v2170, 12
        %v2176 = vpop.permute.xlu0 %2175
        %2177 = vrot.lane.b32.xlu0 %v2174, 12
        %v2178 = vpop.permute.xlu0 %2177
        %v2179 = vsel %vm615, %v2176, %v2178
        %v2182 = vmul.f32 %v2016, %v2176
        %v2183 = vmul.f32 %v2017, %v2179
        %v2184 = vmul.f32 %v494, %v2176
        %v2185 = vmul.f32 %v495, %v2179
        %v2186 = vmul.f32 %v496, %v2176
        %v2187 = vmul.f32 %v497, %v2179
        %v2188 = vmul.f32 %v2018, %v2176
        %v2189 = vmul.f32 %v2019, %v2179
        %v2198 = vrot.slane %v2182, 4
        %v2199 = vrot.slane %v2184, 4
        %v2200 = vsel %vm2049, %v2198, %v2199
        %v2201 = vrot.slane %v2183, 4
        %v2202 = vrot.slane %v2185, 4
        %v2203 = vsel %vm2049, %v2201, %v2202
        %v2204 = vrot.slane %v2186, 4
        %v2205 = vsel %vm2049, %v2199, %v2204
        %v2206 = vrot.slane %v2187, 4
        %v2207 = vsel %vm2049, %v2202, %v2206
        %v2208 = vrot.slane %v2188, 4
        %v2209 = vsel %vm2049, %v2204, %v2208
        %v2210 = vrot.slane %v2189, 4
        %v2211 = vsel %vm2049, %v2206, %v2210
        %2212 = vrot.lane.b32.xlu0 %v2200, 116
        %v2213 = vpop.permute.xlu0 %2212
        %2214 = vrot.lane.b32.xlu0 %v2203, 116
        %v2215 = vpop.permute.xlu0 %2214
        %2216 = vrot.lane.b32.xlu0 %v2205, 116
        %v2217 = vpop.permute.xlu0 %2216
        %2218 = vrot.lane.b32.xlu0 %v2207, 116
        %v2219 = vpop.permute.xlu0 %2218
        %2220 = vrot.lane.b32.xlu0 %v2209, 116
        %v2221 = vpop.permute.xlu0 %2220
        %2222 = vrot.lane.b32.xlu0 %v2211, 116
        %v2223 = vpop.permute.xlu0 %2222
        %2224 = vrot.lane.b32.xlu0 %v2208, 116
        %v2225 = vpop.permute.xlu0 %2224
        %2226 = vrot.lane.b32.xlu0 %v2210, 116
        %v2227 = vpop.permute.xlu0 %2226
        %v2228 = vsel %vm651, %v2213, %v2215
        %v2229 = vsel %vm651, %v2217, %v2219
        %v2230 = vsel %vm651, %v2221, %v2223
        %v2231 = vsel %vm651, %v2225, %v2227
        %v2240 = vadd.f32 %v2156, %v2228
        %v2241 = vadd.f32 %v2157, %v2215
        %v2242 = vadd.f32 %v2158, %v2229
        %v2243 = vadd.f32 %v2159, %v2219
        %v2244 = vadd.f32 %v2160, %v2230
        %v2245 = vadd.f32 %v2161, %v2223
        %v2246 = vadd.f32 %v2162, %v2231
        %v2247 = vadd.f32 %v2163, %v2227
        %s2248 = scalar_lea.vmem %s1, 46
        %v2249 = vld [vmem:[%s2248] sm:$0x3]
        %v2251 = vlaneseq
        %v2252 = vshrl.u32 %v2251, 7
        %v2253 = vsub.s32 0, %v2252
        %v2254 = vrot.slane %v2249, %v2253
        %v2255 = vlaneseq
        %v2256 = vshrl.u32 %v2255, 7
        %v2257 = vsub.s32 1, %v2256
        %v2258 = vrot.slane %v2249, %v2257
        %2259 = vrot.lane.b32.xlu0 %v2254, 18
        %v2260 = vpop.permute.xlu0 %2259
        %2261 = vrot.lane.b32.xlu0 %v2258, 18
        %v2262 = vpop.permute.xlu0 %2261
        %v2263 = vsel %vm687, %v2260, %v2262
        %v2266 = vmul.f32 %v2016, %v2260
        %v2267 = vmul.f32 %v2017, %v2263
        %v2268 = vmul.f32 %v494, %v2260
        %v2269 = vmul.f32 %v495, %v2263
        %v2270 = vmul.f32 %v496, %v2260
        %v2271 = vmul.f32 %v497, %v2263
        %v2272 = vmul.f32 %v2018, %v2260
        %v2273 = vmul.f32 %v2019, %v2263
        %v2282 = vrot.slane %v2266, 4
        %v2283 = vrot.slane %v2268, 4
        %v2284 = vsel %vm2049, %v2282, %v2283
        %v2285 = vrot.slane %v2267, 4
        %v2286 = vrot.slane %v2269, 4
        %v2287 = vsel %vm2049, %v2285, %v2286
        %v2288 = vrot.slane %v2270, 4
        %v2289 = vsel %vm2049, %v2283, %v2288
        %v2290 = vrot.slane %v2271, 4
        %v2291 = vsel %vm2049, %v2286, %v2290
        %v2292 = vrot.slane %v2272, 4
        %v2293 = vsel %vm2049, %v2288, %v2292
        %v2294 = vrot.slane %v2273, 4
        %v2295 = vsel %vm2049, %v2290, %v2294
        %2296 = vrot.lane.b32.xlu0 %v2284, 110
        %v2297 = vpop.permute.xlu0 %2296
        %2298 = vrot.lane.b32.xlu0 %v2287, 110
        %v2299 = vpop.permute.xlu0 %2298
        %2300 = vrot.lane.b32.xlu0 %v2289, 110
        %v2301 = vpop.permute.xlu0 %2300
        %2302 = vrot.lane.b32.xlu0 %v2291, 110
        %v2303 = vpop.permute.xlu0 %2302
        %2304 = vrot.lane.b32.xlu0 %v2293, 110
        %v2305 = vpop.permute.xlu0 %2304
        %2306 = vrot.lane.b32.xlu0 %v2295, 110
        %v2307 = vpop.permute.xlu0 %2306
        %2308 = vrot.lane.b32.xlu0 %v2292, 110
        %v2309 = vpop.permute.xlu0 %2308
        %2310 = vrot.lane.b32.xlu0 %v2294, 110
        %v2311 = vpop.permute.xlu0 %2310
        %v2312 = vsel %vm723, %v2297, %v2299
        %v2313 = vsel %vm723, %v2301, %v2303
        %v2314 = vsel %vm723, %v2305, %v2307
        %v2315 = vsel %vm723, %v2309, %v2311
        %v2324 = vadd.f32 %v2240, %v2312
        %v2325 = vadd.f32 %v2241, %v2299
        %v2326 = vadd.f32 %v2242, %v2313
        %v2327 = vadd.f32 %v2243, %v2303
        %v2328 = vadd.f32 %v2244, %v2314
        %v2329 = vadd.f32 %v2245, %v2307
        %v2330 = vadd.f32 %v2246, %v2315
        %v2331 = vadd.f32 %v2247, %v2311
        %s2332 = scalar_lea.vmem %s1, 48
        %v2333 = vld [vmem:[%s2332] sm:$0x3]
        %v2335 = vlaneseq
        %v2336 = vshrl.u32 %v2335, 7
        %v2337 = vsub.s32 0, %v2336
        %v2338 = vrot.slane %v2333, %v2337
        %v2339 = vlaneseq
        %v2340 = vshrl.u32 %v2339, 7
        %v2341 = vsub.s32 1, %v2340
        %v2342 = vrot.slane %v2333, %v2341
        %2343 = vrot.lane.b32.xlu0 %v2338, 24
        %v2344 = vpop.permute.xlu0 %2343
        %2345 = vrot.lane.b32.xlu0 %v2342, 24
        %v2346 = vpop.permute.xlu0 %2345
        %v2347 = vsel %vm759, %v2344, %v2346
        %v2350 = vmul.f32 %v2016, %v2344
        %v2351 = vmul.f32 %v2017, %v2347
        %v2352 = vmul.f32 %v494, %v2344
        %v2353 = vmul.f32 %v495, %v2347
        %v2354 = vmul.f32 %v496, %v2344
        %v2355 = vmul.f32 %v497, %v2347
        %v2356 = vmul.f32 %v2018, %v2344
        %v2357 = vmul.f32 %v2019, %v2347
        %v2366 = vrot.slane %v2350, 4
        %v2367 = vrot.slane %v2352, 4
        %v2368 = vsel %vm2049, %v2366, %v2367
        %v2369 = vrot.slane %v2351, 4
        %v2370 = vrot.slane %v2353, 4
        %v2371 = vsel %vm2049, %v2369, %v2370
        %v2372 = vrot.slane %v2354, 4
        %v2373 = vsel %vm2049, %v2367, %v2372
        %v2374 = vrot.slane %v2355, 4
        %v2375 = vsel %vm2049, %v2370, %v2374
        %v2376 = vrot.slane %v2356, 4
        %v2377 = vsel %vm2049, %v2372, %v2376
        %v2378 = vrot.slane %v2357, 4
        %v2379 = vsel %vm2049, %v2374, %v2378
        %2380 = vrot.lane.b32.xlu0 %v2368, 104
        %v2381 = vpop.permute.xlu0 %2380
        %2382 = vrot.lane.b32.xlu0 %v2371, 104
        %v2383 = vpop.permute.xlu0 %2382
        %2384 = vrot.lane.b32.xlu0 %v2373, 104
        %v2385 = vpop.permute.xlu0 %2384
        %2386 = vrot.lane.b32.xlu0 %v2375, 104
        %v2387 = vpop.permute.xlu0 %2386
        %2388 = vrot.lane.b32.xlu0 %v2377, 104
        %v2389 = vpop.permute.xlu0 %2388
        %2390 = vrot.lane.b32.xlu0 %v2379, 104
        %v2391 = vpop.permute.xlu0 %2390
        %2392 = vrot.lane.b32.xlu0 %v2376, 104
        %v2393 = vpop.permute.xlu0 %2392
        %2394 = vrot.lane.b32.xlu0 %v2378, 104
        %v2395 = vpop.permute.xlu0 %2394
        %v2396 = vsel %vm795, %v2381, %v2383
        %v2397 = vsel %vm795, %v2385, %v2387
        %v2398 = vsel %vm795, %v2389, %v2391
        %v2399 = vsel %vm795, %v2393, %v2395
        %v2408 = vadd.f32 %v2324, %v2396
        %v2409 = vadd.f32 %v2325, %v2383
        %v2410 = vadd.f32 %v2326, %v2397
        %v2411 = vadd.f32 %v2327, %v2387
        %v2412 = vadd.f32 %v2328, %v2398
        %v2413 = vadd.f32 %v2329, %v2391
        %v2414 = vadd.f32 %v2330, %v2399
        %v2415 = vadd.f32 %v2331, %v2395
        %v2416 = vld [vmem:[%s2] sm:$0x3]
        %v2418 = vlaneseq
        %v2419 = vshrl.u32 %v2418, 7
        %v2420 = vsub.s32 0, %v2419
        %v2421 = vrot.slane %v2416, %v2420
        %v2422 = vlaneseq
        %v2423 = vshrl.u32 %v2422, 7
        %v2424 = vsub.s32 1, %v2423
        %v2425 = vrot.slane %v2416, %v2424
        %v2428 = vadd.f32 %v2408, %v2421
        %v2429 = vadd.f32 %v2409, %v2425
        %v2430 = vadd.f32 %v2410, %v2421
        %v2431 = vadd.f32 %v2411, %v2425
        %v2432 = vadd.f32 %v2412, %v2421
        %v2433 = vadd.f32 %v2413, %v2425
        %v2434 = vadd.f32 %v2414, %v2421
        %v2435 = vadd.f32 %v2415, %v2425
        %v2436 = vsub.f32 0.0, %v2428
        %v2437 = vsub.f32 0.0, %v2429
        %v2438 = vsub.f32 0.0, %v2430
        %v2439 = vsub.f32 0.0, %v2431
        %v2440 = vsub.f32 0.0, %v2432
        %v2441 = vsub.f32 0.0, %v2433
        %v2442 = vsub.f32 0.0, %v2434
        %v2443 = vsub.f32 0.0, %v2435
        %v2444 = vmul.f32 %v2436, 1.442695
        %v2445 = vpow.pop %v2444
        %v2446 = vmul.f32 %v2437, 1.442695
        %v2447 = vpow.pop %v2446
        %v2448 = vmul.f32 %v2438, 1.442695
        %v2449 = vpow.pop %v2448
        %v2450 = vmul.f32 %v2439, 1.442695
        %v2451 = vpow.pop %v2450
        %v2452 = vmul.f32 %v2440, 1.442695
        %v2453 = vpow.pop %v2452
        %v2454 = vmul.f32 %v2441, 1.442695
        %v2455 = vpow.pop %v2454
        %v2456 = vmul.f32 %v2442, 1.442695
        %v2457 = vpow.pop %v2456
        %v2458 = vmul.f32 %v2443, 1.442695
        %v2459 = vpow.pop %v2458
        %v2460 = vadd.f32 %v2445, 1.0
        %v2461 = vadd.f32 %v2447, 1.0
        %v2462 = vadd.f32 %v2449, 1.0
        %v2463 = vadd.f32 %v2451, 1.0
        %v2464 = vadd.f32 %v2453, 1.0
        %v2465 = vadd.f32 %v2455, 1.0
        %v2466 = vadd.f32 %v2457, 1.0
        %v2467 = vadd.f32 %v2459, 1.0
        %v2468 = vrcp.pop %v2460
        %v2469 = vmul.f32 1.0, %v2468
        %v2470 = vrcp.pop %v2461
        %v2471 = vmul.f32 1.0, %v2470
        %v2472 = vrcp.pop %v2462
        %v2473 = vmul.f32 1.0, %v2472
        %v2474 = vrcp.pop %v2463
        %v2475 = vmul.f32 1.0, %v2474
        %v2476 = vrcp.pop %v2464
        %v2477 = vmul.f32 1.0, %v2476
        %v2478 = vrcp.pop %v2465
        %v2479 = vmul.f32 1.0, %v2478
        %v2480 = vrcp.pop %v2466
        %v2481 = vmul.f32 1.0, %v2480
        %v2482 = vrcp.pop %v2467
        %v2483 = vmul.f32 1.0, %v2482
        %v2484 = vld [vmem:[%s3] sm:$0xff]
        %v2485 = vld [vmem:[%s3 + $0x8] sm:$0x3f]
        %vm2486 = vcmask 228352
        %v2488 = vsel %vm2486, %v2484, 0
        %v2491 = vsel %vm2486, %v2485, 0
        %v2494 = vsel %vm2049, %v2481, 0
        %v2497 = vsel %vm2049, %v2483, 0
        %2499 = vmatprep.subr.mxu0 0.0
        %2500 = vmatpush1.msra.mxu0 0.0
        %2501 = vmatprep.subr.mxu0 0.0
        %2502 = vmatpush1.msra.mxu0 0.0
        %2503 = vmatprep.subr.mxu0 0.0
        %2504 = vmatpush1.msra.mxu0 0.0
        %2505 = vmatprep.subr.mxu0 0.0
        %2506 = vmatpush1.msra.mxu0 0.0
        %2507 = vmatprep.subr.mxu0 0.0
        %2508 = vmatpush1.msra.mxu0 0.0
        %2509 = vmatprep.subr.mxu0 0.0
        %2510 = vmatpush1.msra.mxu0 0.0
        %2511 = vmatprep.subr.mxu0 0.0
        %2512 = vmatpush1.msra.mxu0 0.0
        %2513 = vmatprep.subr.mxu0 0.0
        %2514 = vmatpush1.msra.mxu0 0.0
        %2515 = vmatprep.subr.mxu0 0.0
        %2516 = vmatpush1.msra.mxu0 0.0
        %2517 = vmatprep.subr.mxu0 0.0
        %2518 = vmatpush1.msra.mxu0 0.0
        %2519 = vmatprep.subr.mxu0 0.0
        %2520 = vmatpush1.msra.mxu0 0.0
        %2521 = vmatprep.subr.mxu0 0.0
        %2522 = vmatpush1.msra.mxu0 0.0
        %2523 = vmatprep.subr.mxu0 %v2497
        %2524 = vmatpush1.msra.mxu0 %v2494
        %2525 = vmatprep.subr.mxu0 %v2479
        %2526 = vmatpush1.msra.mxu0 %v2477
        %2527 = vmatprep.subr.mxu0 %v2475
        %2528 = vmatpush1.msra.mxu0 %v2473
        %2529 = vmatprep.subr.mxu0 %v2471
        %2530 = vmatpush1.msra.mxu0 %v2469
        %2531 = vmatprep.subr.mxu0 0.0
        %2532 = vmatpush2.msra.mxu0 0.0
        %2533 = vmatprep.subr.mxu0 0.0
        %2534 = vmatpush2.msra.mxu0 0.0
        %2535 = vmatprep.subr.mxu0 0.0
        %2536 = vmatpush2.msra.mxu0 0.0
        %2537 = vmatprep.subr.mxu0 0.0
        %2538 = vmatpush2.msra.mxu0 0.0
        %2539 = vmatprep.subr.mxu0 0.0
        %2540 = vmatpush2.msra.mxu0 0.0
        %2541 = vmatprep.subr.mxu0 0.0
        %2542 = vmatpush2.msra.mxu0 0.0
        %2543 = vmatprep.subr.mxu0 0.0
        %2544 = vmatpush2.msra.mxu0 0.0
        %2545 = vmatprep.subr.mxu0 0.0
        %2546 = vmatpush2.msra.mxu0 0.0
        %2547 = vmatprep.subr.mxu0 0.0
        %2548 = vmatpush2.msra.mxu0 0.0
        %2549 = vmatprep.subr.mxu0 0.0
        %2550 = vmatpush2.msra.mxu0 0.0
        %2551 = vmatprep.subr.mxu0 0.0
        %2552 = vmatpush2.msra.mxu0 0.0
        %2553 = vmatprep.subr.mxu0 0.0
        %2554 = vmatpush2.msra.mxu0 0.0
        %2555 = vmatprep.subr.mxu0 0.0
        %2556 = vmatpush2.msra.mxu0 0.0
        %2557 = vmatprep.subr.mxu0 0.0
        %2558 = vmatpush2.msra.mxu0 0.0
        %2559 = vmatprep.subr.mxu0 0.0
        %2560 = vmatpush2.msra.mxu0 0.0
        %2561 = vmatprep.subr.mxu0 0.0
        %2562 = vmatpush2.msra.mxu0 0.0
        %2563 = vmatprep.mubr.f32.mxu0 0.0
        %2564 = vmatmul.mubr.f32.gmra.mxu0 %v2488
        %v2565 = vpop.f32.mrf.mxu0
        %v2566 = vadd.f32 0.0, %v2565
        %v2567 = vpop.f32.mrf.mxu0
        %v2568 = vadd.f32 0.0, %v2567
        %2569 = vmatprep.mubr.f32.mxu0 0.0
        %2570 = vmatmul.mubr.f32.gmra.mxu0 %v2491
        %v2571 = vpop.f32.mrf.mxu0
        %v2572 = vadd.f32 0.0, %v2571
        %v2573 = vpop.f32.mrf.mxu0
        %v2574 = vadd.f32 0.0, %v2573
        %2575 = vdwg.mxu0
        %v2576 = vld [vmem:[%s4] sm:$0xff]
        %v2577 = vld [vmem:[%s4 + $0x8] sm:$0xff]
        %v2578 = vld [vmem:[%s4 + $0x10] sm:$0xff]
        %v2579 = vld [vmem:[%s4 + $0x18] sm:$0xff]
        %v2580 = vld [vmem:[%s4 + $0x20] sm:$0xff]
        %v2581 = vld [vmem:[%s4 + $0x28] sm:$0xff]
        %v2582 = vld [vmem:[%s4 + $0x30] sm:$0xff]
        %v2583 = vld [vmem:[%s4 + $0x38] sm:$0xff]
        %v2584 = vld [vmem:[%s4 + $0x40] sm:$0xff]
        %v2585 = vld [vmem:[%s4 + $0x48] sm:$0xff]
        %v2586 = vld [vmem:[%s4 + $0x50] sm:$0xff]
        %v2587 = vld [vmem:[%s4 + $0x58] sm:$0xff]
        %v2588 = vld [vmem:[%s4 + $0x60] sm:$0xff]
        %v2589 = vld [vmem:[%s4 + $0x68] sm:$0xff]
        %v2590 = vld [vmem:[%s4 + $0x70] sm:$0xff]
        %v2591 = vld [vmem:[%s4 + $0x78] sm:$0xff]
        %v2592 = vld [vmem:[%s4 + $0x80] sm:$0xff]
        %v2593 = vld [vmem:[%s4 + $0x88] sm:$0xff]
        %v2594 = vld [vmem:[%s4 + $0x90] sm:$0xff]
        %v2595 = vld [vmem:[%s4 + $0x98] sm:$0xff]
        %v2596 = vld [vmem:[%s4 + $0xa0] sm:$0xff]
        %vm2597 = vcmask 326656
        %v2599 = vsel %vm2597, %v2568, 0
        %v2602 = vsel %vm2597, %v2574, 0
        %2604 = vmatprep.subr.mxu0 0.0
        %2605 = vmatpush1.msra.mxu0 %v2591
        %2606 = vmatprep.subr.mxu0 0.0
        %2607 = vmatpush1.msra.mxu0 %v2590
        %2608 = vmatprep.subr.mxu0 0.0
        %2609 = vmatpush1.msra.mxu0 %v2589
        %2610 = vmatprep.subr.mxu0 0.0
        %2611 = vmatpush1.msra.mxu0 %v2588
        %2612 = vmatprep.subr.mxu0 0.0
        %2613 = vmatpush1.msra.mxu0 %v2587
        %2614 = vmatprep.subr.mxu0 0.0
        %2615 = vmatpush1.msra.mxu0 %v2586
        %2616 = vmatprep.subr.mxu0 0.0
        %2617 = vmatpush1.msra.mxu0 %v2585
        %2618 = vmatprep.subr.mxu0 0.0
        %2619 = vmatpush1.msra.mxu0 %v2584
        %2620 = vmatprep.subr.mxu0 0.0
        %2621 = vmatpush1.msra.mxu0 %v2583
        %2622 = vmatprep.subr.mxu0 0.0
        %2623 = vmatpush1.msra.mxu0 %v2582
        %2624 = vmatprep.subr.mxu0 0.0
        %2625 = vmatpush1.msra.mxu0 %v2581
        %2626 = vmatprep.subr.mxu0 0.0
        %2627 = vmatpush1.msra.mxu0 %v2580
        %2628 = vmatprep.subr.mxu0 0.0
        %2629 = vmatpush1.msra.mxu0 %v2579
        %2630 = vmatprep.subr.mxu0 0.0
        %2631 = vmatpush1.msra.mxu0 %v2578
        %2632 = vmatprep.subr.mxu0 0.0
        %2633 = vmatpush1.msra.mxu0 %v2577
        %2634 = vmatprep.subr.mxu0 0.0
        %2635 = vmatpush1.msra.mxu0 %v2576
        %2636 = vmatprep.subr.mxu0 0.0
        %2637 = vmatpush2.msra.mxu0 0.0
        %2638 = vmatprep.subr.mxu0 0.0
        %2639 = vmatpush2.msra.mxu0 0.0
        %2640 = vmatprep.subr.mxu0 0.0
        %2641 = vmatpush2.msra.mxu0 0.0
        %2642 = vmatprep.subr.mxu0 0.0
        %2643 = vmatpush2.msra.mxu0 0.0
        %2644 = vmatprep.subr.mxu0 0.0
        %2645 = vmatpush2.msra.mxu0 0.0
        %2646 = vmatprep.subr.mxu0 0.0
        %2647 = vmatpush2.msra.mxu0 0.0
        %2648 = vmatprep.subr.mxu0 0.0
        %2649 = vmatpush2.msra.mxu0 0.0
        %2650 = vmatprep.subr.mxu0 0.0
        %2651 = vmatpush2.msra.mxu0 0.0
        %2652 = vmatprep.subr.mxu0 0.0
        %2653 = vmatpush2.msra.mxu0 0.0
        %2654 = vmatprep.subr.mxu0 0.0
        %2655 = vmatpush2.msra.mxu0 0.0
        %2656 = vmatprep.subr.mxu0 0.0
        %2657 = vmatpush2.msra.mxu0 0.0
        %2658 = vmatprep.subr.mxu0 0.0
        %2659 = vmatpush2.msra.mxu0 %v2596
        %2660 = vmatprep.subr.mxu0 0.0
        %2661 = vmatpush2.msra.mxu0 %v2595
        %2662 = vmatprep.subr.mxu0 0.0
        %2663 = vmatpush2.msra.mxu0 %v2594
        %2664 = vmatprep.subr.mxu0 0.0
        %2665 = vmatpush2.msra.mxu0 %v2593
        %2666 = vmatprep.subr.mxu0 0.0
        %2667 = vmatpush2.msra.mxu0 %v2592
        %2668 = vmatprep.mubr.f32.mxu0 %v2599
        %2669 = vmatmul.mubr.f32.gmra.mxu0 %v2566
        %v2670 = vpop.f32.mrf.mxu0
        %v2671 = vadd.f32 0.0, %v2670
        %v2672 = vpop.f32.mrf.mxu0
        %2673 = vmatprep.mubr.f32.mxu0 %v2602
        %2674 = vmatmul.mubr.f32.gmra.mxu0 %v2572
        %v2675 = vpop.f32.mrf.mxu0
        %v2676 = vadd.f32 0.0, %v2675
        %v2677 = vpop.f32.mrf.mxu0
        %2678 = vdwg.mxu0
        %v2679 = vmul.f32 %v2671, 0.25
        %v2680 = vmul.f32 %v2676, 0.25
        %vm2681 = vcmask 687104
        %2682 = vst.msk [vmem:[#allocation2] sm:$0xff] %vm2681, %v2679
        %vm2683 = vcmask 685056
        %2684 = vst.msk [vmem:[#allocation2 + $0x8] sm:$0x3f] %vm2683, %v2680
        %v2685 = vld [vmem:[#allocation2] sm:$0xff]
        %v2686 = vld [vmem:[#allocation2 + $0x8] sm:$0x3]
        %2689 = vrot.lane.b32.xlu0 %v2685, 54
        %v2690 = vpop.permute.xlu0 %2689
        %2691 = vrot.lane.b32.xlu0 %v2686, 54
        %v2692 = vpop.permute.xlu0 %2691
        %2695 = vrot.lane.b32.xlu0 %v2685, 108
        %v2696 = vpop.permute.xlu0 %2695
        %2697 = vrot.lane.b32.xlu0 %v2686, 108
        %v2698 = vpop.permute.xlu0 %2697
        %2701 = vrot.lane.b32.xlu0 %v2685, 34
        %v2702 = vpop.permute.xlu0 %2701
        %2703 = vrot.lane.b32.xlu0 %v2686, 34
        %v2704 = vpop.permute.xlu0 %2703
        %2707 = vrot.lane.b32.xlu0 %v2685, 88
        %v2708 = vpop.permute.xlu0 %2707
        %2709 = vrot.lane.b32.xlu0 %v2686, 88
        %v2710 = vpop.permute.xlu0 %2709
        %vm2713 = vcmask 490496
        %v2714 = vsel %vm2713, %v2685, %v2690
        %v2715 = vsel %vm2713, %v2686, %v2692
        %vm2716 = vcmask 982016
        %v2717 = vsel %vm2716, %v2714, %v2696
        %v2718 = vsel %vm2716, %v2715, %v2698
        %vm2719 = vcmask 424960
        %v2720 = vsel %vm2719, %v2696, %v2702
        %v2721 = vsel %vm2719, %v2698, %v2704
        %vm2722 = vcmask 916480
        %v2723 = vsel %vm2722, %v2720, %v2708
        %v2724 = vsel %vm2722, %v2721, %v2710
        %v2725 = vld [vmem:[%s5] sm:$0xff]
        %v2726 = vld [vmem:[%s5 + $0x8] sm:$0xff]
        %v2727 = vld [vmem:[%s5 + $0x10] sm:$0xff]
        %v2728 = vld [vmem:[%s5 + $0x18] sm:$0xff]
        %v2729 = vld [vmem:[%s5 + $0x20] sm:$0xff]
        %v2730 = vld [vmem:[%s5 + $0x28] sm:$0xff]
        %v2731 = vld [vmem:[%s5 + $0x30] sm:$0xff]
        %v2732 = vld [vmem:[%s5 + $0x38] sm:$0xff]
        %v2733 = vld [vmem:[%s5 + $0x40] sm:$0xff]
        %v2734 = vld [vmem:[%s5 + $0x48] sm:$0xff]
        %v2735 = vld [vmem:[%s5 + $0x50] sm:$0xff]
        %v2736 = vld [vmem:[%s5 + $0x58] sm:$0xff]
        %v2737 = vld [vmem:[%s5 + $0x60] sm:$0xff]
        %v2738 = vld [vmem:[%s5 + $0x68] sm:$0xff]
        %v2739 = vld [vmem:[%s5 + $0x70] sm:$0xff]
        %v2740 = vld [vmem:[%s5 + $0x78] sm:$0xff]
        %v2741 = vld [vmem:[%s5 + $0x80] sm:$0xff]
        %v2742 = vld [vmem:[%s5 + $0x88] sm:$0xff]
        %v2743 = vld [vmem:[%s5 + $0x90] sm:$0xff]
        %v2744 = vld [vmem:[%s5 + $0x98] sm:$0xff]
        %v2745 = vld [vmem:[%s5 + $0xa0] sm:$0xff]
        %v2746 = vld [vmem:[%s5 + $0xa8] sm:$0xff]
        %v2747 = vld [vmem:[%s5 + $0xb0] sm:$0xff]
        %v2748 = vld [vmem:[%s5 + $0xb8] sm:$0xff]
        %v2749 = vld [vmem:[%s5 + $0xc0] sm:$0xff]
        %v2750 = vld [vmem:[%s5 + $0xc8] sm:$0xff]
        %v2751 = vld [vmem:[%s5 + $0xd0] sm:$0xff]
        %v2752 = vld [vmem:[%s5 + $0xd8] sm:$0xff]
        %v2753 = vld [vmem:[%s5 + $0xe0] sm:$0xff]
        %v2754 = vld [vmem:[%s5 + $0xe8] sm:$0xff]
        %v2755 = vld [vmem:[%s5 + $0xf0] sm:$0xff]
        %v2756 = vld [vmem:[%s5 + $0xf8] sm:$0xff]
        %v2757 = vld [vmem:[%s5 + $0x100] sm:$0xff]
        %v2758 = vld [vmem:[%s5 + $0x108] sm:$0xff]
        %v2759 = vld [vmem:[%s5 + $0x110] sm:$0xff]
        %v2760 = vld [vmem:[%s5 + $0x118] sm:$0xff]
        %v2761 = vld [vmem:[%s5 + $0x120] sm:$0xff]
        %v2762 = vld [vmem:[%s5 + $0x128] sm:$0xff]
        %v2763 = vld [vmem:[%s5 + $0x130] sm:$0xff]
        %v2764 = vld [vmem:[%s5 + $0x138] sm:$0xff]
        %v2765 = vld [vmem:[%s5 + $0x140] sm:$0xff]
        %v2766 = vld [vmem:[%s5 + $0x148] sm:$0xff]
        %v2767 = vld [vmem:[%s5 + $0x150] sm:$0xff]
        %v2768 = vld [vmem:[%s5 + $0x158] sm:$0xff]
        %v2769 = vld [vmem:[%s5 + $0x160] sm:$0xff]
        %v2770 = vld [vmem:[%s5 + $0x168] sm:$0xff]
        %v2771 = vld [vmem:[%s5 + $0x170] sm:$0xff]
        %v2772 = vld [vmem:[%s5 + $0x178] sm:$0xff]
        %v2773 = vld [vmem:[%s5 + $0x180] sm:$0xff]
        %v2774 = vld [vmem:[%s5 + $0x188] sm:$0xff]
        %v2775 = vld [vmem:[%s5 + $0x190] sm:$0xff]
        %v2776 = vld [vmem:[%s5 + $0x198] sm:$0xff]
        %v2777 = vld [vmem:[%s5 + $0x1a0] sm:$0xff]
        %v2778 = vld [vmem:[%s5 + $0x1a8] sm:$0xff]
        %v2779 = vld [vmem:[%s5 + $0x1b0] sm:$0xff]
        %v2780 = vld [vmem:[%s5 + $0x1b8] sm:$0xff]
        %v2781 = vld [vmem:[%s5 + $0x1c0] sm:$0xff]
        %v2782 = vld [vmem:[%s5 + $0x1c8] sm:$0xff]
        %v2783 = vld [vmem:[%s5 + $0x1d0] sm:$0xff]
        %v2784 = vld [vmem:[%s5 + $0x1d8] sm:$0xff]
        %v2785 = vld [vmem:[%s5 + $0x1e0] sm:$0xff]
        %v2786 = vld [vmem:[%s5 + $0x1e8] sm:$0xff]
        %v2787 = vld [vmem:[%s5 + $0x1f0] sm:$0xff]
        %v2788 = vld [vmem:[%s5 + $0x1f8] sm:$0xff]
        %v2789 = vld [vmem:[%s5 + $0x200] sm:$0xff]
        %v2790 = vld [vmem:[%s5 + $0x208] sm:$0xff]
        %v2791 = vld [vmem:[%s5 + $0x210] sm:$0xff]
        %v2792 = vld [vmem:[%s5 + $0x218] sm:$0xff]
        %v2793 = vld [vmem:[%s5 + $0x220] sm:$0xff]
        %v2794 = vld [vmem:[%s5 + $0x228] sm:$0xff]
        %v2795 = vld [vmem:[%s5 + $0x230] sm:$0xff]
        %v2796 = vld [vmem:[%s5 + $0x238] sm:$0xff]
        %v2797 = vld [vmem:[%s5 + $0x240] sm:$0xff]
        %v2798 = vld [vmem:[%s5 + $0x248] sm:$0xff]
        %v2799 = vld [vmem:[%s5 + $0x250] sm:$0xf]
        %v2800 = vld [vmem:[%s5 + $0x258] sm:$0xf]
        %v2801 = vld [vmem:[#allocation2 + $0x1] sm:$0xff]
        %v2802 = vld [vmem:[#allocation2 + $0x9] sm:$0x3]
        %2805 = vrot.lane.b32.xlu0 %v2801, 54
        %v2806 = vpop.permute.xlu0 %2805
        %2807 = vrot.lane.b32.xlu0 %v2802, 54
        %v2808 = vpop.permute.xlu0 %2807
        %2811 = vrot.lane.b32.xlu0 %v2801, 108
        %v2812 = vpop.permute.xlu0 %2811
        %2813 = vrot.lane.b32.xlu0 %v2802, 108
        %v2814 = vpop.permute.xlu0 %2813
        %2817 = vrot.lane.b32.xlu0 %v2801, 34
        %v2818 = vpop.permute.xlu0 %2817
        %2819 = vrot.lane.b32.xlu0 %v2802, 34
        %v2820 = vpop.permute.xlu0 %2819
        %2823 = vrot.lane.b32.xlu0 %v2801, 88
        %v2824 = vpop.permute.xlu0 %2823
        %2825 = vrot.lane.b32.xlu0 %v2802, 88
        %v2826 = vpop.permute.xlu0 %2825
        %v2829 = vsel %vm2713, %v2801, %v2806
        %v2830 = vsel %vm2713, %v2802, %v2808
        %v2831 = vsel %vm2716, %v2829, %v2812
        %v2832 = vsel %vm2716, %v2830, %v2814
        %v2833 = vsel %vm2719, %v2812, %v2818
        %v2834 = vsel %vm2719, %v2814, %v2820
        %v2835 = vsel %vm2722, %v2833, %v2824
        %v2836 = vsel %vm2722, %v2834, %v2826
        %s2837 = scalar_lea.vmem %s5, 608
        %v2838 = vld [vmem:[%s2837] sm:$0xff]
        %v2839 = vld [vmem:[%s2837 + $0x8] sm:$0xff]
        %v2840 = vld [vmem:[%s2837 + $0x10] sm:$0xff]
        %v2841 = vld [vmem:[%s2837 + $0x18] sm:$0xff]
        %v2842 = vld [vmem:[%s2837 + $0x20] sm:$0xff]
        %v2843 = vld [vmem:[%s2837 + $0x28] sm:$0xff]
        %v2844 = vld [vmem:[%s2837 + $0x30] sm:$0xff]
        %v2845 = vld [vmem:[%s2837 + $0x38] sm:$0xff]
        %v2846 = vld [vmem:[%s2837 + $0x40] sm:$0xff]
        %v2847 = vld [vmem:[%s2837 + $0x48] sm:$0xff]
        %v2848 = vld [vmem:[%s2837 + $0x50] sm:$0xff]
        %v2849 = vld [vmem:[%s2837 + $0x58] sm:$0xff]
        %v2850 = vld [vmem:[%s2837 + $0x60] sm:$0xff]
        %v2851 = vld [vmem:[%s2837 + $0x68] sm:$0xff]
        %v2852 = vld [vmem:[%s2837 + $0x70] sm:$0xff]
        %v2853 = vld [vmem:[%s2837 + $0x78] sm:$0xff]
        %v2854 = vld [vmem:[%s2837 + $0x80] sm:$0xff]
        %v2855 = vld [vmem:[%s2837 + $0x88] sm:$0xff]
        %v2856 = vld [vmem:[%s2837 + $0x90] sm:$0xff]
        %v2857 = vld [vmem:[%s2837 + $0x98] sm:$0xff]
        %v2858 = vld [vmem:[%s2837 + $0xa0] sm:$0xff]
        %v2859 = vld [vmem:[%s2837 + $0xa8] sm:$0xff]
        %v2860 = vld [vmem:[%s2837 + $0xb0] sm:$0xff]
        %v2861 = vld [vmem:[%s2837 + $0xb8] sm:$0xff]
        %v2862 = vld [vmem:[%s2837 + $0xc0] sm:$0xff]
        %v2863 = vld [vmem:[%s2837 + $0xc8] sm:$0xff]
        %v2864 = vld [vmem:[%s2837 + $0xd0] sm:$0xff]
        %v2865 = vld [vmem:[%s2837 + $0xd8] sm:$0xff]
        %v2866 = vld [vmem:[%s2837 + $0xe0] sm:$0xff]
        %v2867 = vld [vmem:[%s2837 + $0xe8] sm:$0xff]
        %v2868 = vld [vmem:[%s2837 + $0xf0] sm:$0xff]
        %v2869 = vld [vmem:[%s2837 + $0xf8] sm:$0xff]
        %v2870 = vld [vmem:[%s2837 + $0x100] sm:$0xff]
        %v2871 = vld [vmem:[%s2837 + $0x108] sm:$0xff]
        %v2872 = vld [vmem:[%s2837 + $0x110] sm:$0xff]
        %v2873 = vld [vmem:[%s2837 + $0x118] sm:$0xff]
        %v2874 = vld [vmem:[%s2837 + $0x120] sm:$0xff]
        %v2875 = vld [vmem:[%s2837 + $0x128] sm:$0xff]
        %v2876 = vld [vmem:[%s2837 + $0x130] sm:$0xff]
        %v2877 = vld [vmem:[%s2837 + $0x138] sm:$0xff]
        %v2878 = vld [vmem:[%s2837 + $0x140] sm:$0xff]
        %v2879 = vld [vmem:[%s2837 + $0x148] sm:$0xff]
        %v2880 = vld [vmem:[%s2837 + $0x150] sm:$0xff]
        %v2881 = vld [vmem:[%s2837 + $0x158] sm:$0xff]
        %v2882 = vld [vmem:[%s2837 + $0x160] sm:$0xff]
        %v2883 = vld [vmem:[%s2837 + $0x168] sm:$0xff]
        %v2884 = vld [vmem:[%s2837 + $0x170] sm:$0xff]
        %v2885 = vld [vmem:[%s2837 + $0x178] sm:$0xff]
        %v2886 = vld [vmem:[%s2837 + $0x180] sm:$0xff]
        %v2887 = vld [vmem:[%s2837 + $0x188] sm:$0xff]
        %v2888 = vld [vmem:[%s2837 + $0x190] sm:$0xff]
        %v2889 = vld [vmem:[%s2837 + $0x198] sm:$0xff]
        %v2890 = vld [vmem:[%s2837 + $0x1a0] sm:$0xff]
        %v2891 = vld [vmem:[%s2837 + $0x1a8] sm:$0xff]
        %v2892 = vld [vmem:[%s2837 + $0x1b0] sm:$0xff]
        %v2893 = vld [vmem:[%s2837 + $0x1b8] sm:$0xff]
        %v2894 = vld [vmem:[%s2837 + $0x1c0] sm:$0xff]
        %v2895 = vld [vmem:[%s2837 + $0x1c8] sm:$0xff]
        %v2896 = vld [vmem:[%s2837 + $0x1d0] sm:$0xff]
        %v2897 = vld [vmem:[%s2837 + $0x1d8] sm:$0xff]
        %v2898 = vld [vmem:[%s2837 + $0x1e0] sm:$0xff]
        %v2899 = vld [vmem:[%s2837 + $0x1e8] sm:$0xff]
        %v2900 = vld [vmem:[%s2837 + $0x1f0] sm:$0xff]
        %v2901 = vld [vmem:[%s2837 + $0x1f8] sm:$0xff]
        %v2902 = vld [vmem:[%s2837 + $0x200] sm:$0xff]
        %v2903 = vld [vmem:[%s2837 + $0x208] sm:$0xff]
        %v2904 = vld [vmem:[%s2837 + $0x210] sm:$0xff]
        %v2905 = vld [vmem:[%s2837 + $0x218] sm:$0xff]
        %v2906 = vld [vmem:[%s2837 + $0x220] sm:$0xff]
        %v2907 = vld [vmem:[%s2837 + $0x228] sm:$0xff]
        %v2908 = vld [vmem:[%s2837 + $0x230] sm:$0xff]
        %v2909 = vld [vmem:[%s2837 + $0x238] sm:$0xff]
        %v2910 = vld [vmem:[%s2837 + $0x240] sm:$0xff]
        %v2911 = vld [vmem:[%s2837 + $0x248] sm:$0xff]
        %v2912 = vld [vmem:[%s2837 + $0x250] sm:$0xf]
        %v2913 = vld [vmem:[%s2837 + $0x258] sm:$0xf]
        %vm2914 = vcmask 359424
        %v2915 = vsel %vm2914, %v2824, 0
        %v2917 = vsel %vm2914, %v2826, 0
        %v2920 = vsel %vm2049, %v2912, 0
        %v2923 = vsel %vm2049, %v2913, 0
        %2925 = vmatprep.subr.mxu0 %v2869
        %2926 = vmatpush1.msra.mxu0 %v2868
        %2927 = vmatprep.subr.mxu0 %v2867
        %2928 = vmatpush1.msra.mxu0 %v2866
        %2929 = vmatprep.subr.mxu0 %v2865
        %2930 = vmatpush1.msra.mxu0 %v2864
        %2931 = vmatprep.subr.mxu0 %v2863
        %2932 = vmatpush1.msra.mxu0 %v2862
        %2933 = vmatprep.subr.mxu0 %v2861
        %2934 = vmatpush1.msra.mxu0 %v2860
        %2935 = vmatprep.subr.mxu0 %v2859
        %2936 = vmatpush1.msra.mxu0 %v2858
        %2937 = vmatprep.subr.mxu0 %v2857
        %2938 = vmatpush1.msra.mxu0 %v2856
        %2939 = vmatprep.subr.mxu0 %v2855
        %2940 = vmatpush1.msra.mxu0 %v2854
        %2941 = vmatprep.subr.mxu0 %v2853
        %2942 = vmatpush1.msra.mxu0 %v2852
        %2943 = vmatprep.subr.mxu0 %v2851
        %2944 = vmatpush1.msra.mxu0 %v2850
        %2945 = vmatprep.subr.mxu0 %v2849
        %2946 = vmatpush1.msra.mxu0 %v2848
        %2947 = vmatprep.subr.mxu0 %v2847
        %2948 = vmatpush1.msra.mxu0 %v2846
        %2949 = vmatprep.subr.mxu0 %v2845
        %2950 = vmatpush1.msra.mxu0 %v2844
        %2951 = vmatprep.subr.mxu0 %v2843
        %2952 = vmatpush1.msra.mxu0 %v2842
        %2953 = vmatprep.subr.mxu0 %v2841
        %2954 = vmatpush1.msra.mxu0 %v2840
        %2955 = vmatprep.subr.mxu0 %v2839
        %2956 = vmatpush1.msra.mxu0 %v2838
        %2957 = vmatprep.subr.mxu0 %v2901
        %2958 = vmatpush2.msra.mxu0 %v2900
        %2959 = vmatprep.subr.mxu0 %v2899
        %2960 = vmatpush2.msra.mxu0 %v2898
        %2961 = vmatprep.subr.mxu0 %v2897
        %2962 = vmatpush2.msra.mxu0 %v2896
        %2963 = vmatprep.subr.mxu0 %v2895
        %2964 = vmatpush2.msra.mxu0 %v2894
        %2965 = vmatprep.subr.mxu0 %v2893
        %2966 = vmatpush2.msra.mxu0 %v2892
        %2967 = vmatprep.subr.mxu0 %v2891
        %2968 = vmatpush2.msra.mxu0 %v2890
        %2969 = vmatprep.subr.mxu0 %v2889
        %2970 = vmatpush2.msra.mxu0 %v2888
        %2971 = vmatprep.subr.mxu0 %v2887
        %2972 = vmatpush2.msra.mxu0 %v2886
        %2973 = vmatprep.subr.mxu0 %v2885
        %2974 = vmatpush2.msra.mxu0 %v2884
        %2975 = vmatprep.subr.mxu0 %v2883
        %2976 = vmatpush2.msra.mxu0 %v2882
        %2977 = vmatprep.subr.mxu0 %v2881
        %2978 = vmatpush2.msra.mxu0 %v2880
        %2979 = vmatprep.subr.mxu0 %v2879
        %2980 = vmatpush2.msra.mxu0 %v2878
        %2981 = vmatprep.subr.mxu0 %v2877
        %2982 = vmatpush2.msra.mxu0 %v2876
        %2983 = vmatprep.subr.mxu0 %v2875
        %2984 = vmatpush2.msra.mxu0 %v2874
        %2985 = vmatprep.subr.mxu0 %v2873
        %2986 = vmatpush2.msra.mxu0 %v2872
        %2987 = vmatprep.subr.mxu0 %v2871
        %2988 = vmatpush2.msra.mxu0 %v2870
        %2989 = vmatprep.mubr.f32.mxu0 %v2835
        %2990 = vmatmul.mubr.f32.gmra.mxu0 %v2831
        %v2991 = vpop.f32.mrf.mxu0
        %v2992 = vadd.f32 0.0, %v2991
        %v2993 = vpop.f32.mrf.mxu0
        %v2994 = vadd.f32 0.0, %v2993
        %2995 = vmatprep.mubr.f32.mxu0 %v2836
        %2996 = vmatmul.mubr.f32.gmra.mxu0 %v2832
        %v2997 = vpop.f32.mrf.mxu0
        %v2998 = vadd.f32 0.0, %v2997
        %v2999 = vpop.f32.mrf.mxu0
        %v3000 = vadd.f32 0.0, %v2999
        %3001 = vdwg.mxu0
        %3002 = vmatprep.subr.mxu0 0.0
        %3003 = vmatpush1.msra.mxu0 0.0
        %3004 = vmatprep.subr.mxu0 0.0
        %3005 = vmatpush1.msra.mxu0 0.0
        %3006 = vmatprep.subr.mxu0 0.0
        %3007 = vmatpush1.msra.mxu0 0.0
        %3008 = vmatprep.subr.mxu0 0.0
        %3009 = vmatpush1.msra.mxu0 0.0
        %3010 = vmatprep.subr.mxu0 0.0
        %3011 = vmatpush1.msra.mxu0 0.0
        %3012 = vmatprep.subr.mxu0 0.0
        %3013 = vmatpush1.msra.mxu0 0.0
        %3014 = vmatprep.subr.mxu0 0.0
        %3015 = vmatpush1.msra.mxu0 0.0
        %3016 = vmatprep.subr.mxu0 0.0
        %3017 = vmatpush1.msra.mxu0 0.0
        %3018 = vmatprep.subr.mxu0 0.0
        %3019 = vmatpush1.msra.mxu0 0.0
        %3020 = vmatprep.subr.mxu0 0.0
        %3021 = vmatpush1.msra.mxu0 0.0
        %3022 = vmatprep.subr.mxu0 %v2923
        %3023 = vmatpush1.msra.mxu0 %v2920
        %3024 = vmatprep.subr.mxu0 %v2911
        %3025 = vmatpush1.msra.mxu0 %v2910
        %3026 = vmatprep.subr.mxu0 %v2909
        %3027 = vmatpush1.msra.mxu0 %v2908
        %3028 = vmatprep.subr.mxu0 %v2907
        %3029 = vmatpush1.msra.mxu0 %v2906
        %3030 = vmatprep.subr.mxu0 %v2905
        %3031 = vmatpush1.msra.mxu0 %v2904
        %3032 = vmatprep.subr.mxu0 %v2903
        %3033 = vmatpush1.msra.mxu0 %v2902
        %3034 = vmatprep.subr.mxu0 0.0
        %3035 = vmatpush2.msra.mxu0 0.0
        %3036 = vmatprep.subr.mxu0 0.0
        %3037 = vmatpush2.msra.mxu0 0.0
        %3038 = vmatprep.subr.mxu0 0.0
        %3039 = vmatpush2.msra.mxu0 0.0
        %3040 = vmatprep.subr.mxu0 0.0
        %3041 = vmatpush2.msra.mxu0 0.0
        %3042 = vmatprep.subr.mxu0 0.0
        %3043 = vmatpush2.msra.mxu0 0.0
        %3044 = vmatprep.subr.mxu0 0.0
        %3045 = vmatpush2.msra.mxu0 0.0
        %3046 = vmatprep.subr.mxu0 0.0
        %3047 = vmatpush2.msra.mxu0 0.0
        %3048 = vmatprep.subr.mxu0 0.0
        %3049 = vmatpush2.msra.mxu0 0.0
        %3050 = vmatprep.subr.mxu0 0.0
        %3051 = vmatpush2.msra.mxu0 0.0
        %3052 = vmatprep.subr.mxu0 0.0
        %3053 = vmatpush2.msra.mxu0 0.0
        %3054 = vmatprep.subr.mxu0 0.0
        %3055 = vmatpush2.msra.mxu0 0.0
        %3056 = vmatprep.subr.mxu0 0.0
        %3057 = vmatpush2.msra.mxu0 0.0
        %3058 = vmatprep.subr.mxu0 0.0
        %3059 = vmatpush2.msra.mxu0 0.0
        %3060 = vmatprep.subr.mxu0 0.0
        %3061 = vmatpush2.msra.mxu0 0.0
        %3062 = vmatprep.subr.mxu0 0.0
        %3063 = vmatpush2.msra.mxu0 0.0
        %3064 = vmatprep.subr.mxu0 0.0
        %3065 = vmatpush2.msra.mxu0 0.0
        %3066 = vmatprep.mubr.f32.mxu0 0.0
        %3067 = vmatmul.mubr.f32.gmra.mxu0 %v2915
        %v3068 = vpop.f32.mrf.mxu0
        %v3069 = vadd.f32 %v2992, %v3068
        %v3070 = vpop.f32.mrf.mxu0
        %v3071 = vadd.f32 %v2994, %v3070
        %3072 = vmatprep.mubr.f32.mxu0 0.0
        %3073 = vmatmul.mubr.f32.gmra.mxu0 %v2917
        %v3074 = vpop.f32.mrf.mxu0
        %v3075 = vadd.f32 %v2998, %v3074
        %v3076 = vpop.f32.mrf.mxu0
        %v3077 = vadd.f32 %v3000, %v3076
        %3078 = vdwg.mxu0
        %v3079 = vsel %vm2914, %v2708, 0
        %v3081 = vsel %vm2914, %v2710, 0
        %v3084 = vsel %vm2049, %v2799, 0
        %v3087 = vsel %vm2049, %v2800, 0
        %3089 = vmatprep.subr.mxu0 %v2756
        %3090 = vmatpush1.msra.mxu0 %v2755
        %3091 = vmatprep.subr.mxu0 %v2754
        %3092 = vmatpush1.msra.mxu0 %v2753
        %3093 = vmatprep.subr.mxu0 %v2752
        %3094 = vmatpush1.msra.mxu0 %v2751
        %3095 = vmatprep.subr.mxu0 %v2750
        %3096 = vmatpush1.msra.mxu0 %v2749
        %3097 = vmatprep.subr.mxu0 %v2748
        %3098 = vmatpush1.msra.mxu0 %v2747
        %3099 = vmatprep.subr.mxu0 %v2746
        %3100 = vmatpush1.msra.mxu0 %v2745
        %3101 = vmatprep.subr.mxu0 %v2744
        %3102 = vmatpush1.msra.mxu0 %v2743
        %3103 = vmatprep.subr.mxu0 %v2742
        %3104 = vmatpush1.msra.mxu0 %v2741
        %3105 = vmatprep.subr.mxu0 %v2740
        %3106 = vmatpush1.msra.mxu0 %v2739
        %3107 = vmatprep.subr.mxu0 %v2738
        %3108 = vmatpush1.msra.mxu0 %v2737
        %3109 = vmatprep.subr.mxu0 %v2736
        %3110 = vmatpush1.msra.mxu0 %v2735
        %3111 = vmatprep.subr.mxu0 %v2734
        %3112 = vmatpush1.msra.mxu0 %v2733
        %3113 = vmatprep.subr.mxu0 %v2732
        %3114 = vmatpush1.msra.mxu0 %v2731
        %3115 = vmatprep.subr.mxu0 %v2730
        %3116 = vmatpush1.msra.mxu0 %v2729
        %3117 = vmatprep.subr.mxu0 %v2728
        %3118 = vmatpush1.msra.mxu0 %v2727
        %3119 = vmatprep.subr.mxu0 %v2726
        %3120 = vmatpush1.msra.mxu0 %v2725
        %3121 = vmatprep.subr.mxu0 %v2788
        %3122 = vmatpush2.msra.mxu0 %v2787
        %3123 = vmatprep.subr.mxu0 %v2786
        %3124 = vmatpush2.msra.mxu0 %v2785
        %3125 = vmatprep.subr.mxu0 %v2784
        %3126 = vmatpush2.msra.mxu0 %v2783
        %3127 = vmatprep.subr.mxu0 %v2782
        %3128 = vmatpush2.msra.mxu0 %v2781
        %3129 = vmatprep.subr.mxu0 %v2780
        %3130 = vmatpush2.msra.mxu0 %v2779
        %3131 = vmatprep.subr.mxu0 %v2778
        %3132 = vmatpush2.msra.mxu0 %v2777
        %3133 = vmatprep.subr.mxu0 %v2776
        %3134 = vmatpush2.msra.mxu0 %v2775
        %3135 = vmatprep.subr.mxu0 %v2774
        %3136 = vmatpush2.msra.mxu0 %v2773
        %3137 = vmatprep.subr.mxu0 %v2772
        %3138 = vmatpush2.msra.mxu0 %v2771
        %3139 = vmatprep.subr.mxu0 %v2770
        %3140 = vmatpush2.msra.mxu0 %v2769
        %3141 = vmatprep.subr.mxu0 %v2768
        %3142 = vmatpush2.msra.mxu0 %v2767
        %3143 = vmatprep.subr.mxu0 %v2766
        %3144 = vmatpush2.msra.mxu0 %v2765
        %3145 = vmatprep.subr.mxu0 %v2764
        %3146 = vmatpush2.msra.mxu0 %v2763
        %3147 = vmatprep.subr.mxu0 %v2762
        %3148 = vmatpush2.msra.mxu0 %v2761
        %3149 = vmatprep.subr.mxu0 %v2760
        %3150 = vmatpush2.msra.mxu0 %v2759
        %3151 = vmatprep.subr.mxu0 %v2758
        %3152 = vmatpush2.msra.mxu0 %v2757
        %3153 = vmatprep.mubr.f32.mxu0 %v2723
        %3154 = vmatmul.mubr.f32.gmra.mxu0 %v2717
        %v3155 = vpop.f32.mrf.mxu0
        %v3156 = vadd.f32 %v3069, %v3155
        %v3157 = vpop.f32.mrf.mxu0
        %v3158 = vadd.f32 %v3071, %v3157
        %3159 = vmatprep.mubr.f32.mxu0 %v2724
        %3160 = vmatmul.mubr.f32.gmra.mxu0 %v2718
        %v3161 = vpop.f32.mrf.mxu0
        %v3162 = vadd.f32 %v3075, %v3161
        %v3163 = vpop.f32.mrf.mxu0
        %v3164 = vadd.f32 %v3077, %v3163
        %3165 = vdwg.mxu0
        %3166 = vmatprep.subr.mxu0 0.0
        %3167 = vmatpush1.msra.mxu0 0.0
        %3168 = vmatprep.subr.mxu0 0.0
        %3169 = vmatpush1.msra.mxu0 0.0
        %3170 = vmatprep.subr.mxu0 0.0
        %3171 = vmatpush1.msra.mxu0 0.0
        %3172 = vmatprep.subr.mxu0 0.0
        %3173 = vmatpush1.msra.mxu0 0.0
        %3174 = vmatprep.subr.mxu0 0.0
        %3175 = vmatpush1.msra.mxu0 0.0
        %3176 = vmatprep.subr.mxu0 0.0
        %3177 = vmatpush1.msra.mxu0 0.0
        %3178 = vmatprep.subr.mxu0 0.0
        %3179 = vmatpush1.msra.mxu0 0.0
        %3180 = vmatprep.subr.mxu0 0.0
        %3181 = vmatpush1.msra.mxu0 0.0
        %3182 = vmatprep.subr.mxu0 0.0
        %3183 = vmatpush1.msra.mxu0 0.0
        %3184 = vmatprep.subr.mxu0 0.0
        %3185 = vmatpush1.msra.mxu0 0.0
        %3186 = vmatprep.subr.mxu0 %v3087
        %3187 = vmatpush1.msra.mxu0 %v3084
        %3188 = vmatprep.subr.mxu0 %v2798
        %3189 = vmatpush1.msra.mxu0 %v2797
        %3190 = vmatprep.subr.mxu0 %v2796
        %3191 = vmatpush1.msra.mxu0 %v2795
        %3192 = vmatprep.subr.mxu0 %v2794
        %3193 = vmatpush1.msra.mxu0 %v2793
        %3194 = vmatprep.subr.mxu0 %v2792
        %3195 = vmatpush1.msra.mxu0 %v2791
        %3196 = vmatprep.subr.mxu0 %v2790
        %3197 = vmatpush1.msra.mxu0 %v2789
        %3198 = vmatprep.subr.mxu0 0.0
        %3199 = vmatpush2.msra.mxu0 0.0
        %3200 = vmatprep.subr.mxu0 0.0
        %3201 = vmatpush2.msra.mxu0 0.0
        %3202 = vmatprep.subr.mxu0 0.0
        %3203 = vmatpush2.msra.mxu0 0.0
        %3204 = vmatprep.subr.mxu0 0.0
        %3205 = vmatpush2.msra.mxu0 0.0
        %3206 = vmatprep.subr.mxu0 0.0
        %3207 = vmatpush2.msra.mxu0 0.0
        %3208 = vmatprep.subr.mxu0 0.0
        %3209 = vmatpush2.msra.mxu0 0.0
        %3210 = vmatprep.subr.mxu0 0.0
        %3211 = vmatpush2.msra.mxu0 0.0
        %3212 = vmatprep.subr.mxu0 0.0
        %3213 = vmatpush2.msra.mxu0 0.0
        %3214 = vmatprep.subr.mxu0 0.0
        %3215 = vmatpush2.msra.mxu0 0.0
        %3216 = vmatprep.subr.mxu0 0.0
        %3217 = vmatpush2.msra.mxu0 0.0
        %3218 = vmatprep.subr.mxu0 0.0
        %3219 = vmatpush2.msra.mxu0 0.0
        %3220 = vmatprep.subr.mxu0 0.0
        %3221 = vmatpush2.msra.mxu0 0.0
        %3222 = vmatprep.subr.mxu0 0.0
        %3223 = vmatpush2.msra.mxu0 0.0
        %3224 = vmatprep.subr.mxu0 0.0
        %3225 = vmatpush2.msra.mxu0 0.0
        %3226 = vmatprep.subr.mxu0 0.0
        %3227 = vmatpush2.msra.mxu0 0.0
        %3228 = vmatprep.subr.mxu0 0.0
        %3229 = vmatpush2.msra.mxu0 0.0
        %3230 = vmatprep.mubr.f32.mxu0 0.0
        %3231 = vmatmul.mubr.f32.gmra.mxu0 %v3079
        %v3232 = vpop.f32.mrf.mxu0
        %v3233 = vadd.f32 %v3156, %v3232
        %v3234 = vpop.f32.mrf.mxu0
        %v3235 = vadd.f32 %v3158, %v3234
        %3236 = vmatprep.mubr.f32.mxu0 0.0
        %3237 = vmatmul.mubr.f32.gmra.mxu0 %v3081
        %v3238 = vpop.f32.mrf.mxu0
        %v3239 = vadd.f32 %v3162, %v3238
        %v3240 = vpop.f32.mrf.mxu0
        %v3241 = vadd.f32 %v3164, %v3240
        %3242 = vdwg.mxu0
        %v3243 = vld [vmem:[#allocation2 + $0x2] sm:$0xff]
        %v3244 = vld [vmem:[#allocation2 + $0xa] sm:$0x3]
        %3247 = vrot.lane.b32.xlu0 %v3243, 54
        %v3248 = vpop.permute.xlu0 %3247
        %3249 = vrot.lane.b32.xlu0 %v3244, 54
        %v3250 = vpop.permute.xlu0 %3249
        %3253 = vrot.lane.b32.xlu0 %v3243, 108
        %v3254 = vpop.permute.xlu0 %3253
        %3255 = vrot.lane.b32.xlu0 %v3244, 108
        %v3256 = vpop.permute.xlu0 %3255
        %3259 = vrot.lane.b32.xlu0 %v3243, 34
        %v3260 = vpop.permute.xlu0 %3259
        %3261 = vrot.lane.b32.xlu0 %v3244, 34
        %v3262 = vpop.permute.xlu0 %3261
        %3265 = vrot.lane.b32.xlu0 %v3243, 88
        %v3266 = vpop.permute.xlu0 %3265
        %3267 = vrot.lane.b32.xlu0 %v3244, 88
        %v3268 = vpop.permute.xlu0 %3267
        %v3271 = vsel %vm2713, %v3243, %v3248
        %v3272 = vsel %vm2713, %v3244, %v3250
        %v3273 = vsel %vm2716, %v3271, %v3254
        %v3274 = vsel %vm2716, %v3272, %v3256
        %v3275 = vsel %vm2719, %v3254, %v3260
        %v3276 = vsel %vm2719, %v3256, %v3262
        %v3277 = vsel %vm2722, %v3275, %v3266
        %v3278 = vsel %vm2722, %v3276, %v3268
        %s3279 = scalar_lea.vmem %s5, 1216
        %v3280 = vld [vmem:[%s3279] sm:$0xff]
        %v3281 = vld [vmem:[%s3279 + $0x8] sm:$0xff]
        %v3282 = vld [vmem:[%s3279 + $0x10] sm:$0xff]
        %v3283 = vld [vmem:[%s3279 + $0x18] sm:$0xff]
        %v3284 = vld [vmem:[%s3279 + $0x20] sm:$0xff]
        %v3285 = vld [vmem:[%s3279 + $0x28] sm:$0xff]
        %v3286 = vld [vmem:[%s3279 + $0x30] sm:$0xff]
        %v3287 = vld [vmem:[%s3279 + $0x38] sm:$0xff]
        %v3288 = vld [vmem:[%s3279 + $0x40] sm:$0xff]
        %v3289 = vld [vmem:[%s3279 + $0x48] sm:$0xff]
        %v3290 = vld [vmem:[%s3279 + $0x50] sm:$0xff]
        %v3291 = vld [vmem:[%s3279 + $0x58] sm:$0xff]
        %v3292 = vld [vmem:[%s3279 + $0x60] sm:$0xff]
        %v3293 = vld [vmem:[%s3279 + $0x68] sm:$0xff]
        %v3294 = vld [vmem:[%s3279 + $0x70] sm:$0xff]
        %v3295 = vld [vmem:[%s3279 + $0x78] sm:$0xff]
        %v3296 = vld [vmem:[%s3279 + $0x80] sm:$0xff]
        %v3297 = vld [vmem:[%s3279 + $0x88] sm:$0xff]
        %v3298 = vld [vmem:[%s3279 + $0x90] sm:$0xff]
        %v3299 = vld [vmem:[%s3279 + $0x98] sm:$0xff]
        %v3300 = vld [vmem:[%s3279 + $0xa0] sm:$0xff]
        %v3301 = vld [vmem:[%s3279 + $0xa8] sm:$0xff]
        %v3302 = vld [vmem:[%s3279 + $0xb0] sm:$0xff]
        %v3303 = vld [vmem:[%s3279 + $0xb8] sm:$0xff]
        %v3304 = vld [vmem:[%s3279 + $0xc0] sm:$0xff]
        %v3305 = vld [vmem:[%s3279 + $0xc8] sm:$0xff]
        %v3306 = vld [vmem:[%s3279 + $0xd0] sm:$0xff]
        %v3307 = vld [vmem:[%s3279 + $0xd8] sm:$0xff]
        %v3308 = vld [vmem:[%s3279 + $0xe0] sm:$0xff]
        %v3309 = vld [vmem:[%s3279 + $0xe8] sm:$0xff]
        %v3310 = vld [vmem:[%s3279 + $0xf0] sm:$0xff]
        %v3311 = vld [vmem:[%s3279 + $0xf8] sm:$0xff]
        %v3312 = vld [vmem:[%s3279 + $0x100] sm:$0xff]
        %v3313 = vld [vmem:[%s3279 + $0x108] sm:$0xff]
        %v3314 = vld [vmem:[%s3279 + $0x110] sm:$0xff]
        %v3315 = vld [vmem:[%s3279 + $0x118] sm:$0xff]
        %v3316 = vld [vmem:[%s3279 + $0x120] sm:$0xff]
        %v3317 = vld [vmem:[%s3279 + $0x128] sm:$0xff]
        %v3318 = vld [vmem:[%s3279 + $0x130] sm:$0xff]
        %v3319 = vld [vmem:[%s3279 + $0x138] sm:$0xff]
        %v3320 = vld [vmem:[%s3279 + $0x140] sm:$0xff]
        %v3321 = vld [vmem:[%s3279 + $0x148] sm:$0xff]
        %v3322 = vld [vmem:[%s3279 + $0x150] sm:$0xff]
        %v3323 = vld [vmem:[%s3279 + $0x158] sm:$0xff]
        %v3324 = vld [vmem:[%s3279 + $0x160] sm:$0xff]
        %v3325 = vld [vmem:[%s3279 + $0x168] sm:$0xff]
        %v3326 = vld [vmem:[%s3279 + $0x170] sm:$0xff]
        %v3327 = vld [vmem:[%s3279 + $0x178] sm:$0xff]
        %v3328 = vld [vmem:[%s3279 + $0x180] sm:$0xff]
        %v3329 = vld [vmem:[%s3279 + $0x188] sm:$0xff]
        %v3330 = vld [vmem:[%s3279 + $0x190] sm:$0xff]
        %v3331 = vld [vmem:[%s3279 + $0x198] sm:$0xff]
        %v3332 = vld [vmem:[%s3279 + $0x1a0] sm:$0xff]
        %v3333 = vld [vmem:[%s3279 + $0x1a8] sm:$0xff]
        %v3334 = vld [vmem:[%s3279 + $0x1b0] sm:$0xff]
        %v3335 = vld [vmem:[%s3279 + $0x1b8] sm:$0xff]
        %v3336 = vld [vmem:[%s3279 + $0x1c0] sm:$0xff]
        %v3337 = vld [vmem:[%s3279 + $0x1c8] sm:$0xff]
        %v3338 = vld [vmem:[%s3279 + $0x1d0] sm:$0xff]
        %v3339 = vld [vmem:[%s3279 + $0x1d8] sm:$0xff]
        %v3340 = vld [vmem:[%s3279 + $0x1e0] sm:$0xff]
        %v3341 = vld [vmem:[%s3279 + $0x1e8] sm:$0xff]
        %v3342 = vld [vmem:[%s3279 + $0x1f0] sm:$0xff]
        %v3343 = vld [vmem:[%s3279 + $0x1f8] sm:$0xff]
        %v3344 = vld [vmem:[%s3279 + $0x200] sm:$0xff]
        %v3345 = vld [vmem:[%s3279 + $0x208] sm:$0xff]
        %v3346 = vld [vmem:[%s3279 + $0x210] sm:$0xff]
        %v3347 = vld [vmem:[%s3279 + $0x218] sm:$0xff]
        %v3348 = vld [vmem:[%s3279 + $0x220] sm:$0xff]
        %v3349 = vld [vmem:[%s3279 + $0x228] sm:$0xff]
        %v3350 = vld [vmem:[%s3279 + $0x230] sm:$0xff]
        %v3351 = vld [vmem:[%s3279 + $0x238] sm:$0xff]
        %v3352 = vld [vmem:[%s3279 + $0x240] sm:$0xff]
        %v3353 = vld [vmem:[%s3279 + $0x248] sm:$0xff]
        %v3354 = vld [vmem:[%s3279 + $0x250] sm:$0xf]
        %v3355 = vld [vmem:[%s3279 + $0x258] sm:$0xf]
        %v3356 = vsel %vm2914, %v3266, 0
        %v3358 = vsel %vm2914, %v3268, 0
        %v3361 = vsel %vm2049, %v3354, 0
        %v3364 = vsel %vm2049, %v3355, 0
        %3366 = vmatprep.subr.mxu0 %v3311
        %3367 = vmatpush1.msra.mxu0 %v3310
        %3368 = vmatprep.subr.mxu0 %v3309
        %3369 = vmatpush1.msra.mxu0 %v3308
        %3370 = vmatprep.subr.mxu0 %v3307
        %3371 = vmatpush1.msra.mxu0 %v3306
        %3372 = vmatprep.subr.mxu0 %v3305
        %3373 = vmatpush1.msra.mxu0 %v3304
        %3374 = vmatprep.subr.mxu0 %v3303
        %3375 = vmatpush1.msra.mxu0 %v3302
        %3376 = vmatprep.subr.mxu0 %v3301
        %3377 = vmatpush1.msra.mxu0 %v3300
        %3378 = vmatprep.subr.mxu0 %v3299
        %3379 = vmatpush1.msra.mxu0 %v3298
        %3380 = vmatprep.subr.mxu0 %v3297
        %3381 = vmatpush1.msra.mxu0 %v3296
        %3382 = vmatprep.subr.mxu0 %v3295
        %3383 = vmatpush1.msra.mxu0 %v3294
        %3384 = vmatprep.subr.mxu0 %v3293
        %3385 = vmatpush1.msra.mxu0 %v3292
        %3386 = vmatprep.subr.mxu0 %v3291
        %3387 = vmatpush1.msra.mxu0 %v3290
        %3388 = vmatprep.subr.mxu0 %v3289
        %3389 = vmatpush1.msra.mxu0 %v3288
        %3390 = vmatprep.subr.mxu0 %v3287
        %3391 = vmatpush1.msra.mxu0 %v3286
        %3392 = vmatprep.subr.mxu0 %v3285
        %3393 = vmatpush1.msra.mxu0 %v3284
        %3394 = vmatprep.subr.mxu0 %v3283
        %3395 = vmatpush1.msra.mxu0 %v3282
        %3396 = vmatprep.subr.mxu0 %v3281
        %3397 = vmatpush1.msra.mxu0 %v3280
        %3398 = vmatprep.subr.mxu0 %v3343
        %3399 = vmatpush2.msra.mxu0 %v3342
        %3400 = vmatprep.subr.mxu0 %v3341
        %3401 = vmatpush2.msra.mxu0 %v3340
        %3402 = vmatprep.subr.mxu0 %v3339
        %3403 = vmatpush2.msra.mxu0 %v3338
        %3404 = vmatprep.subr.mxu0 %v3337
        %3405 = vmatpush2.msra.mxu0 %v3336
        %3406 = vmatprep.subr.mxu0 %v3335
        %3407 = vmatpush2.msra.mxu0 %v3334
        %3408 = vmatprep.subr.mxu0 %v3333
        %3409 = vmatpush2.msra.mxu0 %v3332
        %3410 = vmatprep.subr.mxu0 %v3331
        %3411 = vmatpush2.msra.mxu0 %v3330
        %3412 = vmatprep.subr.mxu0 %v3329
        %3413 = vmatpush2.msra.mxu0 %v3328
        %3414 = vmatprep.subr.mxu0 %v3327
        %3415 = vmatpush2.msra.mxu0 %v3326
        %3416 = vmatprep.subr.mxu0 %v3325
        %3417 = vmatpush2.msra.mxu0 %v3324
        %3418 = vmatprep.subr.mxu0 %v3323
        %3419 = vmatpush2.msra.mxu0 %v3322
        %3420 = vmatprep.subr.mxu0 %v3321
        %3421 = vmatpush2.msra.mxu0 %v3320
        %3422 = vmatprep.subr.mxu0 %v3319
        %3423 = vmatpush2.msra.mxu0 %v3318
        %3424 = vmatprep.subr.mxu0 %v3317
        %3425 = vmatpush2.msra.mxu0 %v3316
        %3426 = vmatprep.subr.mxu0 %v3315
        %3427 = vmatpush2.msra.mxu0 %v3314
        %3428 = vmatprep.subr.mxu0 %v3313
        %3429 = vmatpush2.msra.mxu0 %v3312
        %3430 = vmatprep.mubr.f32.mxu0 %v3277
        %3431 = vmatmul.mubr.f32.gmra.mxu0 %v3273
        %v3432 = vpop.f32.mrf.mxu0
        %v3433 = vadd.f32 0.0, %v3432
        %v3434 = vpop.f32.mrf.mxu0
        %v3435 = vadd.f32 0.0, %v3434
        %3436 = vmatprep.mubr.f32.mxu0 %v3278
        %3437 = vmatmul.mubr.f32.gmra.mxu0 %v3274
        %v3438 = vpop.f32.mrf.mxu0
        %v3439 = vadd.f32 0.0, %v3438
        %v3440 = vpop.f32.mrf.mxu0
        %v3441 = vadd.f32 0.0, %v3440
        %3442 = vdwg.mxu0
        %3443 = vmatprep.subr.mxu0 0.0
        %3444 = vmatpush1.msra.mxu0 0.0
        %3445 = vmatprep.subr.mxu0 0.0
        %3446 = vmatpush1.msra.mxu0 0.0
        %3447 = vmatprep.subr.mxu0 0.0
        %3448 = vmatpush1.msra.mxu0 0.0
        %3449 = vmatprep.subr.mxu0 0.0
        %3450 = vmatpush1.msra.mxu0 0.0
        %3451 = vmatprep.subr.mxu0 0.0
        %3452 = vmatpush1.msra.mxu0 0.0
        %3453 = vmatprep.subr.mxu0 0.0
        %3454 = vmatpush1.msra.mxu0 0.0
        %3455 = vmatprep.subr.mxu0 0.0
        %3456 = vmatpush1.msra.mxu0 0.0
        %3457 = vmatprep.subr.mxu0 0.0
        %3458 = vmatpush1.msra.mxu0 0.0
        %3459 = vmatprep.subr.mxu0 0.0
        %3460 = vmatpush1.msra.mxu0 0.0
        %3461 = vmatprep.subr.mxu0 0.0
        %3462 = vmatpush1.msra.mxu0 0.0
        %3463 = vmatprep.subr.mxu0 %v3364
        %3464 = vmatpush1.msra.mxu0 %v3361
        %3465 = vmatprep.subr.mxu0 %v3353
        %3466 = vmatpush1.msra.mxu0 %v3352
        %3467 = vmatprep.subr.mxu0 %v3351
        %3468 = vmatpush1.msra.mxu0 %v3350
        %3469 = vmatprep.subr.mxu0 %v3349
        %3470 = vmatpush1.msra.mxu0 %v3348
        %3471 = vmatprep.subr.mxu0 %v3347
        %3472 = vmatpush1.msra.mxu0 %v3346
        %3473 = vmatprep.subr.mxu0 %v3345
        %3474 = vmatpush1.msra.mxu0 %v3344
        %3475 = vmatprep.subr.mxu0 0.0
        %3476 = vmatpush2.msra.mxu0 0.0
        %3477 = vmatprep.subr.mxu0 0.0
        %3478 = vmatpush2.msra.mxu0 0.0
        %3479 = vmatprep.subr.mxu0 0.0
        %3480 = vmatpush2.msra.mxu0 0.0
        %3481 = vmatprep.subr.mxu0 0.0
        %3482 = vmatpush2.msra.mxu0 0.0
        %3483 = vmatprep.subr.mxu0 0.0
        %3484 = vmatpush2.msra.mxu0 0.0
        %3485 = vmatprep.subr.mxu0 0.0
        %3486 = vmatpush2.msra.mxu0 0.0
        %3487 = vmatprep.subr.mxu0 0.0
        %3488 = vmatpush2.msra.mxu0 0.0
        %3489 = vmatprep.subr.mxu0 0.0
        %3490 = vmatpush2.msra.mxu0 0.0
        %3491 = vmatprep.subr.mxu0 0.0
        %3492 = vmatpush2.msra.mxu0 0.0
        %3493 = vmatprep.subr.mxu0 0.0
        %3494 = vmatpush2.msra.mxu0 0.0
        %3495 = vmatprep.subr.mxu0 0.0
        %3496 = vmatpush2.msra.mxu0 0.0
        %3497 = vmatprep.subr.mxu0 0.0
        %3498 = vmatpush2.msra.mxu0 0.0
        %3499 = vmatprep.subr.mxu0 0.0
        %3500 = vmatpush2.msra.mxu0 0.0
        %3501 = vmatprep.subr.mxu0 0.0
        %3502 = vmatpush2.msra.mxu0 0.0
        %3503 = vmatprep.subr.mxu0 0.0
        %3504 = vmatpush2.msra.mxu0 0.0
        %3505 = vmatprep.subr.mxu0 0.0
        %3506 = vmatpush2.msra.mxu0 0.0
        %3507 = vmatprep.mubr.f32.mxu0 0.0
        %3508 = vmatmul.mubr.f32.gmra.mxu0 %v3356
        %v3509 = vpop.f32.mrf.mxu0
        %v3510 = vadd.f32 %v3433, %v3509
        %v3511 = vpop.f32.mrf.mxu0
        %v3512 = vadd.f32 %v3435, %v3511
        %3513 = vmatprep.mubr.f32.mxu0 0.0
        %3514 = vmatmul.mubr.f32.gmra.mxu0 %v3358
        %v3515 = vpop.f32.mrf.mxu0
        %v3516 = vadd.f32 %v3439, %v3515
        %v3517 = vpop.f32.mrf.mxu0
        %v3518 = vadd.f32 %v3441, %v3517
        %3519 = vdwg.mxu0
        %v3520 = vadd.f32 %v3233, %v3510
        %v3521 = vadd.f32 %v3235, %v3512
        %v3522 = vadd.f32 %v3239, %v3516
        %v3523 = vadd.f32 %v3241, %v3518
        %v3524 = vld [vmem:[#allocation2 + $0x3] sm:$0xff]
        %v3525 = vld [vmem:[#allocation2 + $0xb] sm:$0x3]
        %3528 = vrot.lane.b32.xlu0 %v3524, 54
        %v3529 = vpop.permute.xlu0 %3528
        %3530 = vrot.lane.b32.xlu0 %v3525, 54
        %v3531 = vpop.permute.xlu0 %3530
        %3534 = vrot.lane.b32.xlu0 %v3524, 108
        %v3535 = vpop.permute.xlu0 %3534
        %3536 = vrot.lane.b32.xlu0 %v3525, 108
        %v3537 = vpop.permute.xlu0 %3536
        %3540 = vrot.lane.b32.xlu0 %v3524, 34
        %v3541 = vpop.permute.xlu0 %3540
        %3542 = vrot.lane.b32.xlu0 %v3525, 34
        %v3543 = vpop.permute.xlu0 %3542
        %3546 = vrot.lane.b32.xlu0 %v3524, 88
        %v3547 = vpop.permute.xlu0 %3546
        %3548 = vrot.lane.b32.xlu0 %v3525, 88
        %v3549 = vpop.permute.xlu0 %3548
        %v3552 = vsel %vm2713, %v3524, %v3529
        %v3553 = vsel %vm2713, %v3525, %v3531
        %v3554 = vsel %vm2716, %v3552, %v3535
        %v3555 = vsel %vm2716, %v3553, %v3537
        %v3556 = vsel %vm2719, %v3535, %v3541
        %v3557 = vsel %vm2719, %v3537, %v3543
        %v3558 = vsel %vm2722, %v3556, %v3547
        %v3559 = vsel %vm2722, %v3557, %v3549
        %s3560 = scalar_lea.vmem %s5, 1824
        %v3561 = vld [vmem:[%s3560] sm:$0xff]
        %v3562 = vld [vmem:[%s3560 + $0x8] sm:$0xff]
        %v3563 = vld [vmem:[%s3560 + $0x10] sm:$0xff]
        %v3564 = vld [vmem:[%s3560 + $0x18] sm:$0xff]
        %v3565 = vld [vmem:[%s3560 + $0x20] sm:$0xff]
        %v3566 = vld [vmem:[%s3560 + $0x28] sm:$0xff]
        %v3567 = vld [vmem:[%s3560 + $0x30] sm:$0xff]
        %v3568 = vld [vmem:[%s3560 + $0x38] sm:$0xff]
        %v3569 = vld [vmem:[%s3560 + $0x40] sm:$0xff]
        %v3570 = vld [vmem:[%s3560 + $0x48] sm:$0xff]
        %v3571 = vld [vmem:[%s3560 + $0x50] sm:$0xff]
        %v3572 = vld [vmem:[%s3560 + $0x58] sm:$0xff]
        %v3573 = vld [vmem:[%s3560 + $0x60] sm:$0xff]
        %v3574 = vld [vmem:[%s3560 + $0x68] sm:$0xff]
        %v3575 = vld [vmem:[%s3560 + $0x70] sm:$0xff]
        %v3576 = vld [vmem:[%s3560 + $0x78] sm:$0xff]
        %v3577 = vld [vmem:[%s3560 + $0x80] sm:$0xff]
        %v3578 = vld [vmem:[%s3560 + $0x88] sm:$0xff]
        %v3579 = vld [vmem:[%s3560 + $0x90] sm:$0xff]
        %v3580 = vld [vmem:[%s3560 + $0x98] sm:$0xff]
        %v3581 = vld [vmem:[%s3560 + $0xa0] sm:$0xff]
        %v3582 = vld [vmem:[%s3560 + $0xa8] sm:$0xff]
        %v3583 = vld [vmem:[%s3560 + $0xb0] sm:$0xff]
        %v3584 = vld [vmem:[%s3560 + $0xb8] sm:$0xff]
        %v3585 = vld [vmem:[%s3560 + $0xc0] sm:$0xff]
        %v3586 = vld [vmem:[%s3560 + $0xc8] sm:$0xff]
        %v3587 = vld [vmem:[%s3560 + $0xd0] sm:$0xff]
        %v3588 = vld [vmem:[%s3560 + $0xd8] sm:$0xff]
        %v3589 = vld [vmem:[%s3560 + $0xe0] sm:$0xff]
        %v3590 = vld [vmem:[%s3560 + $0xe8] sm:$0xff]
        %v3591 = vld [vmem:[%s3560 + $0xf0] sm:$0xff]
        %v3592 = vld [vmem:[%s3560 + $0xf8] sm:$0xff]
        %v3593 = vld [vmem:[%s3560 + $0x100] sm:$0xff]
        %v3594 = vld [vmem:[%s3560 + $0x108] sm:$0xff]
        %v3595 = vld [vmem:[%s3560 + $0x110] sm:$0xff]
        %v3596 = vld [vmem:[%s3560 + $0x118] sm:$0xff]
        %v3597 = vld [vmem:[%s3560 + $0x120] sm:$0xff]
        %v3598 = vld [vmem:[%s3560 + $0x128] sm:$0xff]
        %v3599 = vld [vmem:[%s3560 + $0x130] sm:$0xff]
        %v3600 = vld [vmem:[%s3560 + $0x138] sm:$0xff]
        %v3601 = vld [vmem:[%s3560 + $0x140] sm:$0xff]
        %v3602 = vld [vmem:[%s3560 + $0x148] sm:$0xff]
        %v3603 = vld [vmem:[%s3560 + $0x150] sm:$0xff]
        %v3604 = vld [vmem:[%s3560 + $0x158] sm:$0xff]
        %v3605 = vld [vmem:[%s3560 + $0x160] sm:$0xff]
        %v3606 = vld [vmem:[%s3560 + $0x168] sm:$0xff]
        %v3607 = vld [vmem:[%s3560 + $0x170] sm:$0xff]
        %v3608 = vld [vmem:[%s3560 + $0x178] sm:$0xff]
        %v3609 = vld [vmem:[%s3560 + $0x180] sm:$0xff]
        %v3610 = vld [vmem:[%s3560 + $0x188] sm:$0xff]
        %v3611 = vld [vmem:[%s3560 + $0x190] sm:$0xff]
        %v3612 = vld [vmem:[%s3560 + $0x198] sm:$0xff]
        %v3613 = vld [vmem:[%s3560 + $0x1a0] sm:$0xff]
        %v3614 = vld [vmem:[%s3560 + $0x1a8] sm:$0xff]
        %v3615 = vld [vmem:[%s3560 + $0x1b0] sm:$0xff]
        %v3616 = vld [vmem:[%s3560 + $0x1b8] sm:$0xff]
        %v3617 = vld [vmem:[%s3560 + $0x1c0] sm:$0xff]
        %v3618 = vld [vmem:[%s3560 + $0x1c8] sm:$0xff]
        %v3619 = vld [vmem:[%s3560 + $0x1d0] sm:$0xff]
        %v3620 = vld [vmem:[%s3560 + $0x1d8] sm:$0xff]
        %v3621 = vld [vmem:[%s3560 + $0x1e0] sm:$0xff]
        %v3622 = vld [vmem:[%s3560 + $0x1e8] sm:$0xff]
        %v3623 = vld [vmem:[%s3560 + $0x1f0] sm:$0xff]
        %v3624 = vld [vmem:[%s3560 + $0x1f8] sm:$0xff]
        %v3625 = vld [vmem:[%s3560 + $0x200] sm:$0xff]
        %v3626 = vld [vmem:[%s3560 + $0x208] sm:$0xff]
        %v3627 = vld [vmem:[%s3560 + $0x210] sm:$0xff]
        %v3628 = vld [vmem:[%s3560 + $0x218] sm:$0xff]
        %v3629 = vld [vmem:[%s3560 + $0x220] sm:$0xff]
        %v3630 = vld [vmem:[%s3560 + $0x228] sm:$0xff]
        %v3631 = vld [vmem:[%s3560 + $0x230] sm:$0xff]
        %v3632 = vld [vmem:[%s3560 + $0x238] sm:$0xff]
        %v3633 = vld [vmem:[%s3560 + $0x240] sm:$0xff]
        %v3634 = vld [vmem:[%s3560 + $0x248] sm:$0xff]
        %v3635 = vld [vmem:[%s3560 + $0x250] sm:$0xf]
        %v3636 = vld [vmem:[%s3560 + $0x258] sm:$0xf]
        %v3637 = vsel %vm2914, %v3547, 0
        %v3639 = vsel %vm2914, %v3549, 0
        %v3642 = vsel %vm2049, %v3635, 0
        %v3645 = vsel %vm2049, %v3636, 0
        %3647 = vmatprep.subr.mxu0 %v3592
        %3648 = vmatpush1.msra.mxu0 %v3591
        %3649 = vmatprep.subr.mxu0 %v3590
        %3650 = vmatpush1.msra.mxu0 %v3589
        %3651 = vmatprep.subr.mxu0 %v3588
        %3652 = vmatpush1.msra.mxu0 %v3587
        %3653 = vmatprep.subr.mxu0 %v3586
        %3654 = vmatpush1.msra.mxu0 %v3585
        %3655 = vmatprep.subr.mxu0 %v3584
        %3656 = vmatpush1.msra.mxu0 %v3583
        %3657 = vmatprep.subr.mxu0 %v3582
        %3658 = vmatpush1.msra.mxu0 %v3581
        %3659 = vmatprep.subr.mxu0 %v3580
        %3660 = vmatpush1.msra.mxu0 %v3579
        %3661 = vmatprep.subr.mxu0 %v3578
        %3662 = vmatpush1.msra.mxu0 %v3577
        %3663 = vmatprep.subr.mxu0 %v3576
        %3664 = vmatpush1.msra.mxu0 %v3575
        %3665 = vmatprep.subr.mxu0 %v3574
        %3666 = vmatpush1.msra.mxu0 %v3573
        %3667 = vmatprep.subr.mxu0 %v3572
        %3668 = vmatpush1.msra.mxu0 %v3571
        %3669 = vmatprep.subr.mxu0 %v3570
        %3670 = vmatpush1.msra.mxu0 %v3569
        %3671 = vmatprep.subr.mxu0 %v3568
        %3672 = vmatpush1.msra.mxu0 %v3567
        %3673 = vmatprep.subr.mxu0 %v3566
        %3674 = vmatpush1.msra.mxu0 %v3565
        %3675 = vmatprep.subr.mxu0 %v3564
        %3676 = vmatpush1.msra.mxu0 %v3563
        %3677 = vmatprep.subr.mxu0 %v3562
        %3678 = vmatpush1.msra.mxu0 %v3561
        %3679 = vmatprep.subr.mxu0 %v3624
        %3680 = vmatpush2.msra.mxu0 %v3623
        %3681 = vmatprep.subr.mxu0 %v3622
        %3682 = vmatpush2.msra.mxu0 %v3621
        %3683 = vmatprep.subr.mxu0 %v3620
        %3684 = vmatpush2.msra.mxu0 %v3619
        %3685 = vmatprep.subr.mxu0 %v3618
        %3686 = vmatpush2.msra.mxu0 %v3617
        %3687 = vmatprep.subr.mxu0 %v3616
        %3688 = vmatpush2.msra.mxu0 %v3615
        %3689 = vmatprep.subr.mxu0 %v3614
        %3690 = vmatpush2.msra.mxu0 %v3613
        %3691 = vmatprep.subr.mxu0 %v3612
        %3692 = vmatpush2.msra.mxu0 %v3611
        %3693 = vmatprep.subr.mxu0 %v3610
        %3694 = vmatpush2.msra.mxu0 %v3609
        %3695 = vmatprep.subr.mxu0 %v3608
        %3696 = vmatpush2.msra.mxu0 %v3607
        %3697 = vmatprep.subr.mxu0 %v3606
        %3698 = vmatpush2.msra.mxu0 %v3605
        %3699 = vmatprep.subr.mxu0 %v3604
        %3700 = vmatpush2.msra.mxu0 %v3603
        %3701 = vmatprep.subr.mxu0 %v3602
        %3702 = vmatpush2.msra.mxu0 %v3601
        %3703 = vmatprep.subr.mxu0 %v3600
        %3704 = vmatpush2.msra.mxu0 %v3599
        %3705 = vmatprep.subr.mxu0 %v3598
        %3706 = vmatpush2.msra.mxu0 %v3597
        %3707 = vmatprep.subr.mxu0 %v3596
        %3708 = vmatpush2.msra.mxu0 %v3595
        %3709 = vmatprep.subr.mxu0 %v3594
        %3710 = vmatpush2.msra.mxu0 %v3593
        %3711 = vmatprep.mubr.f32.mxu0 %v3558
        %3712 = vmatmul.mubr.f32.gmra.mxu0 %v3554
        %v3713 = vpop.f32.mrf.mxu0
        %v3714 = vadd.f32 0.0, %v3713
        %v3715 = vpop.f32.mrf.mxu0
        %v3716 = vadd.f32 0.0, %v3715
        %3717 = vmatprep.mubr.f32.mxu0 %v3559
        %3718 = vmatmul.mubr.f32.gmra.mxu0 %v3555
        %v3719 = vpop.f32.mrf.mxu0
        %v3720 = vadd.f32 0.0, %v3719
        %v3721 = vpop.f32.mrf.mxu0
        %v3722 = vadd.f32 0.0, %v3721
        %3723 = vdwg.mxu0
        %3724 = vmatprep.subr.mxu0 0.0
        %3725 = vmatpush1.msra.mxu0 0.0
        %3726 = vmatprep.subr.mxu0 0.0
        %3727 = vmatpush1.msra.mxu0 0.0
        %3728 = vmatprep.subr.mxu0 0.0
        %3729 = vmatpush1.msra.mxu0 0.0
        %3730 = vmatprep.subr.mxu0 0.0
        %3731 = vmatpush1.msra.mxu0 0.0
        %3732 = vmatprep.subr.mxu0 0.0
        %3733 = vmatpush1.msra.mxu0 0.0
        %3734 = vmatprep.subr.mxu0 0.0
        %3735 = vmatpush1.msra.mxu0 0.0
        %3736 = vmatprep.subr.mxu0 0.0
        %3737 = vmatpush1.msra.mxu0 0.0
        %3738 = vmatprep.subr.mxu0 0.0
        %3739 = vmatpush1.msra.mxu0 0.0
        %3740 = vmatprep.subr.mxu0 0.0
        %3741 = vmatpush1.msra.mxu0 0.0
        %3742 = vmatprep.subr.mxu0 0.0
        %3743 = vmatpush1.msra.mxu0 0.0
        %3744 = vmatprep.subr.mxu0 %v3645
        %3745 = vmatpush1.msra.mxu0 %v3642
        %3746 = vmatprep.subr.mxu0 %v3634
        %3747 = vmatpush1.msra.mxu0 %v3633
        %3748 = vmatprep.subr.mxu0 %v3632
        %3749 = vmatpush1.msra.mxu0 %v3631
        %3750 = vmatprep.subr.mxu0 %v3630
        %3751 = vmatpush1.msra.mxu0 %v3629
        %3752 = vmatprep.subr.mxu0 %v3628
        %3753 = vmatpush1.msra.mxu0 %v3627
        %3754 = vmatprep.subr.mxu0 %v3626
        %3755 = vmatpush1.msra.mxu0 %v3625
        %3756 = vmatprep.subr.mxu0 0.0
        %3757 = vmatpush2.msra.mxu0 0.0
        %3758 = vmatprep.subr.mxu0 0.0
        %3759 = vmatpush2.msra.mxu0 0.0
        %3760 = vmatprep.subr.mxu0 0.0
        %3761 = vmatpush2.msra.mxu0 0.0
        %3762 = vmatprep.subr.mxu0 0.0
        %3763 = vmatpush2.msra.mxu0 0.0
        %3764 = vmatprep.subr.mxu0 0.0
        %3765 = vmatpush2.msra.mxu0 0.0
        %3766 = vmatprep.subr.mxu0 0.0
        %3767 = vmatpush2.msra.mxu0 0.0
        %3768 = vmatprep.subr.mxu0 0.0
        %3769 = vmatpush2.msra.mxu0 0.0
        %3770 = vmatprep.subr.mxu0 0.0
        %3771 = vmatpush2.msra.mxu0 0.0
        %3772 = vmatprep.subr.mxu0 0.0
        %3773 = vmatpush2.msra.mxu0 0.0
        %3774 = vmatprep.subr.mxu0 0.0
        %3775 = vmatpush2.msra.mxu0 0.0
        %3776 = vmatprep.subr.mxu0 0.0
        %3777 = vmatpush2.msra.mxu0 0.0
        %3778 = vmatprep.subr.mxu0 0.0
        %3779 = vmatpush2.msra.mxu0 0.0
        %3780 = vmatprep.subr.mxu0 0.0
        %3781 = vmatpush2.msra.mxu0 0.0
        %3782 = vmatprep.subr.mxu0 0.0
        %3783 = vmatpush2.msra.mxu0 0.0
        %3784 = vmatprep.subr.mxu0 0.0
        %3785 = vmatpush2.msra.mxu0 0.0
        %3786 = vmatprep.subr.mxu0 0.0
        %3787 = vmatpush2.msra.mxu0 0.0
        %3788 = vmatprep.mubr.f32.mxu0 0.0
        %3789 = vmatmul.mubr.f32.gmra.mxu0 %v3637
        %v3790 = vpop.f32.mrf.mxu0
        %v3791 = vadd.f32 %v3714, %v3790
        %v3792 = vpop.f32.mrf.mxu0
        %v3793 = vadd.f32 %v3716, %v3792
        %3794 = vmatprep.mubr.f32.mxu0 0.0
        %3795 = vmatmul.mubr.f32.gmra.mxu0 %v3639
        %v3796 = vpop.f32.mrf.mxu0
        %v3797 = vadd.f32 %v3720, %v3796
        %v3798 = vpop.f32.mrf.mxu0
        %v3799 = vadd.f32 %v3722, %v3798
        %3800 = vdwg.mxu0
        %v3801 = vadd.f32 %v3520, %v3791
        %v3802 = vadd.f32 %v3521, %v3793
        %v3803 = vadd.f32 %v3522, %v3797
        %v3804 = vadd.f32 %v3523, %v3799
        %v3805 = vld [vmem:[#allocation2 + $0x4] sm:$0xff]
        %v3806 = vld [vmem:[#allocation2 + $0xc] sm:$0x3]
        %3809 = vrot.lane.b32.xlu0 %v3805, 54
        %v3810 = vpop.permute.xlu0 %3809
        %3811 = vrot.lane.b32.xlu0 %v3806, 54
        %v3812 = vpop.permute.xlu0 %3811
        %3815 = vrot.lane.b32.xlu0 %v3805, 108
        %v3816 = vpop.permute.xlu0 %3815
        %3817 = vrot.lane.b32.xlu0 %v3806, 108
        %v3818 = vpop.permute.xlu0 %3817
        %3821 = vrot.lane.b32.xlu0 %v3805, 34
        %v3822 = vpop.permute.xlu0 %3821
        %3823 = vrot.lane.b32.xlu0 %v3806, 34
        %v3824 = vpop.permute.xlu0 %3823
        %3827 = vrot.lane.b32.xlu0 %v3805, 88
        %v3828 = vpop.permute.xlu0 %3827
        %3829 = vrot.lane.b32.xlu0 %v3806, 88
        %v3830 = vpop.permute.xlu0 %3829
        %v3833 = vsel %vm2713, %v3805, %v3810
        %v3834 = vsel %vm2713, %v3806, %v3812
        %v3835 = vsel %vm2716, %v3833, %v3816
        %v3836 = vsel %vm2716, %v3834, %v3818
        %v3837 = vsel %vm2719, %v3816, %v3822
        %v3838 = vsel %vm2719, %v3818, %v3824
        %v3839 = vsel %vm2722, %v3837, %v3828
        %v3840 = vsel %vm2722, %v3838, %v3830
        %s3841 = scalar_lea.vmem %s5, 2432
        %v3842 = vld [vmem:[%s3841] sm:$0xff]
        %v3843 = vld [vmem:[%s3841 + $0x8] sm:$0xff]
        %v3844 = vld [vmem:[%s3841 + $0x10] sm:$0xff]
        %v3845 = vld [vmem:[%s3841 + $0x18] sm:$0xff]
        %v3846 = vld [vmem:[%s3841 + $0x20] sm:$0xff]
        %v3847 = vld [vmem:[%s3841 + $0x28] sm:$0xff]
        %v3848 = vld [vmem:[%s3841 + $0x30] sm:$0xff]
        %v3849 = vld [vmem:[%s3841 + $0x38] sm:$0xff]
        %v3850 = vld [vmem:[%s3841 + $0x40] sm:$0xff]
        %v3851 = vld [vmem:[%s3841 + $0x48] sm:$0xff]
        %v3852 = vld [vmem:[%s3841 + $0x50] sm:$0xff]
        %v3853 = vld [vmem:[%s3841 + $0x58] sm:$0xff]
        %v3854 = vld [vmem:[%s3841 + $0x60] sm:$0xff]
        %v3855 = vld [vmem:[%s3841 + $0x68] sm:$0xff]
        %v3856 = vld [vmem:[%s3841 + $0x70] sm:$0xff]
        %v3857 = vld [vmem:[%s3841 + $0x78] sm:$0xff]
        %v3858 = vld [vmem:[%s3841 + $0x80] sm:$0xff]
        %v3859 = vld [vmem:[%s3841 + $0x88] sm:$0xff]
        %v3860 = vld [vmem:[%s3841 + $0x90] sm:$0xff]
        %v3861 = vld [vmem:[%s3841 + $0x98] sm:$0xff]
        %v3862 = vld [vmem:[%s3841 + $0xa0] sm:$0xff]
        %v3863 = vld [vmem:[%s3841 + $0xa8] sm:$0xff]
        %v3864 = vld [vmem:[%s3841 + $0xb0] sm:$0xff]
        %v3865 = vld [vmem:[%s3841 + $0xb8] sm:$0xff]
        %v3866 = vld [vmem:[%s3841 + $0xc0] sm:$0xff]
        %v3867 = vld [vmem:[%s3841 + $0xc8] sm:$0xff]
        %v3868 = vld [vmem:[%s3841 + $0xd0] sm:$0xff]
        %v3869 = vld [vmem:[%s3841 + $0xd8] sm:$0xff]
        %v3870 = vld [vmem:[%s3841 + $0xe0] sm:$0xff]
        %v3871 = vld [vmem:[%s3841 + $0xe8] sm:$0xff]
        %v3872 = vld [vmem:[%s3841 + $0xf0] sm:$0xff]
        %v3873 = vld [vmem:[%s3841 + $0xf8] sm:$0xff]
        %v3874 = vld [vmem:[%s3841 + $0x100] sm:$0xff]
        %v3875 = vld [vmem:[%s3841 + $0x108] sm:$0xff]
        %v3876 = vld [vmem:[%s3841 + $0x110] sm:$0xff]
        %v3877 = vld [vmem:[%s3841 + $0x118] sm:$0xff]
        %v3878 = vld [vmem:[%s3841 + $0x120] sm:$0xff]
        %v3879 = vld [vmem:[%s3841 + $0x128] sm:$0xff]
        %v3880 = vld [vmem:[%s3841 + $0x130] sm:$0xff]
        %v3881 = vld [vmem:[%s3841 + $0x138] sm:$0xff]
        %v3882 = vld [vmem:[%s3841 + $0x140] sm:$0xff]
        %v3883 = vld [vmem:[%s3841 + $0x148] sm:$0xff]
        %v3884 = vld [vmem:[%s3841 + $0x150] sm:$0xff]
        %v3885 = vld [vmem:[%s3841 + $0x158] sm:$0xff]
        %v3886 = vld [vmem:[%s3841 + $0x160] sm:$0xff]
        %v3887 = vld [vmem:[%s3841 + $0x168] sm:$0xff]
        %v3888 = vld [vmem:[%s3841 + $0x170] sm:$0xff]
        %v3889 = vld [vmem:[%s3841 + $0x178] sm:$0xff]
        %v3890 = vld [vmem:[%s3841 + $0x180] sm:$0xff]
        %v3891 = vld [vmem:[%s3841 + $0x188] sm:$0xff]
        %v3892 = vld [vmem:[%s3841 + $0x190] sm:$0xff]
        %v3893 = vld [vmem:[%s3841 + $0x198] sm:$0xff]
        %v3894 = vld [vmem:[%s3841 + $0x1a0] sm:$0xff]
        %v3895 = vld [vmem:[%s3841 + $0x1a8] sm:$0xff]
        %v3896 = vld [vmem:[%s3841 + $0x1b0] sm:$0xff]
        %v3897 = vld [vmem:[%s3841 + $0x1b8] sm:$0xff]
        %v3898 = vld [vmem:[%s3841 + $0x1c0] sm:$0xff]
        %v3899 = vld [vmem:[%s3841 + $0x1c8] sm:$0xff]
        %v3900 = vld [vmem:[%s3841 + $0x1d0] sm:$0xff]
        %v3901 = vld [vmem:[%s3841 + $0x1d8] sm:$0xff]
        %v3902 = vld [vmem:[%s3841 + $0x1e0] sm:$0xff]
        %v3903 = vld [vmem:[%s3841 + $0x1e8] sm:$0xff]
        %v3904 = vld [vmem:[%s3841 + $0x1f0] sm:$0xff]
        %v3905 = vld [vmem:[%s3841 + $0x1f8] sm:$0xff]
        %v3906 = vld [vmem:[%s3841 + $0x200] sm:$0xff]
        %v3907 = vld [vmem:[%s3841 + $0x208] sm:$0xff]
        %v3908 = vld [vmem:[%s3841 + $0x210] sm:$0xff]
        %v3909 = vld [vmem:[%s3841 + $0x218] sm:$0xff]
        %v3910 = vld [vmem:[%s3841 + $0x220] sm:$0xff]
        %v3911 = vld [vmem:[%s3841 + $0x228] sm:$0xff]
        %v3912 = vld [vmem:[%s3841 + $0x230] sm:$0xff]
        %v3913 = vld [vmem:[%s3841 + $0x238] sm:$0xff]
        %v3914 = vld [vmem:[%s3841 + $0x240] sm:$0xff]
        %v3915 = vld [vmem:[%s3841 + $0x248] sm:$0xff]
        %v3916 = vld [vmem:[%s3841 + $0x250] sm:$0xf]
        %v3917 = vld [vmem:[%s3841 + $0x258] sm:$0xf]
        %v3918 = vsel %vm2914, %v3828, 0
        %v3920 = vsel %vm2914, %v3830, 0
        %v3923 = vsel %vm2049, %v3916, 0
        %v3926 = vsel %vm2049, %v3917, 0
        %3928 = vmatprep.subr.mxu0 %v3873
        %3929 = vmatpush1.msra.mxu0 %v3872
        %3930 = vmatprep.subr.mxu0 %v3871
        %3931 = vmatpush1.msra.mxu0 %v3870
        %3932 = vmatprep.subr.mxu0 %v3869
        %3933 = vmatpush1.msra.mxu0 %v3868
        %3934 = vmatprep.subr.mxu0 %v3867
        %3935 = vmatpush1.msra.mxu0 %v3866
        %3936 = vmatprep.subr.mxu0 %v3865
        %3937 = vmatpush1.msra.mxu0 %v3864
        %3938 = vmatprep.subr.mxu0 %v3863
        %3939 = vmatpush1.msra.mxu0 %v3862
        %3940 = vmatprep.subr.mxu0 %v3861
        %3941 = vmatpush1.msra.mxu0 %v3860
        %3942 = vmatprep.subr.mxu0 %v3859
        %3943 = vmatpush1.msra.mxu0 %v3858
        %3944 = vmatprep.subr.mxu0 %v3857
        %3945 = vmatpush1.msra.mxu0 %v3856
        %3946 = vmatprep.subr.mxu0 %v3855
        %3947 = vmatpush1.msra.mxu0 %v3854
        %3948 = vmatprep.subr.mxu0 %v3853
        %3949 = vmatpush1.msra.mxu0 %v3852
        %3950 = vmatprep.subr.mxu0 %v3851
        %3951 = vmatpush1.msra.mxu0 %v3850
        %3952 = vmatprep.subr.mxu0 %v3849
        %3953 = vmatpush1.msra.mxu0 %v3848
        %3954 = vmatprep.subr.mxu0 %v3847
        %3955 = vmatpush1.msra.mxu0 %v3846
        %3956 = vmatprep.subr.mxu0 %v3845
        %3957 = vmatpush1.msra.mxu0 %v3844
        %3958 = vmatprep.subr.mxu0 %v3843
        %3959 = vmatpush1.msra.mxu0 %v3842
        %3960 = vmatprep.subr.mxu0 %v3905
        %3961 = vmatpush2.msra.mxu0 %v3904
        %3962 = vmatprep.subr.mxu0 %v3903
        %3963 = vmatpush2.msra.mxu0 %v3902
        %3964 = vmatprep.subr.mxu0 %v3901
        %3965 = vmatpush2.msra.mxu0 %v3900
        %3966 = vmatprep.subr.mxu0 %v3899
        %3967 = vmatpush2.msra.mxu0 %v3898
        %3968 = vmatprep.subr.mxu0 %v3897
        %3969 = vmatpush2.msra.mxu0 %v3896
        %3970 = vmatprep.subr.mxu0 %v3895
        %3971 = vmatpush2.msra.mxu0 %v3894
        %3972 = vmatprep.subr.mxu0 %v3893
        %3973 = vmatpush2.msra.mxu0 %v3892
        %3974 = vmatprep.subr.mxu0 %v3891
        %3975 = vmatpush2.msra.mxu0 %v3890
        %3976 = vmatprep.subr.mxu0 %v3889
        %3977 = vmatpush2.msra.mxu0 %v3888
        %3978 = vmatprep.subr.mxu0 %v3887
        %3979 = vmatpush2.msra.mxu0 %v3886
        %3980 = vmatprep.subr.mxu0 %v3885
        %3981 = vmatpush2.msra.mxu0 %v3884
        %3982 = vmatprep.subr.mxu0 %v3883
        %3983 = vmatpush2.msra.mxu0 %v3882
        %3984 = vmatprep.subr.mxu0 %v3881
        %3985 = vmatpush2.msra.mxu0 %v3880
        %3986 = vmatprep.subr.mxu0 %v3879
        %3987 = vmatpush2.msra.mxu0 %v3878
        %3988 = vmatprep.subr.mxu0 %v3877
        %3989 = vmatpush2.msra.mxu0 %v3876
        %3990 = vmatprep.subr.mxu0 %v3875
        %3991 = vmatpush2.msra.mxu0 %v3874
        %3992 = vmatprep.mubr.f32.mxu0 %v3839
        %3993 = vmatmul.mubr.f32.gmra.mxu0 %v3835
        %v3994 = vpop.f32.mrf.mxu0
        %v3995 = vadd.f32 0.0, %v3994
        %v3996 = vpop.f32.mrf.mxu0
        %v3997 = vadd.f32 0.0, %v3996
        %3998 = vmatprep.mubr.f32.mxu0 %v3840
        %3999 = vmatmul.mubr.f32.gmra.mxu0 %v3836
        %v4000 = vpop.f32.mrf.mxu0
        %v4001 = vadd.f32 0.0, %v4000
        %v4002 = vpop.f32.mrf.mxu0
        %v4003 = vadd.f32 0.0, %v4002
        %4004 = vdwg.mxu0
        %4005 = vmatprep.subr.mxu0 0.0
        %4006 = vmatpush1.msra.mxu0 0.0
        %4007 = vmatprep.subr.mxu0 0.0
        %4008 = vmatpush1.msra.mxu0 0.0
        %4009 = vmatprep.subr.mxu0 0.0
        %4010 = vmatpush1.msra.mxu0 0.0
        %4011 = vmatprep.subr.mxu0 0.0
        %4012 = vmatpush1.msra.mxu0 0.0
        %4013 = vmatprep.subr.mxu0 0.0
        %4014 = vmatpush1.msra.mxu0 0.0
        %4015 = vmatprep.subr.mxu0 0.0
        %4016 = vmatpush1.msra.mxu0 0.0
        %4017 = vmatprep.subr.mxu0 0.0
        %4018 = vmatpush1.msra.mxu0 0.0
        %4019 = vmatprep.subr.mxu0 0.0
        %4020 = vmatpush1.msra.mxu0 0.0
        %4021 = vmatprep.subr.mxu0 0.0
        %4022 = vmatpush1.msra.mxu0 0.0
        %4023 = vmatprep.subr.mxu0 0.0
        %4024 = vmatpush1.msra.mxu0 0.0
        %4025 = vmatprep.subr.mxu0 %v3926
        %4026 = vmatpush1.msra.mxu0 %v3923
        %4027 = vmatprep.subr.mxu0 %v3915
        %4028 = vmatpush1.msra.mxu0 %v3914
        %4029 = vmatprep.subr.mxu0 %v3913
        %4030 = vmatpush1.msra.mxu0 %v3912
        %4031 = vmatprep.subr.mxu0 %v3911
        %4032 = vmatpush1.msra.mxu0 %v3910
        %4033 = vmatprep.subr.mxu0 %v3909
        %4034 = vmatpush1.msra.mxu0 %v3908
        %4035 = vmatprep.subr.mxu0 %v3907
        %4036 = vmatpush1.msra.mxu0 %v3906
        %4037 = vmatprep.subr.mxu0 0.0
        %4038 = vmatpush2.msra.mxu0 0.0
        %4039 = vmatprep.subr.mxu0 0.0
        %4040 = vmatpush2.msra.mxu0 0.0
        %4041 = vmatprep.subr.mxu0 0.0
        %4042 = vmatpush2.msra.mxu0 0.0
        %4043 = vmatprep.subr.mxu0 0.0
        %4044 = vmatpush2.msra.mxu0 0.0
        %4045 = vmatprep.subr.mxu0 0.0
        %4046 = vmatpush2.msra.mxu0 0.0
        %4047 = vmatprep.subr.mxu0 0.0
        %4048 = vmatpush2.msra.mxu0 0.0
        %4049 = vmatprep.subr.mxu0 0.0
        %4050 = vmatpush2.msra.mxu0 0.0
        %4051 = vmatprep.subr.mxu0 0.0
        %4052 = vmatpush2.msra.mxu0 0.0
        %4053 = vmatprep.subr.mxu0 0.0
        %4054 = vmatpush2.msra.mxu0 0.0
        %4055 = vmatprep.subr.mxu0 0.0
        %4056 = vmatpush2.msra.mxu0 0.0
        %4057 = vmatprep.subr.mxu0 0.0
        %4058 = vmatpush2.msra.mxu0 0.0
        %4059 = vmatprep.subr.mxu0 0.0
        %4060 = vmatpush2.msra.mxu0 0.0
        %4061 = vmatprep.subr.mxu0 0.0
        %4062 = vmatpush2.msra.mxu0 0.0
        %4063 = vmatprep.subr.mxu0 0.0
        %4064 = vmatpush2.msra.mxu0 0.0
        %4065 = vmatprep.subr.mxu0 0.0
        %4066 = vmatpush2.msra.mxu0 0.0
        %4067 = vmatprep.subr.mxu0 0.0
        %4068 = vmatpush2.msra.mxu0 0.0
        %4069 = vmatprep.mubr.f32.mxu0 0.0
        %4070 = vmatmul.mubr.f32.gmra.mxu0 %v3918
        %v4071 = vpop.f32.mrf.mxu0
        %v4072 = vadd.f32 %v3995, %v4071
        %v4073 = vpop.f32.mrf.mxu0
        %v4074 = vadd.f32 %v3997, %v4073
        %4075 = vmatprep.mubr.f32.mxu0 0.0
        %4076 = vmatmul.mubr.f32.gmra.mxu0 %v3920
        %v4077 = vpop.f32.mrf.mxu0
        %v4078 = vadd.f32 %v4001, %v4077
        %v4079 = vpop.f32.mrf.mxu0
        %v4080 = vadd.f32 %v4003, %v4079
        %4081 = vdwg.mxu0
        %v4082 = vadd.f32 %v3801, %v4072
        %v4083 = vadd.f32 %v3802, %v4074
        %v4084 = vadd.f32 %v3803, %v4078
        %v4085 = vadd.f32 %v3804, %v4080
        %v4086 = vld [vmem:[%s6] sm:$0x3]
        %v4088 = vlaneseq
        %v4089 = vshrl.u32 %v4088, 7
        %v4090 = vsub.s32 0, %v4089
        %v4091 = vrot.slane %v4086, %v4090
        %v4092 = vlaneseq
        %v4093 = vshrl.u32 %v4092, 7
        %v4094 = vsub.s32 1, %v4093
        %v4095 = vrot.slane %v4086, %v4094
        %v4098 = vadd.f32 %v4082, %v4091
        %v4099 = vadd.f32 %v4083, %v4095
        %v4100 = vadd.f32 %v4084, %v4091
        %v4101 = vadd.f32 %v4085, %v4095
        %v4102 = vsub.f32 0.0, %v4098
        %v4103 = vsub.f32 0.0, %v4099
        %v4104 = vsub.f32 0.0, %v4100
        %v4105 = vsub.f32 0.0, %v4101
        %v4106 = vmul.f32 %v4102, 1.442695
        %v4107 = vpow.pop %v4106
        %v4108 = vmul.f32 %v4103, 1.442695
        %v4109 = vpow.pop %v4108
        %v4110 = vmul.f32 %v4104, 1.442695
        %v4111 = vpow.pop %v4110
        %v4112 = vmul.f32 %v4105, 1.442695
        %v4113 = vpow.pop %v4112
        %v4114 = vadd.f32 %v4107, 1.0
        %v4115 = vadd.f32 %v4109, 1.0
        %v4116 = vadd.f32 %v4111, 1.0
        %v4117 = vadd.f32 %v4113, 1.0
        %v4118 = vrcp.pop %v4114
        %v4119 = vmul.f32 1.0, %v4118
        %v4120 = vrcp.pop %v4115
        %v4121 = vmul.f32 1.0, %v4120
        %v4122 = vrcp.pop %v4116
        %v4123 = vmul.f32 1.0, %v4122
        %v4124 = vrcp.pop %v4117
        %v4125 = vmul.f32 1.0, %v4124
        %v4126 = vld [vmem:[%s7] sm:$0x1f]
        %vm4127 = vcmask 80896
        %v4129 = vsel %vm4127, %v4126, 0
        %vm4131 = vcmask 1041408
        %v4133 = vsel %vm4131, %v4123, 0
        %v4136 = vsel %vm4131, %v4125, 0
        %4138 = vmatprep.subr.mxu0 0.0
        %4139 = vmatpush1.msra.mxu0 0.0
        %4140 = vmatprep.subr.mxu0 0.0
        %4141 = vmatpush1.msra.mxu0 0.0
        %4142 = vmatprep.subr.mxu0 0.0
        %4143 = vmatpush1.msra.mxu0 0.0
        %4144 = vmatprep.subr.mxu0 0.0
        %4145 = vmatpush1.msra.mxu0 0.0
        %4146 = vmatprep.subr.mxu0 0.0
        %4147 = vmatpush1.msra.mxu0 0.0
        %4148 = vmatprep.subr.mxu0 0.0
        %4149 = vmatpush1.msra.mxu0 0.0
        %4150 = vmatprep.subr.mxu0 0.0
        %4151 = vmatpush1.msra.mxu0 0.0
        %4152 = vmatprep.subr.mxu0 0.0
        %4153 = vmatpush1.msra.mxu0 0.0
        %4154 = vmatprep.subr.mxu0 0.0
        %4155 = vmatpush1.msra.mxu0 0.0
        %4156 = vmatprep.subr.mxu0 0.0
        %4157 = vmatpush1.msra.mxu0 0.0
        %4158 = vmatprep.subr.mxu0 0.0
        %4159 = vmatpush1.msra.mxu0 0.0
        %4160 = vmatprep.subr.mxu0 0.0
        %4161 = vmatpush1.msra.mxu0 0.0
        %4162 = vmatprep.subr.mxu0 0.0
        %4163 = vmatpush1.msra.mxu0 0.0
        %4164 = vmatprep.subr.mxu0 0.0
        %4165 = vmatpush1.msra.mxu0 0.0
        %4166 = vmatprep.subr.mxu0 %v4136
        %4167 = vmatpush1.msra.mxu0 %v4133
        %4168 = vmatprep.subr.mxu0 %v4121
        %4169 = vmatpush1.msra.mxu0 %v4119
        %4170 = vmatprep.subr.mxu0 0.0
        %4171 = vmatpush2.msra.mxu0 0.0
        %4172 = vmatprep.subr.mxu0 0.0
        %4173 = vmatpush2.msra.mxu0 0.0
        %4174 = vmatprep.subr.mxu0 0.0
        %4175 = vmatpush2.msra.mxu0 0.0
        %4176 = vmatprep.subr.mxu0 0.0
        %4177 = vmatpush2.msra.mxu0 0.0
        %4178 = vmatprep.subr.mxu0 0.0
        %4179 = vmatpush2.msra.mxu0 0.0
        %4180 = vmatprep.subr.mxu0 0.0
        %4181 = vmatpush2.msra.mxu0 0.0
        %4182 = vmatprep.subr.mxu0 0.0
        %4183 = vmatpush2.msra.mxu0 0.0
        %4184 = vmatprep.subr.mxu0 0.0
        %4185 = vmatpush2.msra.mxu0 0.0
        %4186 = vmatprep.subr.mxu0 0.0
        %4187 = vmatpush2.msra.mxu0 0.0
        %4188 = vmatprep.subr.mxu0 0.0
        %4189 = vmatpush2.msra.mxu0 0.0
        %4190 = vmatprep.subr.mxu0 0.0
        %4191 = vmatpush2.msra.mxu0 0.0
        %4192 = vmatprep.subr.mxu0 0.0
        %4193 = vmatpush2.msra.mxu0 0.0
        %4194 = vmatprep.subr.mxu0 0.0
        %4195 = vmatpush2.msra.mxu0 0.0
        %4196 = vmatprep.subr.mxu0 0.0
        %4197 = vmatpush2.msra.mxu0 0.0
        %4198 = vmatprep.subr.mxu0 0.0
        %4199 = vmatpush2.msra.mxu0 0.0
        %4200 = vmatprep.subr.mxu0 0.0
        %4201 = vmatpush2.msra.mxu0 0.0
        %4202 = vmatprep.mubr.f32.mxu0 0.0
        %4203 = vmatmul.mubr.f32.gmra.mxu0 %v4129
        %v4204 = vpop.f32.mrf.mxu0
        %v4205 = vadd.f32 0.0, %v4204
        %v4206 = vpop.f32.mrf.mxu0
        %v4207 = vadd.f32 0.0, %v4206
        %4208 = vdwg.mxu0
        %v4209 = vld [vmem:[%s8] sm:$0xff]
        %v4210 = vld [vmem:[%s8 + $0x8] sm:$0xff]
        %v4211 = vld [vmem:[%s8 + $0x10] sm:$0xff]
        %v4212 = vld [vmem:[%s8 + $0x18] sm:$0xff]
        %v4213 = vld [vmem:[%s8 + $0x20] sm:$0xff]
        %v4214 = vld [vmem:[%s8 + $0x28] sm:$0xff]
        %v4215 = vld [vmem:[%s8 + $0x30] sm:$0xff]
        %v4216 = vld [vmem:[%s8 + $0x38] sm:$0xff]
        %v4217 = vld [vmem:[%s8 + $0x40] sm:$0xff]
        %v4218 = vld [vmem:[%s8 + $0x48] sm:$0xff]
        %v4219 = vld [vmem:[%s8 + $0x50] sm:$0xff]
        %v4220 = vld [vmem:[%s8 + $0x58] sm:$0xff]
        %v4221 = vld [vmem:[%s8 + $0x60] sm:$0xff]
        %v4222 = vld [vmem:[%s8 + $0x68] sm:$0xff]
        %v4223 = vld [vmem:[%s8 + $0x70] sm:$0xff]
        %v4224 = vld [vmem:[%s8 + $0x78] sm:$0xff]
        %v4225 = vld [vmem:[%s8 + $0x80] sm:$0xff]
        %v4226 = vld [vmem:[%s8 + $0x88] sm:$0xff]
        %v4227 = vld [vmem:[%s8 + $0x90] sm:$0xff]
        %v4228 = vld [vmem:[%s8 + $0x98] sm:$0xff]
        %vm4229 = vcmask 261120
        %v4231 = vsel %vm4229, %v4207, 0
        %4233 = vmatprep.subr.mxu0 0.0
        %4234 = vmatpush1.msra.mxu0 %v4224
        %4235 = vmatprep.subr.mxu0 0.0
        %4236 = vmatpush1.msra.mxu0 %v4223
        %4237 = vmatprep.subr.mxu0 0.0
        %4238 = vmatpush1.msra.mxu0 %v4222
        %4239 = vmatprep.subr.mxu0 0.0
        %4240 = vmatpush1.msra.mxu0 %v4221
        %4241 = vmatprep.subr.mxu0 0.0
        %4242 = vmatpush1.msra.mxu0 %v4220
        %4243 = vmatprep.subr.mxu0 0.0
        %4244 = vmatpush1.msra.mxu0 %v4219
        %4245 = vmatprep.subr.mxu0 0.0
        %4246 = vmatpush1.msra.mxu0 %v4218
        %4247 = vmatprep.subr.mxu0 0.0
        %4248 = vmatpush1.msra.mxu0 %v4217
        %4249 = vmatprep.subr.mxu0 0.0
        %4250 = vmatpush1.msra.mxu0 %v4216
        %4251 = vmatprep.subr.mxu0 0.0
        %4252 = vmatpush1.msra.mxu0 %v4215
        %4253 = vmatprep.subr.mxu0 0.0
        %4254 = vmatpush1.msra.mxu0 %v4214
        %4255 = vmatprep.subr.mxu0 0.0
        %4256 = vmatpush1.msra.mxu0 %v4213
        %4257 = vmatprep.subr.mxu0 0.0
        %4258 = vmatpush1.msra.mxu0 %v4212
        %4259 = vmatprep.subr.mxu0 0.0
        %4260 = vmatpush1.msra.mxu0 %v4211
        %4261 = vmatprep.subr.mxu0 0.0
        %4262 = vmatpush1.msra.mxu0 %v4210
        %4263 = vmatprep.subr.mxu0 0.0
        %4264 = vmatpush1.msra.mxu0 %v4209
        %4265 = vmatprep.subr.mxu0 0.0
        %4266 = vmatpush2.msra.mxu0 0.0
        %4267 = vmatprep.subr.mxu0 0.0
        %4268 = vmatpush2.msra.mxu0 0.0
        %4269 = vmatprep.subr.mxu0 0.0
        %4270 = vmatpush2.msra.mxu0 0.0
        %4271 = vmatprep.subr.mxu0 0.0
        %4272 = vmatpush2.msra.mxu0 0.0
        %4273 = vmatprep.subr.mxu0 0.0
        %4274 = vmatpush2.msra.mxu0 0.0
        %4275 = vmatprep.subr.mxu0 0.0
        %4276 = vmatpush2.msra.mxu0 0.0
        %4277 = vmatprep.subr.mxu0 0.0
        %4278 = vmatpush2.msra.mxu0 0.0
        %4279 = vmatprep.subr.mxu0 0.0
        %4280 = vmatpush2.msra.mxu0 0.0
        %4281 = vmatprep.subr.mxu0 0.0
        %4282 = vmatpush2.msra.mxu0 0.0
        %4283 = vmatprep.subr.mxu0 0.0
        %4284 = vmatpush2.msra.mxu0 0.0
        %4285 = vmatprep.subr.mxu0 0.0
        %4286 = vmatpush2.msra.mxu0 0.0
        %4287 = vmatprep.subr.mxu0 0.0
        %4288 = vmatpush2.msra.mxu0 0.0
        %4289 = vmatprep.subr.mxu0 0.0
        %4290 = vmatpush2.msra.mxu0 %v4228
        %4291 = vmatprep.subr.mxu0 0.0
        %4292 = vmatpush2.msra.mxu0 %v4227
        %4293 = vmatprep.subr.mxu0 0.0
        %4294 = vmatpush2.msra.mxu0 %v4226
        %4295 = vmatprep.subr.mxu0 0.0
        %4296 = vmatpush2.msra.mxu0 %v4225
        %4297 = vmatprep.mubr.f32.mxu0 %v4231
        %4298 = vmatmul.mubr.f32.gmra.mxu0 %v4205
        %v4299 = vpop.f32.mrf.mxu0
        %v4300 = vadd.f32 0.0, %v4299
        %v4301 = vpop.f32.mrf.mxu0
        %4302 = vdwg.mxu0
        %v4303 = vmul.f32 %v4300, 0.25
        %vm4304 = vcmask 651264
        %4305 = vst.msk [vmem:[#allocation3] sm:$0x1f] %vm4304, %v4303
        %v4306 = vld [vmem:[#allocation3] sm:$0x1]
        %v4307 = vld [vmem:[#allocation3 + $0x1] sm:$0x1]
        %v4308 = vld [vmem:[#allocation3 + $0x2] sm:$0x1]
        %v4309 = vld [vmem:[#allocation3 + $0x3] sm:$0x1]
        %v4310 = vld [vmem:[#allocation3 + $0x4] sm:$0x1]
        %4312 = vrot.lane.b32.xlu0 %v4307, 80
        %v4313 = vpop.permute.xlu0 %4312
        %4316 = vrot.lane.b32.xlu0 %v4308, 32
        %v4317 = vpop.permute.xlu0 %4316
        %4320 = vrot.lane.b32.xlu0 %v4309, 112
        %v4321 = vpop.permute.xlu0 %4320
        %4324 = vrot.lane.b32.xlu0 %v4310, 64
        %v4325 = vpop.permute.xlu0 %4324
        %vm4327 = vcmask 654336
        %v4328 = vsel %vm4327, %v4306, %v4313
        %v4329 = vsel %vm4229, %v4313, %v4317
        %v4330 = vsel %vm2722, %v4329, %v4321
        %vm4331 = vcmask 523264
        %v4332 = vsel %vm4331, %v4321, %v4325
        %v4333 = vld [vmem:[%s9] sm:$0xff]
        %v4334 = vld [vmem:[%s9 + $0x8] sm:$0xff]
        %v4335 = vld [vmem:[%s9 + $0x10] sm:$0xff]
        %v4336 = vld [vmem:[%s9 + $0x18] sm:$0xff]
        %v4337 = vld [vmem:[%s9 + $0x20] sm:$0xff]
        %v4338 = vld [vmem:[%s9 + $0x28] sm:$0xff]
        %v4339 = vld [vmem:[%s9 + $0x30] sm:$0xff]
        %v4340 = vld [vmem:[%s9 + $0x38] sm:$0xff]
        %v4341 = vld [vmem:[%s9 + $0x40] sm:$0xff]
        %v4342 = vld [vmem:[%s9 + $0x48] sm:$0xff]
        %v4343 = vld [vmem:[%s9 + $0x50] sm:$0xff]
        %v4344 = vld [vmem:[%s9 + $0x58] sm:$0xff]
        %v4345 = vld [vmem:[%s9 + $0x60] sm:$0xff]
        %v4346 = vld [vmem:[%s9 + $0x68] sm:$0xff]
        %v4347 = vld [vmem:[%s9 + $0x70] sm:$0xff]
        %v4348 = vld [vmem:[%s9 + $0x78] sm:$0xff]
        %v4349 = vld [vmem:[%s9 + $0x80] sm:$0xff]
        %v4350 = vld [vmem:[%s9 + $0x88] sm:$0xff]
        %v4351 = vld [vmem:[%s9 + $0x90] sm:$0xff]
        %v4352 = vld [vmem:[%s9 + $0x98] sm:$0xff]
        %v4353 = vld [vmem:[%s9 + $0xa0] sm:$0xff]
        %v4354 = vld [vmem:[%s9 + $0xa8] sm:$0xff]
        %v4355 = vld [vmem:[%s9 + $0xb0] sm:$0xff]
        %v4356 = vld [vmem:[%s9 + $0xb8] sm:$0xff]
        %v4357 = vld [vmem:[%s9 + $0xc0] sm:$0xff]
        %v4358 = vld [vmem:[%s9 + $0xc8] sm:$0xff]
        %v4359 = vld [vmem:[%s9 + $0xd0] sm:$0xff]
        %v4360 = vld [vmem:[%s9 + $0xd8] sm:$0xff]
        %v4361 = vld [vmem:[%s9 + $0xe0] sm:$0xff]
        %v4362 = vld [vmem:[%s9 + $0xe8] sm:$0xff]
        %v4363 = vld [vmem:[%s9 + $0xf0] sm:$0xff]
        %v4364 = vld [vmem:[%s9 + $0xf8] sm:$0xff]
        %v4365 = vld [vmem:[%s9 + $0x100] sm:$0xff]
        %v4366 = vld [vmem:[%s9 + $0x108] sm:$0xff]
        %v4367 = vld [vmem:[%s9 + $0x110] sm:$0xff]
        %v4368 = vld [vmem:[%s9 + $0x118] sm:$0xff]
        %v4369 = vld [vmem:[%s9 + $0x120] sm:$0xff]
        %v4370 = vld [vmem:[%s9 + $0x128] sm:$0xff]
        %v4371 = vld [vmem:[%s9 + $0x130] sm:$0xff]
        %v4372 = vld [vmem:[%s9 + $0x138] sm:$0xff]
        %v4373 = vld [vmem:[%s9 + $0x140] sm:$0xff]
        %v4374 = vld [vmem:[%s9 + $0x148] sm:$0xff]
        %v4375 = vld [vmem:[%s9 + $0x150] sm:$0xff]
        %v4376 = vld [vmem:[%s9 + $0x158] sm:$0xff]
        %v4377 = vld [vmem:[%s9 + $0x160] sm:$0xff]
        %v4378 = vld [vmem:[%s9 + $0x168] sm:$0xff]
        %v4379 = vld [vmem:[%s9 + $0x170] sm:$0xff]
        %v4380 = vld [vmem:[%s9 + $0x178] sm:$0xff]
        %v4381 = vld [vmem:[%s9 + $0x180] sm:$0xff]
        %v4382 = vld [vmem:[%s9 + $0x188] sm:$0xff]
        %v4383 = vld [vmem:[%s10] sm:$0x1]
        %vm4384 = vcmask 130048
        %v4385 = vsel %vm4384, %v4325, 0
        %4387 = vmatprep.subr.mxu0 0.0
        %4388 = vmatpush1.msra.mxu0 %v4348
        %4389 = vmatprep.subr.mxu0 0.0
        %4390 = vmatpush1.msra.mxu0 %v4347
        %4391 = vmatprep.subr.mxu0 0.0
        %4392 = vmatpush1.msra.mxu0 %v4346
        %4393 = vmatprep.subr.mxu0 0.0
        %4394 = vmatpush1.msra.mxu0 %v4345
        %4395 = vmatprep.subr.mxu0 0.0
        %4396 = vmatpush1.msra.mxu0 %v4344
        %4397 = vmatprep.subr.mxu0 0.0
        %4398 = vmatpush1.msra.mxu0 %v4343
        %4399 = vmatprep.subr.mxu0 0.0
        %4400 = vmatpush1.msra.mxu0 %v4342
        %4401 = vmatprep.subr.mxu0 0.0
        %4402 = vmatpush1.msra.mxu0 %v4341
        %4403 = vmatprep.subr.mxu0 0.0
        %4404 = vmatpush1.msra.mxu0 %v4340
        %4405 = vmatprep.subr.mxu0 0.0
        %4406 = vmatpush1.msra.mxu0 %v4339
        %4407 = vmatprep.subr.mxu0 0.0
        %4408 = vmatpush1.msra.mxu0 %v4338
        %4409 = vmatprep.subr.mxu0 0.0
        %4410 = vmatpush1.msra.mxu0 %v4337
        %4411 = vmatprep.subr.mxu0 0.0
        %4412 = vmatpush1.msra.mxu0 %v4336
        %4413 = vmatprep.subr.mxu0 0.0
        %4414 = vmatpush1.msra.mxu0 %v4335
        %4415 = vmatprep.subr.mxu0 0.0
        %4416 = vmatpush1.msra.mxu0 %v4334
        %4417 = vmatprep.subr.mxu0 0.0
        %4418 = vmatpush1.msra.mxu0 %v4333
        %4419 = vmatprep.subr.mxu0 0.0
        %4420 = vmatpush2.msra.mxu0 %v4364
        %4421 = vmatprep.subr.mxu0 0.0
        %4422 = vmatpush2.msra.mxu0 %v4363
        %4423 = vmatprep.subr.mxu0 0.0
        %4424 = vmatpush2.msra.mxu0 %v4362
        %4425 = vmatprep.subr.mxu0 0.0
        %4426 = vmatpush2.msra.mxu0 %v4361
        %4427 = vmatprep.subr.mxu0 0.0
        %4428 = vmatpush2.msra.mxu0 %v4360
        %4429 = vmatprep.subr.mxu0 0.0
        %4430 = vmatpush2.msra.mxu0 %v4359
        %4431 = vmatprep.subr.mxu0 0.0
        %4432 = vmatpush2.msra.mxu0 %v4358
        %4433 = vmatprep.subr.mxu0 0.0
        %4434 = vmatpush2.msra.mxu0 %v4357
        %4435 = vmatprep.subr.mxu0 0.0
        %4436 = vmatpush2.msra.mxu0 %v4356
        %4437 = vmatprep.subr.mxu0 0.0
        %4438 = vmatpush2.msra.mxu0 %v4355
        %4439 = vmatprep.subr.mxu0 0.0
        %4440 = vmatpush2.msra.mxu0 %v4354
        %4441 = vmatprep.subr.mxu0 0.0
        %4442 = vmatpush2.msra.mxu0 %v4353
        %4443 = vmatprep.subr.mxu0 0.0
        %4444 = vmatpush2.msra.mxu0 %v4352
        %4445 = vmatprep.subr.mxu0 0.0
        %4446 = vmatpush2.msra.mxu0 %v4351
        %4447 = vmatprep.subr.mxu0 0.0
        %4448 = vmatpush2.msra.mxu0 %v4350
        %4449 = vmatprep.subr.mxu0 0.0
        %4450 = vmatpush2.msra.mxu0 %v4349
        %4451 = vmatprep.mubr.f32.mxu0 %v4330
        %4452 = vmatmul.mubr.f32.gmra.mxu0 %v4328
        %v4453 = vpop.f32.mrf.mxu0
        %v4454 = vadd.f32 %v4383, %v4453
        %v4455 = vpop.f32.mrf.mxu0
        %4456 = vdwg.mxu0
        %4457 = vmatprep.subr.mxu0 0.0
        %4458 = vmatpush1.msra.mxu0 %v4380
        %4459 = vmatprep.subr.mxu0 0.0
        %4460 = vmatpush1.msra.mxu0 %v4379
        %4461 = vmatprep.subr.mxu0 0.0
        %4462 = vmatpush1.msra.mxu0 %v4378
        %4463 = vmatprep.subr.mxu0 0.0
        %4464 = vmatpush1.msra.mxu0 %v4377
        %4465 = vmatprep.subr.mxu0 0.0
        %4466 = vmatpush1.msra.mxu0 %v4376
        %4467 = vmatprep.subr.mxu0 0.0
        %4468 = vmatpush1.msra.mxu0 %v4375
        %4469 = vmatprep.subr.mxu0 0.0
        %4470 = vmatpush1.msra.mxu0 %v4374
        %4471 = vmatprep.subr.mxu0 0.0
        %4472 = vmatpush1.msra.mxu0 %v4373
        %4473 = vmatprep.subr.mxu0 0.0
        %4474 = vmatpush1.msra.mxu0 %v4372
        %4475 = vmatprep.subr.mxu0 0.0
        %4476 = vmatpush1.msra.mxu0 %v4371
        %4477 = vmatprep.subr.mxu0 0.0
        %4478 = vmatpush1.msra.mxu0 %v4370
        %4479 = vmatprep.subr.mxu0 0.0
        %4480 = vmatpush1.msra.mxu0 %v4369
        %4481 = vmatprep.subr.mxu0 0.0
        %4482 = vmatpush1.msra.mxu0 %v4368
        %4483 = vmatprep.subr.mxu0 0.0
        %4484 = vmatpush1.msra.mxu0 %v4367
        %4485 = vmatprep.subr.mxu0 0.0
        %4486 = vmatpush1.msra.mxu0 %v4366
        %4487 = vmatprep.subr.mxu0 0.0
        %4488 = vmatpush1.msra.mxu0 %v4365
        %4489 = vmatprep.subr.mxu0 0.0
        %4490 = vmatpush2.msra.mxu0 0.0
        %4491 = vmatprep.subr.mxu0 0.0
        %4492 = vmatpush2.msra.mxu0 0.0
        %4493 = vmatprep.subr.mxu0 0.0
        %4494 = vmatpush2.msra.mxu0 0.0
        %4495 = vmatprep.subr.mxu0 0.0
        %4496 = vmatpush2.msra.mxu0 0.0
        %4497 = vmatprep.subr.mxu0 0.0
        %4498 = vmatpush2.msra.mxu0 0.0
        %4499 = vmatprep.subr.mxu0 0.0
        %4500 = vmatpush2.msra.mxu0 0.0
        %4501 = vmatprep.subr.mxu0 0.0
        %4502 = vmatpush2.msra.mxu0 0.0
        %4503 = vmatprep.subr.mxu0 0.0
        %4504 = vmatpush2.msra.mxu0 0.0
        %4505 = vmatprep.subr.mxu0 0.0
        %4506 = vmatpush2.msra.mxu0 0.0
        %4507 = vmatprep.subr.mxu0 0.0
        %4508 = vmatpush2.msra.mxu0 0.0
        %4509 = vmatprep.subr.mxu0 0.0
        %4510 = vmatpush2.msra.mxu0 0.0
        %4511 = vmatprep.subr.mxu0 0.0
        %4512 = vmatpush2.msra.mxu0 0.0
        %4513 = vmatprep.subr.mxu0 0.0
        %4514 = vmatpush2.msra.mxu0 0.0
        %4515 = vmatprep.subr.mxu0 0.0
        %4516 = vmatpush2.msra.mxu0 0.0
        %4517 = vmatprep.subr.mxu0 0.0
        %4518 = vmatpush2.msra.mxu0 %v4382
        %4519 = vmatprep.subr.mxu0 0.0
        %4520 = vmatpush2.msra.mxu0 %v4381
        %4521 = vmatprep.mubr.f32.mxu0 %v4385
        %4522 = vmatmul.mubr.f32.gmra.mxu0 %v4332
        %v4523 = vpop.f32.mrf.mxu0
        %v4524 = vadd.f32 %v4454, %v4523
        %v4525 = vpop.f32.mrf.mxu0
        %4526 = vdwg.mxu0
        %v4527 = vld [vmem:[%s11] sm:$0xff]
        %v4528 = vld [vmem:[%s11 + $0x8] sm:$0xff]
        %v4529 = vld [vmem:[%s11 + $0x10] sm:$0xff]
        %v4530 = vld [vmem:[%s11 + $0x18] sm:$0xff]
        %v4531 = vld [vmem:[%s11 + $0x20] sm:$0xff]
        %v4532 = vld [vmem:[%s11 + $0x28] sm:$0xff]
        %v4533 = vld [vmem:[%s11 + $0x30] sm:$0xff]
        %v4534 = vld [vmem:[%s11 + $0x38] sm:$0xff]
        %v4535 = vld [vmem:[%s11 + $0x40] sm:$0xff]
        %v4536 = vld [vmem:[%s11 + $0x48] sm:$0xff]
        %v4537 = vld [vmem:[%s11 + $0x50] sm:$0xff]
        %v4538 = vld [vmem:[%s11 + $0x58] sm:$0xff]
        %v4539 = vld [vmem:[%s11 + $0x60] sm:$0xff]
        %v4540 = vld [vmem:[%s11 + $0x68] sm:$0xff]
        %v4541 = vld [vmem:[%s11 + $0x70] sm:$0xff]
        %v4542 = vld [vmem:[%s11 + $0x78] sm:$0xff]
        %v4543 = vld [vmem:[%s12] sm:$0x1]
        %4544 = vmatprep.subr.mxu0 0.0
        %4545 = vmatpush1.msra.mxu0 %v4542
        %4546 = vmatprep.subr.mxu0 0.0
        %4547 = vmatpush1.msra.mxu0 %v4541
        %4548 = vmatprep.subr.mxu0 0.0
        %4549 = vmatpush1.msra.mxu0 %v4540
        %4550 = vmatprep.subr.mxu0 0.0
        %4551 = vmatpush1.msra.mxu0 %v4539
        %4552 = vmatprep.subr.mxu0 0.0
        %4553 = vmatpush1.msra.mxu0 %v4538
        %4554 = vmatprep.subr.mxu0 0.0
        %4555 = vmatpush1.msra.mxu0 %v4537
        %4556 = vmatprep.subr.mxu0 0.0
        %4557 = vmatpush1.msra.mxu0 %v4536
        %4558 = vmatprep.subr.mxu0 0.0
        %4559 = vmatpush1.msra.mxu0 %v4535
        %4560 = vmatprep.subr.mxu0 0.0
        %4561 = vmatpush1.msra.mxu0 %v4534
        %4562 = vmatprep.subr.mxu0 0.0
        %4563 = vmatpush1.msra.mxu0 %v4533
        %4564 = vmatprep.subr.mxu0 0.0
        %4565 = vmatpush1.msra.mxu0 %v4532
        %4566 = vmatprep.subr.mxu0 0.0
        %4567 = vmatpush1.msra.mxu0 %v4531
        %4568 = vmatprep.subr.mxu0 0.0
        %4569 = vmatpush1.msra.mxu0 %v4530
        %4570 = vmatprep.subr.mxu0 0.0
        %4571 = vmatpush1.msra.mxu0 %v4529
        %4572 = vmatprep.subr.mxu0 0.0
        %4573 = vmatpush1.msra.mxu0 %v4528
        %4574 = vmatprep.subr.mxu0 0.0
        %4575 = vmatpush1.msra.mxu0 %v4527
        %4576 = vmatprep.subr.mxu0 0.0
        %4577 = vmatpush2.msra.mxu0 0.0
        %4578 = vmatprep.subr.mxu0 0.0
        %4579 = vmatpush2.msra.mxu0 0.0
        %4580 = vmatprep.subr.mxu0 0.0
        %4581 = vmatpush2.msra.mxu0 0.0
        %4582 = vmatprep.subr.mxu0 0.0
        %4583 = vmatpush2.msra.mxu0 0.0
        %4584 = vmatprep.subr.mxu0 0.0
        %4585 = vmatpush2.msra.mxu0 0.0
        %4586 = vmatprep.subr.mxu0 0.0
        %4587 = vmatpush2.msra.mxu0 0.0
        %4588 = vmatprep.subr.mxu0 0.0
        %4589 = vmatpush2.msra.mxu0 0.0
        %4590 = vmatprep.subr.mxu0 0.0
        %4591 = vmatpush2.msra.mxu0 0.0
        %4592 = vmatprep.subr.mxu0 0.0
        %4593 = vmatpush2.msra.mxu0 0.0
        %4594 = vmatprep.subr.mxu0 0.0
        %4595 = vmatpush2.msra.mxu0 0.0
        %4596 = vmatprep.subr.mxu0 0.0
        %4597 = vmatpush2.msra.mxu0 0.0
        %4598 = vmatprep.subr.mxu0 0.0
        %4599 = vmatpush2.msra.mxu0 0.0
        %4600 = vmatprep.subr.mxu0 0.0
        %4601 = vmatpush2.msra.mxu0 0.0
        %4602 = vmatprep.subr.mxu0 0.0
        %4603 = vmatpush2.msra.mxu0 0.0
        %4604 = vmatprep.subr.mxu0 0.0
        %4605 = vmatpush2.msra.mxu0 0.0
        %4606 = vmatprep.subr.mxu0 0.0
        %4607 = vmatpush2.msra.mxu0 0.0
        %4608 = vmatprep.mubr.f32.mxu0 0.0
        %4609 = vmatmul.mubr.f32.gmra.mxu0 %v4524
        %v4610 = vpop.f32.mrf.mxu0
        %v4611 = vadd.f32 %v4543, %v4610
        %v4612 = vpop.f32.mrf.mxu0
        %4613 = vdwg.mxu0
        %v4614 = vld [vmem:[%s13] sm:$0xff]
        %v4615 = vld [vmem:[%s13 + $0x8] sm:$0xff]
        %v4616 = vld [vmem:[%s13 + $0x10] sm:$0xff]
        %v4617 = vld [vmem:[%s13 + $0x18] sm:$0xff]
        %v4618 = vld [vmem:[%s13 + $0x20] sm:$0xff]
        %v4619 = vld [vmem:[%s13 + $0x28] sm:$0xff]
        %v4620 = vld [vmem:[%s13 + $0x30] sm:$0xff]
        %v4621 = vld [vmem:[%s13 + $0x38] sm:$0xff]
        %v4622 = vld [vmem:[%s13 + $0x40] sm:$0xff]
        %v4623 = vld [vmem:[%s13 + $0x48] sm:$0xff]
        %v4624 = vld [vmem:[%s13 + $0x50] sm:$0xff]
        %v4625 = vld [vmem:[%s13 + $0x58] sm:$0xff]
        %v4626 = vld [vmem:[%s13 + $0x60] sm:$0xff]
        %v4627 = vld [vmem:[%s13 + $0x68] sm:$0xff]
        %v4628 = vld [vmem:[%s13 + $0x70] sm:$0xff]
        %v4629 = vld [vmem:[%s13 + $0x78] sm:$0xff]
        %v4630 = vld [vmem:[%s14] sm:$0x1]
        %4631 = vmatprep.subr.mxu0 0.0
        %4632 = vmatpush1.msra.mxu0 %v4629
        %4633 = vmatprep.subr.mxu0 0.0
        %4634 = vmatpush1.msra.mxu0 %v4628
        %4635 = vmatprep.subr.mxu0 0.0
        %4636 = vmatpush1.msra.mxu0 %v4627
        %4637 = vmatprep.subr.mxu0 0.0
        %4638 = vmatpush1.msra.mxu0 %v4626
        %4639 = vmatprep.subr.mxu0 0.0
        %4640 = vmatpush1.msra.mxu0 %v4625
        %4641 = vmatprep.subr.mxu0 0.0
        %4642 = vmatpush1.msra.mxu0 %v4624
        %4643 = vmatprep.subr.mxu0 0.0
        %4644 = vmatpush1.msra.mxu0 %v4623
        %4645 = vmatprep.subr.mxu0 0.0
        %4646 = vmatpush1.msra.mxu0 %v4622
        %4647 = vmatprep.subr.mxu0 0.0
        %4648 = vmatpush1.msra.mxu0 %v4621
        %4649 = vmatprep.subr.mxu0 0.0
        %4650 = vmatpush1.msra.mxu0 %v4620
        %4651 = vmatprep.subr.mxu0 0.0
        %4652 = vmatpush1.msra.mxu0 %v4619
        %4653 = vmatprep.subr.mxu0 0.0
        %4654 = vmatpush1.msra.mxu0 %v4618
        %4655 = vmatprep.subr.mxu0 0.0
        %4656 = vmatpush1.msra.mxu0 %v4617
        %4657 = vmatprep.subr.mxu0 0.0
        %4658 = vmatpush1.msra.mxu0 %v4616
        %4659 = vmatprep.subr.mxu0 0.0
        %4660 = vmatpush1.msra.mxu0 %v4615
        %4661 = vmatprep.subr.mxu0 0.0
        %4662 = vmatpush1.msra.mxu0 %v4614
        %4663 = vmatprep.subr.mxu0 0.0
        %4664 = vmatpush2.msra.mxu0 0.0
        %4665 = vmatprep.subr.mxu0 0.0
        %4666 = vmatpush2.msra.mxu0 0.0
        %4667 = vmatprep.subr.mxu0 0.0
        %4668 = vmatpush2.msra.mxu0 0.0
        %4669 = vmatprep.subr.mxu0 0.0
        %4670 = vmatpush2.msra.mxu0 0.0
        %4671 = vmatprep.subr.mxu0 0.0
        %4672 = vmatpush2.msra.mxu0 0.0
        %4673 = vmatprep.subr.mxu0 0.0
        %4674 = vmatpush2.msra.mxu0 0.0
        %4675 = vmatprep.subr.mxu0 0.0
        %4676 = vmatpush2.msra.mxu0 0.0
        %4677 = vmatprep.subr.mxu0 0.0
        %4678 = vmatpush2.msra.mxu0 0.0
        %4679 = vmatprep.subr.mxu0 0.0
        %4680 = vmatpush2.msra.mxu0 0.0
        %4681 = vmatprep.subr.mxu0 0.0
        %4682 = vmatpush2.msra.mxu0 0.0
        %4683 = vmatprep.subr.mxu0 0.0
        %4684 = vmatpush2.msra.mxu0 0.0
        %4685 = vmatprep.subr.mxu0 0.0
        %4686 = vmatpush2.msra.mxu0 0.0
        %4687 = vmatprep.subr.mxu0 0.0
        %4688 = vmatpush2.msra.mxu0 0.0
        %4689 = vmatprep.subr.mxu0 0.0
        %4690 = vmatpush2.msra.mxu0 0.0
        %4691 = vmatprep.subr.mxu0 0.0
        %4692 = vmatpush2.msra.mxu0 0.0
        %4693 = vmatprep.subr.mxu0 0.0
        %4694 = vmatpush2.msra.mxu0 0.0
        %4695 = vmatprep.mubr.f32.mxu0 0.0
        %4696 = vmatmul.mubr.f32.gmra.mxu0 %v4611
        %v4697 = vpop.f32.mrf.mxu0
        %v4698 = vadd.f32 %v4630, %v4697
        %v4699 = vpop.f32.mrf.mxu0
        %4700 = vdwg.mxu0
        %4701 = vst [vmem:[%s486] sm:$0x1] %v4698
        %s4702 = sand.u32 %s357, 1
        %s4703 = scalar_lea.sflag [#allocation5], %s4702
        %s4704 = sand.u32 %s357, 1
        %s4705 = scalar_lea.vmem [#allocation4], %s4704
        // Predicated region
        $region81: #{lenet5_forward.1} parent=79 // pred_check
          %p4706 = pneg %p367
        $region82: #{lenet5_forward.1} parent=79 // pred_check_branch
          %4708 = sbr.rel (%p4706) target = $region84
        $region83: #{lenet5_forward.1} parent=79 // pred_region
          %s4710 = ssub.s32 16, 16
          %4711 = vsyncadd %s4703, %s4710
          %s4712 = smul.addr %s29, 16
          %s4713 = scalar_lea.hbm %s15, %s4712
          %s4715 = sshll.u32 %s4705, 4
          %s4716 = int_to_ptr.vmem [resolvable:$true] %s4715
          %4718 = dma.vmem_to_hbm [thread:$0]  %s4716, 16, %s4713, %s4703
        $region84: #{lenet5_forward.1} parent=79 // pred_fallthru
          _
      $region80: #{lenet5_forward.1} parent=5 // pred_fallthru
        _
      %p4719 = scmp.le.s32.totalorder 2, %s24
      // Predicated region
      $region85: #{lenet5_forward.1} parent=5 // pred_check
        %p4720 = pneg %p4719
      $region86: #{lenet5_forward.1} parent=5 // pred_check_branch
        %4722 = sbr.rel (%p4720) target = $region88
      $region87: #{lenet5_forward.1} parent=5 // pred_region
        %s4723 = ssub.s32 %s24, 2
        // Predicated region
        $region89: #{lenet5_forward.1} parent=87 // pred_check
          %p4724 = pneg %p373
        $region90: #{lenet5_forward.1} parent=87 // pred_check_branch
          %4726 = sbr.rel (%p4724) target = $region92
        $region91: #{lenet5_forward.1} parent=87 // pred_region
          %s4727 = sand.u32 %s358, 1
          %s4728 = scalar_lea.sflag [#allocation5], %s4727
          %s4729 = sand.u32 %s358, 1
          %s4730 = scalar_lea.vmem [#allocation4], %s4729
          %4731 = dma.done %s4728, 16
        $region92: #{lenet5_forward.1} parent=87 // pred_fallthru
          _
      $region88: #{lenet5_forward.1} parent=5 // pred_fallthru
        _
    $region6: #{lenet5_forward.1} parent=1 // loop_footer
      %s28 = sadd.s32 1, %s24
    $region7: #{lenet5_forward.1} parent=1 // loop_footer_branch
      %23 = sbr.rel target = $region3
    $region8: #{lenet5_forward.1} parent=1 // loop_exit
      _
    %4732 = vsyncpa [#allocation5], 1
    %s4733 = scalar_lea.sflag [#allocation5], 1
    %4734 = vsyncpa %s4733, 1

</llo_original>
